<compile_context>
chip_gen: v5e
topology: v5e:2x2
jax: 0.10.0
libtpu: 0.0.40
codegen_flags: <defaults>
</compile_context>

<pallas_src>
import functools

import jax
import jax.numpy as jnp
from jax.experimental import pallas as pl
from jax.experimental.pallas import tpu as pltpu


def _make_kernel(bt, T, E, H):
    """Kernel body for fixed static shapes (bt = batch tile)."""
    f32 = jnp.float32
    H2, H4, H6, H8 = 2 * H, 4 * H, 6 * H, 8 * H

    def run_layer(zx, whh_blk):
        # zx: [bt, T, 8H] pre-activations (x-projection + bias) in fused gate
        # order (i_f,i_b,f_f,f_b,o_f,o_b,g_f,g_b); whh_blk: [2H, 8H] block-diag.
        h = jnp.zeros((bt, H2), f32)      # [h_fwd | h_bwd]
        c = jnp.zeros((bt, H2), f32)      # [c_fwd | c_bwd]
        steps = []
        for t in range(T):                # fully unrolled, static indices
            z = zx[:, t, :] + jnp.dot(h, whh_blk, preferred_element_type=f32)
            zs = jax.nn.sigmoid(z[:, :H6])      # i,f,o gates (both directions)
            g = jnp.tanh(z[:, H6:])             # g gate (both directions)
            i_g = zs[:, 0:H2]
            f_g = zs[:, H2:H4]
            o_g = zs[:, H4:H6]
            c = f_g * c + i_g * g
            h = o_g * jnp.tanh(c)
            steps.append(h)
        return h, steps

    def kernel(x0_ref, w0_ref, b0_ref, whh0_ref,
               w1_ref, b1_ref, whh1_ref,
               wfc_ref, bfc_ref, out_ref):
        # ---- layer 0: hoisted input projection (one big matmul) ----
        x0 = x0_ref[...].reshape(bt * T, 2 * E)          # [bt*T, 2E]
        zx0 = (jnp.dot(x0, w0_ref[...], preferred_element_type=f32)
               + b0_ref[...]).reshape(bt, T, H8)

        # ---- layer 0: fused fwd+bwd recurrence ----
        _, steps0 = run_layer(zx0, whh0_ref[...])

        # ---- layer 1: hoisted input projection ----
        # Fused-loop iteration t consumes [state(t) | state(T-1-t)]; the row
        # permutation matching this layout is pre-applied to w1_blk outside.
        rows = [jnp.concatenate([steps0[t], steps0[T - 1 - t]], axis=-1)
                for t in range(T)]                        # each [bt, 4H]
        x1 = jnp.stack(rows, axis=1).reshape(bt * T, 4 * H)
        zx1 = (jnp.dot(x1, w1_ref[...], preferred_element_type=f32)
               + b1_ref[...]).reshape(bt, T, H8)

        # ---- layer 1: fused fwd+bwd recurrence ----
        h1, _ = run_layer(zx1, whh1_ref[...])             # [bt, 2H] = cat(h_fwd, h_bwd)

        # ---- fc (dropout = identity in eval); lane-dense padded output ----
        out_ref[...] = (jnp.dot(h1, wfc_ref[...], preferred_element_type=f32)
                        + bfc_ref[...])

    return kernel


# ---------------- fused-weight packing (plain-JAX glue) ----------------

def _gates(w, H):
    # columns in PyTorch gate order (i, f, g, o)
    return w[:, 0:H], w[:, H:2 * H], w[:, 2 * H:3 * H], w[:, 3 * H:4 * H]


def _block_w(wf, wb, H):
    """Block weight [Df+Db, 8H]; fused column order (i_f,i_b,f_f,f_b,o_f,o_b,g_f,g_b).

    Rows 0:Df act on the forward-direction input, rows Df: on the backward one.
    """
    i_f, f_f, g_f, o_f = _gates(wf, H)
    i_b, f_b, g_b, o_b = _gates(wb, H)
    zf = jnp.zeros((wf.shape[0], H), wf.dtype)
    zb = jnp.zeros((wb.shape[0], H), wb.dtype)
    top = jnp.concatenate([i_f, zf, f_f, zf, o_f, zf, g_f, zf], axis=1)
    bot = jnp.concatenate([zb, i_b, zb, f_b, zb, o_b, zb, g_b], axis=1)
    return jnp.concatenate([top, bot], axis=0)


def _block_b(bf, bb, H):
    i_f, f_f, g_f, o_f = _gates(bf, H)
    i_b, f_b, g_b, o_b = _gates(bb, H)
    return jnp.concatenate([i_f, i_b, f_f, f_b, o_f, o_b, g_f, g_b], axis=1)


@functools.partial(jax.jit, static_argnames=("num_classes",))
def bilstm_forward(input_ids, params, num_classes):
    """Forward pass equivalent to BiLSTMClassifier.forward (eval mode)."""
    emb_table = params["embedding"]                        # [V, E]
    emb = emb_table[input_ids].astype(jnp.float32)         # gather glue: [B, T, E]

    B, T = input_ids.shape
    E = emb_table.shape[1]
    H = params["whh_l0_f"].shape[0]
    C = num_classes
    CPAD = ((C + 127) // 128) * 128                        # lane-dense logits block

    # ----- pack fused / block-diagonal weights (one-time, outside the kernel) -----
    w0_blk = _block_w(params["wih_l0_f"], params["wih_l0_b"], H)      # [2E, 8H]
    whh0_blk = _block_w(params["whh_l0_f"], params["whh_l0_b"], H)    # [2H, 8H]
    b0_blk = _block_b(params["b_l0_f"], params["b_l0_b"], H)          # [1, 8H]

    w1_nat = _block_w(params["wih_l1_f"], params["wih_l1_b"], H)      # [4H, 8H]
    # permute rows so layer-1 input can be [state(t) | state(T-1-t)]
    w1_blk = jnp.concatenate(
        [w1_nat[0:H], w1_nat[3 * H:4 * H], w1_nat[2 * H:3 * H], w1_nat[H:2 * H]],
        axis=0)
    whh1_blk = _block_w(params["whh_l1_f"], params["whh_l1_b"], H)    # [2H, 8H]
    b1_blk = _block_b(params["b_l1_f"], params["b_l1_b"], H)          # [1, 8H]

    wfc = jnp.zeros((2 * H, CPAD), jnp.float32).at[:, :C].set(params["w_fc"])
    bfc = jnp.zeros((1, CPAD), jnp.float32).at[:, :C].set(params["b_fc"])

    # extended layer-0 input: fwd part reads emb[t], bwd part reads emb[T-1-t]
    x0 = jnp.concatenate([emb, jnp.flip(emb, axis=1)], axis=-1)        # [B, T, 2E]

    # ----- batch tiling (single program at toy B; parallel tiles at large B) -----
    bt = B
    for cand in (256, 128, 64, 32, 16, 8):
        if B % cand == 0:
            bt = cand
            break

    kernel = _make_kernel(bt, T, E, H)

    def full_spec(a):
        return pl.BlockSpec(a.shape, lambda i, _nd=a.ndim: (0,) * _nd)

    out = pl.pallas_call(
        kernel,
        out_shape=jax.ShapeDtypeStruct((B, CPAD), jnp.float32),
        grid=(B // bt,),
        in_specs=[
            pl.BlockSpec((bt, T, 2 * E), lambda i: (i, 0, 0)),
            full_spec(w0_blk), full_spec(b0_blk), full_spec(whh0_blk),
            full_spec(w1_blk), full_spec(b1_blk), full_spec(whh1_blk),
            full_spec(wfc), full_spec(bfc),
        ],
        out_specs=pl.BlockSpec((bt, CPAD), lambda i: (i, 0)),
        compiler_params=pltpu.CompilerParams(
            dimension_semantics=("parallel",)),
    )(x0, w0_blk, b0_blk, whh0_blk, w1_blk, b1_blk, whh1_blk, wfc, bfc)

    return out[:, :C]


def init_params(key, vocab_size, embed_dim, hidden_dim, num_classes):
    """Deterministic synthetic parameters (shapes match nn.Embedding/LSTM/Linear).

    LSTM weights are stored pre-transposed ([in, 4H] / [H, 4H], gate order i,f,g,o)
    and the two PyTorch biases (b_ih + b_hh) are pre-summed into a single [1, 4H].
    """
    H = hidden_dim
    keys = jax.random.split(key, 20)
    k = iter(keys)
    s = 0.1

    def u(kk, shape):
        return jax.random.uniform(kk, shape, jnp.float32, -s, s)

    params = {
        "embedding": jax.random.normal(next(k), (vocab_size, embed_dim), jnp.float32),
        # layer 0 (input size = embed_dim), forward / backward directions
        "wih_l0_f": u(next(k), (embed_dim, 4 * H)),
        "whh_l0_f": u(next(k), (H, 4 * H)),
        "b_l0_f":   u(next(k), (1, 4 * H)),
        "wih_l0_b": u(next(k), (embed_dim, 4 * H)),
        "whh_l0_b": u(next(k), (H, 4 * H)),
        "b_l0_b":   u(next(k), (1, 4 * H)),
        # layer 1 (input size = 2*hidden_dim), forward / backward directions
        "wih_l1_f": u(next(k), (2 * H, 4 * H)),
        "whh_l1_f": u(next(k), (H, 4 * H)),
        "b_l1_f":   u(next(k), (1, 4 * H)),
        "wih_l1_b": u(next(k), (2 * H, 4 * H)),
        "whh_l1_b": u(next(k), (H, 4 * H)),
        "b_l1_b":   u(next(k), (1, 4 * H)),
        # fc: Linear(2H, num_classes), stored transposed [2H, C]
        "w_fc": u(next(k), (2 * H, num_classes)),
        "b_fc": u(next(k), (1, num_classes)),
    }
    return params


if __name__ == "__main__":
    VOCAB = 32
    EMBED = 16
    HIDDEN = 32
    NUM_CLASSES = 4
    B, T = 2, 8

    key = jax.random.PRNGKey(0)
    pkey, ikey = jax.random.split(key)
    params = init_params(pkey, VOCAB, EMBED, HIDDEN, NUM_CLASSES)
    input_ids = jax.random.randint(ikey, (B, T), 0, VOCAB, dtype=jnp.int32)

    logits = bilstm_forward(input_ids, params, NUM_CLASSES)
    jax.block_until_ready(logits)
    assert logits.shape == (B, NUM_CLASSES)
    assert logits.dtype == jnp.float32
    print("KERNEL_OK")
</pallas_src>

<mosaic_0001>
module attributes {stable_mosaic.version = 11 : i64} {
  func.func @kernel(%arg0: i32, %arg1: memref<2x8x32xf32, #tpu.memory_space<vmem>>, %arg2: memref<32x256xf32, #tpu.memory_space<vmem>>, %arg3: memref<1x256xf32, #tpu.memory_space<vmem>>, %arg4: memref<64x256xf32, #tpu.memory_space<vmem>>, %arg5: memref<128x256xf32, #tpu.memory_space<vmem>>, %arg6: memref<1x256xf32, #tpu.memory_space<vmem>>, %arg7: memref<64x256xf32, #tpu.memory_space<vmem>>, %arg8: memref<64x128xf32, #tpu.memory_space<vmem>>, %arg9: memref<1x128xf32, #tpu.memory_space<vmem>>, %arg10: memref<2x128xf32, #tpu.memory_space<vmem>>) attributes {dimension_semantics = [#tpu.dimension_semantics<parallel>], iteration_bounds = array<i64: 1>, scalar_prefetch = 0 : i64, scratch_operands = 0 : i64, tpu.core_type = #tpu.core_type<tc>, window_params = [{transform_indices = @transform_0, window_bounds = array<i64: 2, 8, 32>}, {pipeline_mode = #tpu.pipeline_mode<synchronous>, transform_indices = @transform_1, window_bounds = array<i64: 32, 256>}, {pipeline_mode = #tpu.pipeline_mode<synchronous>, transform_indices = @transform_2, window_bounds = array<i64: 1, 256>}, {pipeline_mode = #tpu.pipeline_mode<synchronous>, transform_indices = @transform_3, window_bounds = array<i64: 64, 256>}, {pipeline_mode = #tpu.pipeline_mode<synchronous>, transform_indices = @transform_4, window_bounds = array<i64: 128, 256>}, {pipeline_mode = #tpu.pipeline_mode<synchronous>, transform_indices = @transform_5, window_bounds = array<i64: 1, 256>}, {pipeline_mode = #tpu.pipeline_mode<synchronous>, transform_indices = @transform_6, window_bounds = array<i64: 64, 256>}, {pipeline_mode = #tpu.pipeline_mode<synchronous>, transform_indices = @transform_7, window_bounds = array<i64: 64, 128>}, {pipeline_mode = #tpu.pipeline_mode<synchronous>, transform_indices = @transform_8, window_bounds = array<i64: 1, 128>}, {transform_indices = @transform_9, window_bounds = array<i64: 2, 128>}]} {
    %c0 = arith.constant 0 : index
    %c0_0 = arith.constant 0 : index
    %c0_1 = arith.constant 0 : index
    %0 = vector.load %arg1[%c0, %c0_0, %c0_1] : memref<2x8x32xf32, #tpu.memory_space<vmem>>, vector<2x8x32xf32>
    %1 = vector.shape_cast %0 : vector<2x8x32xf32> to vector<16x32xf32>
    %c0_2 = arith.constant 0 : index
    %c0_3 = arith.constant 0 : index
    %2 = vector.load %arg2[%c0_2, %c0_3] : memref<32x256xf32, #tpu.memory_space<vmem>>, vector<32x256xf32>
    %cst = arith.constant dense<0.000000e+00> : vector<16x256xf32>
    %3 = tpu.matmul %1, %2, %cst {dimension_numbers = #tpu.dot_dimension_numbers<[1], [0], [0], [1], [0, 0, 1, 1], [], []>} : vector<16x32xf32>, vector<32x256xf32>, vector<16x256xf32> -> vector<16x256xf32>
    %c0_4 = arith.constant 0 : index
    %c0_5 = arith.constant 0 : index
    %4 = vector.load %arg3[%c0_4, %c0_5] : memref<1x256xf32, #tpu.memory_space<vmem>>, vector<1x256xf32>
    %5 = vector.broadcast %4 : vector<1x256xf32> to vector<16x256xf32>
    %6 = arith.addf %3, %5 : vector<16x256xf32>
    %7 = vector.shape_cast %6 : vector<16x256xf32> to vector<2x8x256xf32>
    %c0_6 = arith.constant 0 : index
    %c0_7 = arith.constant 0 : index
    %8 = vector.load %arg4[%c0_6, %c0_7] : memref<64x256xf32, #tpu.memory_space<vmem>>, vector<64x256xf32>
    %cst_8 = arith.constant 0.000000e+00 : f32
    %9 = vector.broadcast %cst_8 : f32 to vector<2x64xf32>
    %cst_9 = arith.constant 0.000000e+00 : f32
    %10 = vector.broadcast %cst_9 : f32 to vector<2x64xf32>
    %11 = vector.extract_strided_slice %7 {offsets = [0, 0, 0], sizes = [2, 1, 256], strides = [1, 1, 1]} : vector<2x8x256xf32> to vector<2x1x256xf32>
    %12 = vector.shape_cast %11 : vector<2x1x256xf32> to vector<2x256xf32>
    %cst_10 = arith.constant dense<0.000000e+00> : vector<2x256xf32>
    %13 = tpu.matmul %9, %8, %cst_10 {dimension_numbers = #tpu.dot_dimension_numbers<[1], [0], [0], [1], [0, 0, 1, 1], [], []>} : vector<2x64xf32>, vector<64x256xf32>, vector<2x256xf32> -> vector<2x256xf32>
    %14 = arith.addf %12, %13 : vector<2x256xf32>
    %15 = vector.extract_strided_slice %14 {offsets = [0, 0], sizes = [2, 192], strides = [1, 1]} : vector<2x256xf32> to vector<2x192xf32>
    %16 = arith.negf %15 : vector<2x192xf32>
    %17 = math.exp %16 : vector<2x192xf32>
    %cst_11 = arith.constant 1.000000e+00 : f32
    %18 = vector.broadcast %cst_11 : f32 to vector<2x192xf32>
    %19 = arith.addf %18, %17 : vector<2x192xf32>
    %20 = arith.divf %18, %19 : vector<2x192xf32>
    %21 = vector.extract_strided_slice %14 {offsets = [0, 192], sizes = [2, 64], strides = [1, 1]} : vector<2x256xf32> to vector<2x64xf32>
    %22 = math.tanh %21 : vector<2x64xf32>
    %23 = vector.extract_strided_slice %20 {offsets = [0, 0], sizes = [2, 64], strides = [1, 1]} : vector<2x192xf32> to vector<2x64xf32>
    %24 = vector.extract_strided_slice %20 {offsets = [0, 64], sizes = [2, 64], strides = [1, 1]} : vector<2x192xf32> to vector<2x64xf32>
    %25 = vector.extract_strided_slice %20 {offsets = [0, 128], sizes = [2, 64], strides = [1, 1]} : vector<2x192xf32> to vector<2x64xf32>
    %26 = arith.mulf %24, %10 : vector<2x64xf32>
    %27 = arith.mulf %23, %22 : vector<2x64xf32>
    %28 = arith.addf %26, %27 : vector<2x64xf32>
    %29 = math.tanh %28 : vector<2x64xf32>
    %30 = arith.mulf %25, %29 : vector<2x64xf32>
    %31 = vector.extract_strided_slice %7 {offsets = [0, 1, 0], sizes = [2, 1, 256], strides = [1, 1, 1]} : vector<2x8x256xf32> to vector<2x1x256xf32>
    %32 = vector.shape_cast %31 : vector<2x1x256xf32> to vector<2x256xf32>
    %cst_12 = arith.constant dense<0.000000e+00> : vector<2x256xf32>
    %33 = tpu.matmul %30, %8, %cst_12 {dimension_numbers = #tpu.dot_dimension_numbers<[1], [0], [0], [1], [0, 0, 1, 1], [], []>} : vector<2x64xf32>, vector<64x256xf32>, vector<2x256xf32> -> vector<2x256xf32>
    %34 = arith.addf %32, %33 : vector<2x256xf32>
    %35 = vector.extract_strided_slice %34 {offsets = [0, 0], sizes = [2, 192], strides = [1, 1]} : vector<2x256xf32> to vector<2x192xf32>
    %36 = arith.negf %35 : vector<2x192xf32>
    %37 = math.exp %36 : vector<2x192xf32>
    %cst_13 = arith.constant 1.000000e+00 : f32
    %38 = vector.broadcast %cst_13 : f32 to vector<2x192xf32>
    %39 = arith.addf %38, %37 : vector<2x192xf32>
    %40 = arith.divf %38, %39 : vector<2x192xf32>
    %41 = vector.extract_strided_slice %34 {offsets = [0, 192], sizes = [2, 64], strides = [1, 1]} : vector<2x256xf32> to vector<2x64xf32>
    %42 = math.tanh %41 : vector<2x64xf32>
    %43 = vector.extract_strided_slice %40 {offsets = [0, 0], sizes = [2, 64], strides = [1, 1]} : vector<2x192xf32> to vector<2x64xf32>
    %44 = vector.extract_strided_slice %40 {offsets = [0, 64], sizes = [2, 64], strides = [1, 1]} : vector<2x192xf32> to vector<2x64xf32>
    %45 = vector.extract_strided_slice %40 {offsets = [0, 128], sizes = [2, 64], strides = [1, 1]} : vector<2x192xf32> to vector<2x64xf32>
    %46 = arith.mulf %44, %28 : vector<2x64xf32>
    %47 = arith.mulf %43, %42 : vector<2x64xf32>
    %48 = arith.addf %46, %47 : vector<2x64xf32>
    %49 = math.tanh %48 : vector<2x64xf32>
    %50 = arith.mulf %45, %49 : vector<2x64xf32>
    %51 = vector.extract_strided_slice %7 {offsets = [0, 2, 0], sizes = [2, 1, 256], strides = [1, 1, 1]} : vector<2x8x256xf32> to vector<2x1x256xf32>
    %52 = vector.shape_cast %51 : vector<2x1x256xf32> to vector<2x256xf32>
    %cst_14 = arith.constant dense<0.000000e+00> : vector<2x256xf32>
    %53 = tpu.matmul %50, %8, %cst_14 {dimension_numbers = #tpu.dot_dimension_numbers<[1], [0], [0], [1], [0, 0, 1, 1], [], []>} : vector<2x64xf32>, vector<64x256xf32>, vector<2x256xf32> -> vector<2x256xf32>
    %54 = arith.addf %52, %53 : vector<2x256xf32>
    %55 = vector.extract_strided_slice %54 {offsets = [0, 0], sizes = [2, 192], strides = [1, 1]} : vector<2x256xf32> to vector<2x192xf32>
    %56 = arith.negf %55 : vector<2x192xf32>
    %57 = math.exp %56 : vector<2x192xf32>
    %cst_15 = arith.constant 1.000000e+00 : f32
    %58 = vector.broadcast %cst_15 : f32 to vector<2x192xf32>
    %59 = arith.addf %58, %57 : vector<2x192xf32>
    %60 = arith.divf %58, %59 : vector<2x192xf32>
    %61 = vector.extract_strided_slice %54 {offsets = [0, 192], sizes = [2, 64], strides = [1, 1]} : vector<2x256xf32> to vector<2x64xf32>
    %62 = math.tanh %61 : vector<2x64xf32>
    %63 = vector.extract_strided_slice %60 {offsets = [0, 0], sizes = [2, 64], strides = [1, 1]} : vector<2x192xf32> to vector<2x64xf32>
    %64 = vector.extract_strided_slice %60 {offsets = [0, 64], sizes = [2, 64], strides = [1, 1]} : vector<2x192xf32> to vector<2x64xf32>
    %65 = vector.extract_strided_slice %60 {offsets = [0, 128], sizes = [2, 64], strides = [1, 1]} : vector<2x192xf32> to vector<2x64xf32>
    %66 = arith.mulf %64, %48 : vector<2x64xf32>
    %67 = arith.mulf %63, %62 : vector<2x64xf32>
    %68 = arith.addf %66, %67 : vector<2x64xf32>
    %69 = math.tanh %68 : vector<2x64xf32>
    %70 = arith.mulf %65, %69 : vector<2x64xf32>
    %71 = vector.extract_strided_slice %7 {offsets = [0, 3, 0], sizes = [2, 1, 256], strides = [1, 1, 1]} : vector<2x8x256xf32> to vector<2x1x256xf32>
    %72 = vector.shape_cast %71 : vector<2x1x256xf32> to vector<2x256xf32>
    %cst_16 = arith.constant dense<0.000000e+00> : vector<2x256xf32>
    %73 = tpu.matmul %70, %8, %cst_16 {dimension_numbers = #tpu.dot_dimension_numbers<[1], [0], [0], [1], [0, 0, 1, 1], [], []>} : vector<2x64xf32>, vector<64x256xf32>, vector<2x256xf32> -> vector<2x256xf32>
    %74 = arith.addf %72, %73 : vector<2x256xf32>
    %75 = vector.extract_strided_slice %74 {offsets = [0, 0], sizes = [2, 192], strides = [1, 1]} : vector<2x256xf32> to vector<2x192xf32>
    %76 = arith.negf %75 : vector<2x192xf32>
    %77 = math.exp %76 : vector<2x192xf32>
    %cst_17 = arith.constant 1.000000e+00 : f32
    %78 = vector.broadcast %cst_17 : f32 to vector<2x192xf32>
    %79 = arith.addf %78, %77 : vector<2x192xf32>
    %80 = arith.divf %78, %79 : vector<2x192xf32>
    %81 = vector.extract_strided_slice %74 {offsets = [0, 192], sizes = [2, 64], strides = [1, 1]} : vector<2x256xf32> to vector<2x64xf32>
    %82 = math.tanh %81 : vector<2x64xf32>
    %83 = vector.extract_strided_slice %80 {offsets = [0, 0], sizes = [2, 64], strides = [1, 1]} : vector<2x192xf32> to vector<2x64xf32>
    %84 = vector.extract_strided_slice %80 {offsets = [0, 64], sizes = [2, 64], strides = [1, 1]} : vector<2x192xf32> to vector<2x64xf32>
    %85 = vector.extract_strided_slice %80 {offsets = [0, 128], sizes = [2, 64], strides = [1, 1]} : vector<2x192xf32> to vector<2x64xf32>
    %86 = arith.mulf %84, %68 : vector<2x64xf32>
    %87 = arith.mulf %83, %82 : vector<2x64xf32>
    %88 = arith.addf %86, %87 : vector<2x64xf32>
    %89 = math.tanh %88 : vector<2x64xf32>
    %90 = arith.mulf %85, %89 : vector<2x64xf32>
    %91 = vector.extract_strided_slice %7 {offsets = [0, 4, 0], sizes = [2, 1, 256], strides = [1, 1, 1]} : vector<2x8x256xf32> to vector<2x1x256xf32>
    %92 = vector.shape_cast %91 : vector<2x1x256xf32> to vector<2x256xf32>
    %cst_18 = arith.constant dense<0.000000e+00> : vector<2x256xf32>
    %93 = tpu.matmul %90, %8, %cst_18 {dimension_numbers = #tpu.dot_dimension_numbers<[1], [0], [0], [1], [0, 0, 1, 1], [], []>} : vector<2x64xf32>, vector<64x256xf32>, vector<2x256xf32> -> vector<2x256xf32>
    %94 = arith.addf %92, %93 : vector<2x256xf32>
    %95 = vector.extract_strided_slice %94 {offsets = [0, 0], sizes = [2, 192], strides = [1, 1]} : vector<2x256xf32> to vector<2x192xf32>
    %96 = arith.negf %95 : vector<2x192xf32>
    %97 = math.exp %96 : vector<2x192xf32>
    %cst_19 = arith.constant 1.000000e+00 : f32
    %98 = vector.broadcast %cst_19 : f32 to vector<2x192xf32>
    %99 = arith.addf %98, %97 : vector<2x192xf32>
    %100 = arith.divf %98, %99 : vector<2x192xf32>
    %101 = vector.extract_strided_slice %94 {offsets = [0, 192], sizes = [2, 64], strides = [1, 1]} : vector<2x256xf32> to vector<2x64xf32>
    %102 = math.tanh %101 : vector<2x64xf32>
    %103 = vector.extract_strided_slice %100 {offsets = [0, 0], sizes = [2, 64], strides = [1, 1]} : vector<2x192xf32> to vector<2x64xf32>
    %104 = vector.extract_strided_slice %100 {offsets = [0, 64], sizes = [2, 64], strides = [1, 1]} : vector<2x192xf32> to vector<2x64xf32>
    %105 = vector.extract_strided_slice %100 {offsets = [0, 128], sizes = [2, 64], strides = [1, 1]} : vector<2x192xf32> to vector<2x64xf32>
    %106 = arith.mulf %104, %88 : vector<2x64xf32>
    %107 = arith.mulf %103, %102 : vector<2x64xf32>
    %108 = arith.addf %106, %107 : vector<2x64xf32>
    %109 = math.tanh %108 : vector<2x64xf32>
    %110 = arith.mulf %105, %109 : vector<2x64xf32>
    %111 = vector.extract_strided_slice %7 {offsets = [0, 5, 0], sizes = [2, 1, 256], strides = [1, 1, 1]} : vector<2x8x256xf32> to vector<2x1x256xf32>
    %112 = vector.shape_cast %111 : vector<2x1x256xf32> to vector<2x256xf32>
    %cst_20 = arith.constant dense<0.000000e+00> : vector<2x256xf32>
    %113 = tpu.matmul %110, %8, %cst_20 {dimension_numbers = #tpu.dot_dimension_numbers<[1], [0], [0], [1], [0, 0, 1, 1], [], []>} : vector<2x64xf32>, vector<64x256xf32>, vector<2x256xf32> -> vector<2x256xf32>
    %114 = arith.addf %112, %113 : vector<2x256xf32>
    %115 = vector.extract_strided_slice %114 {offsets = [0, 0], sizes = [2, 192], strides = [1, 1]} : vector<2x256xf32> to vector<2x192xf32>
    %116 = arith.negf %115 : vector<2x192xf32>
    %117 = math.exp %116 : vector<2x192xf32>
    %cst_21 = arith.constant 1.000000e+00 : f32
    %118 = vector.broadcast %cst_21 : f32 to vector<2x192xf32>
    %119 = arith.addf %118, %117 : vector<2x192xf32>
    %120 = arith.divf %118, %119 : vector<2x192xf32>
    %121 = vector.extract_strided_slice %114 {offsets = [0, 192], sizes = [2, 64], strides = [1, 1]} : vector<2x256xf32> to vector<2x64xf32>
    %122 = math.tanh %121 : vector<2x64xf32>
    %123 = vector.extract_strided_slice %120 {offsets = [0, 0], sizes = [2, 64], strides = [1, 1]} : vector<2x192xf32> to vector<2x64xf32>
    %124 = vector.extract_strided_slice %120 {offsets = [0, 64], sizes = [2, 64], strides = [1, 1]} : vector<2x192xf32> to vector<2x64xf32>
    %125 = vector.extract_strided_slice %120 {offsets = [0, 128], sizes = [2, 64], strides = [1, 1]} : vector<2x192xf32> to vector<2x64xf32>
    %126 = arith.mulf %124, %108 : vector<2x64xf32>
    %127 = arith.mulf %123, %122 : vector<2x64xf32>
    %128 = arith.addf %126, %127 : vector<2x64xf32>
    %129 = math.tanh %128 : vector<2x64xf32>
    %130 = arith.mulf %125, %129 : vector<2x64xf32>
    %131 = vector.extract_strided_slice %7 {offsets = [0, 6, 0], sizes = [2, 1, 256], strides = [1, 1, 1]} : vector<2x8x256xf32> to vector<2x1x256xf32>
    %132 = vector.shape_cast %131 : vector<2x1x256xf32> to vector<2x256xf32>
    %cst_22 = arith.constant dense<0.000000e+00> : vector<2x256xf32>
    %133 = tpu.matmul %130, %8, %cst_22 {dimension_numbers = #tpu.dot_dimension_numbers<[1], [0], [0], [1], [0, 0, 1, 1], [], []>} : vector<2x64xf32>, vector<64x256xf32>, vector<2x256xf32> -> vector<2x256xf32>
    %134 = arith.addf %132, %133 : vector<2x256xf32>
    %135 = vector.extract_strided_slice %134 {offsets = [0, 0], sizes = [2, 192], strides = [1, 1]} : vector<2x256xf32> to vector<2x192xf32>
    %136 = arith.negf %135 : vector<2x192xf32>
    %137 = math.exp %136 : vector<2x192xf32>
    %cst_23 = arith.constant 1.000000e+00 : f32
    %138 = vector.broadcast %cst_23 : f32 to vector<2x192xf32>
    %139 = arith.addf %138, %137 : vector<2x192xf32>
    %140 = arith.divf %138, %139 : vector<2x192xf32>
    %141 = vector.extract_strided_slice %134 {offsets = [0, 192], sizes = [2, 64], strides = [1, 1]} : vector<2x256xf32> to vector<2x64xf32>
    %142 = math.tanh %141 : vector<2x64xf32>
    %143 = vector.extract_strided_slice %140 {offsets = [0, 0], sizes = [2, 64], strides = [1, 1]} : vector<2x192xf32> to vector<2x64xf32>
    %144 = vector.extract_strided_slice %140 {offsets = [0, 64], sizes = [2, 64], strides = [1, 1]} : vector<2x192xf32> to vector<2x64xf32>
    %145 = vector.extract_strided_slice %140 {offsets = [0, 128], sizes = [2, 64], strides = [1, 1]} : vector<2x192xf32> to vector<2x64xf32>
    %146 = arith.mulf %144, %128 : vector<2x64xf32>
    %147 = arith.mulf %143, %142 : vector<2x64xf32>
    %148 = arith.addf %146, %147 : vector<2x64xf32>
    %149 = math.tanh %148 : vector<2x64xf32>
    %150 = arith.mulf %145, %149 : vector<2x64xf32>
    %151 = vector.extract_strided_slice %7 {offsets = [0, 7, 0], sizes = [2, 1, 256], strides = [1, 1, 1]} : vector<2x8x256xf32> to vector<2x1x256xf32>
    %152 = vector.shape_cast %151 : vector<2x1x256xf32> to vector<2x256xf32>
    %cst_24 = arith.constant dense<0.000000e+00> : vector<2x256xf32>
    %153 = tpu.matmul %150, %8, %cst_24 {dimension_numbers = #tpu.dot_dimension_numbers<[1], [0], [0], [1], [0, 0, 1, 1], [], []>} : vector<2x64xf32>, vector<64x256xf32>, vector<2x256xf32> -> vector<2x256xf32>
    %154 = arith.addf %152, %153 : vector<2x256xf32>
    %155 = vector.extract_strided_slice %154 {offsets = [0, 0], sizes = [2, 192], strides = [1, 1]} : vector<2x256xf32> to vector<2x192xf32>
    %156 = arith.negf %155 : vector<2x192xf32>
    %157 = math.exp %156 : vector<2x192xf32>
    %cst_25 = arith.constant 1.000000e+00 : f32
    %158 = vector.broadcast %cst_25 : f32 to vector<2x192xf32>
    %159 = arith.addf %158, %157 : vector<2x192xf32>
    %160 = arith.divf %158, %159 : vector<2x192xf32>
    %161 = vector.extract_strided_slice %154 {offsets = [0, 192], sizes = [2, 64], strides = [1, 1]} : vector<2x256xf32> to vector<2x64xf32>
    %162 = math.tanh %161 : vector<2x64xf32>
    %163 = vector.extract_strided_slice %160 {offsets = [0, 0], sizes = [2, 64], strides = [1, 1]} : vector<2x192xf32> to vector<2x64xf32>
    %164 = vector.extract_strided_slice %160 {offsets = [0, 64], sizes = [2, 64], strides = [1, 1]} : vector<2x192xf32> to vector<2x64xf32>
    %165 = vector.extract_strided_slice %160 {offsets = [0, 128], sizes = [2, 64], strides = [1, 1]} : vector<2x192xf32> to vector<2x64xf32>
    %166 = arith.mulf %164, %148 : vector<2x64xf32>
    %167 = arith.mulf %163, %162 : vector<2x64xf32>
    %168 = arith.addf %166, %167 : vector<2x64xf32>
    %169 = math.tanh %168 : vector<2x64xf32>
    %170 = arith.mulf %165, %169 : vector<2x64xf32>
    %171 = tpu.concatenate %30, %170 in 1 : vector<2x64xf32>, vector<2x64xf32> -> vector<2x128xf32>
    %172 = tpu.concatenate %50, %150 in 1 : vector<2x64xf32>, vector<2x64xf32> -> vector<2x128xf32>
    %173 = tpu.concatenate %70, %130 in 1 : vector<2x64xf32>, vector<2x64xf32> -> vector<2x128xf32>
    %174 = tpu.concatenate %90, %110 in 1 : vector<2x64xf32>, vector<2x64xf32> -> vector<2x128xf32>
    %175 = tpu.concatenate %110, %90 in 1 : vector<2x64xf32>, vector<2x64xf32> -> vector<2x128xf32>
    %176 = tpu.concatenate %130, %70 in 1 : vector<2x64xf32>, vector<2x64xf32> -> vector<2x128xf32>
    %177 = tpu.concatenate %150, %50 in 1 : vector<2x64xf32>, vector<2x64xf32> -> vector<2x128xf32>
    %178 = tpu.concatenate %170, %30 in 1 : vector<2x64xf32>, vector<2x64xf32> -> vector<2x128xf32>
    %179 = vector.shape_cast %171 : vector<2x128xf32> to vector<2x1x128xf32>
    %180 = vector.shape_cast %172 : vector<2x128xf32> to vector<2x1x128xf32>
    %181 = vector.shape_cast %173 : vector<2x128xf32> to vector<2x1x128xf32>
    %182 = vector.shape_cast %174 : vector<2x128xf32> to vector<2x1x128xf32>
    %183 = vector.shape_cast %175 : vector<2x128xf32> to vector<2x1x128xf32>
    %184 = vector.shape_cast %176 : vector<2x128xf32> to vector<2x1x128xf32>
    %185 = vector.shape_cast %177 : vector<2x128xf32> to vector<2x1x128xf32>
    %186 = vector.shape_cast %178 : vector<2x128xf32> to vector<2x1x128xf32>
    %187 = tpu.concatenate %179, %180, %181, %182, %183, %184, %185, %186 in 1 : vector<2x1x128xf32>, vector<2x1x128xf32>, vector<2x1x128xf32>, vector<2x1x128xf32>, vector<2x1x128xf32>, vector<2x1x128xf32>, vector<2x1x128xf32>, vector<2x1x128xf32> -> vector<2x8x128xf32>
    %188 = vector.shape_cast %187 : vector<2x8x128xf32> to vector<16x128xf32>
    %c0_26 = arith.constant 0 : index
    %c0_27 = arith.constant 0 : index
    %189 = vector.load %arg5[%c0_26, %c0_27] : memref<128x256xf32, #tpu.memory_space<vmem>>, vector<128x256xf32>
    %cst_28 = arith.constant dense<0.000000e+00> : vector<16x256xf32>
    %190 = tpu.matmul %188, %189, %cst_28 {dimension_numbers = #tpu.dot_dimension_numbers<[1], [0], [0], [1], [0, 0, 1, 1], [], []>} : vector<16x128xf32>, vector<128x256xf32>, vector<16x256xf32> -> vector<16x256xf32>
    %c0_29 = arith.constant 0 : index
    %c0_30 = arith.constant 0 : index
    %191 = vector.load %arg6[%c0_29, %c0_30] : memref<1x256xf32, #tpu.memory_space<vmem>>, vector<1x256xf32>
    %192 = vector.broadcast %191 : vector<1x256xf32> to vector<16x256xf32>
    %193 = arith.addf %190, %192 : vector<16x256xf32>
    %194 = vector.shape_cast %193 : vector<16x256xf32> to vector<2x8x256xf32>
    %c0_31 = arith.constant 0 : index
    %c0_32 = arith.constant 0 : index
    %195 = vector.load %arg7[%c0_31, %c0_32] : memref<64x256xf32, #tpu.memory_space<vmem>>, vector<64x256xf32>
    %cst_33 = arith.constant 0.000000e+00 : f32
    %196 = vector.broadcast %cst_33 : f32 to vector<2x64xf32>
    %cst_34 = arith.constant 0.000000e+00 : f32
    %197 = vector.broadcast %cst_34 : f32 to vector<2x64xf32>
    %198 = vector.extract_strided_slice %194 {offsets = [0, 0, 0], sizes = [2, 1, 256], strides = [1, 1, 1]} : vector<2x8x256xf32> to vector<2x1x256xf32>
    %199 = vector.shape_cast %198 : vector<2x1x256xf32> to vector<2x256xf32>
    %cst_35 = arith.constant dense<0.000000e+00> : vector<2x256xf32>
    %200 = tpu.matmul %196, %195, %cst_35 {dimension_numbers = #tpu.dot_dimension_numbers<[1], [0], [0], [1], [0, 0, 1, 1], [], []>} : vector<2x64xf32>, vector<64x256xf32>, vector<2x256xf32> -> vector<2x256xf32>
    %201 = arith.addf %199, %200 : vector<2x256xf32>
    %202 = vector.extract_strided_slice %201 {offsets = [0, 0], sizes = [2, 192], strides = [1, 1]} : vector<2x256xf32> to vector<2x192xf32>
    %203 = arith.negf %202 : vector<2x192xf32>
    %204 = math.exp %203 : vector<2x192xf32>
    %cst_36 = arith.constant 1.000000e+00 : f32
    %205 = vector.broadcast %cst_36 : f32 to vector<2x192xf32>
    %206 = arith.addf %205, %204 : vector<2x192xf32>
    %207 = arith.divf %205, %206 : vector<2x192xf32>
    %208 = vector.extract_strided_slice %201 {offsets = [0, 192], sizes = [2, 64], strides = [1, 1]} : vector<2x256xf32> to vector<2x64xf32>
    %209 = math.tanh %208 : vector<2x64xf32>
    %210 = vector.extract_strided_slice %207 {offsets = [0, 0], sizes = [2, 64], strides = [1, 1]} : vector<2x192xf32> to vector<2x64xf32>
    %211 = vector.extract_strided_slice %207 {offsets = [0, 64], sizes = [2, 64], strides = [1, 1]} : vector<2x192xf32> to vector<2x64xf32>
    %212 = vector.extract_strided_slice %207 {offsets = [0, 128], sizes = [2, 64], strides = [1, 1]} : vector<2x192xf32> to vector<2x64xf32>
    %213 = arith.mulf %211, %197 : vector<2x64xf32>
    %214 = arith.mulf %210, %209 : vector<2x64xf32>
    %215 = arith.addf %213, %214 : vector<2x64xf32>
    %216 = math.tanh %215 : vector<2x64xf32>
    %217 = arith.mulf %212, %216 : vector<2x64xf32>
    %218 = vector.extract_strided_slice %194 {offsets = [0, 1, 0], sizes = [2, 1, 256], strides = [1, 1, 1]} : vector<2x8x256xf32> to vector<2x1x256xf32>
    %219 = vector.shape_cast %218 : vector<2x1x256xf32> to vector<2x256xf32>
    %cst_37 = arith.constant dense<0.000000e+00> : vector<2x256xf32>
    %220 = tpu.matmul %217, %195, %cst_37 {dimension_numbers = #tpu.dot_dimension_numbers<[1], [0], [0], [1], [0, 0, 1, 1], [], []>} : vector<2x64xf32>, vector<64x256xf32>, vector<2x256xf32> -> vector<2x256xf32>
    %221 = arith.addf %219, %220 : vector<2x256xf32>
    %222 = vector.extract_strided_slice %221 {offsets = [0, 0], sizes = [2, 192], strides = [1, 1]} : vector<2x256xf32> to vector<2x192xf32>
    %223 = arith.negf %222 : vector<2x192xf32>
    %224 = math.exp %223 : vector<2x192xf32>
    %cst_38 = arith.constant 1.000000e+00 : f32
    %225 = vector.broadcast %cst_38 : f32 to vector<2x192xf32>
    %226 = arith.addf %225, %224 : vector<2x192xf32>
    %227 = arith.divf %225, %226 : vector<2x192xf32>
    %228 = vector.extract_strided_slice %221 {offsets = [0, 192], sizes = [2, 64], strides = [1, 1]} : vector<2x256xf32> to vector<2x64xf32>
    %229 = math.tanh %228 : vector<2x64xf32>
    %230 = vector.extract_strided_slice %227 {offsets = [0, 0], sizes = [2, 64], strides = [1, 1]} : vector<2x192xf32> to vector<2x64xf32>
    %231 = vector.extract_strided_slice %227 {offsets = [0, 64], sizes = [2, 64], strides = [1, 1]} : vector<2x192xf32> to vector<2x64xf32>
    %232 = vector.extract_strided_slice %227 {offsets = [0, 128], sizes = [2, 64], strides = [1, 1]} : vector<2x192xf32> to vector<2x64xf32>
    %233 = arith.mulf %231, %215 : vector<2x64xf32>
    %234 = arith.mulf %230, %229 : vector<2x64xf32>
    %235 = arith.addf %233, %234 : vector<2x64xf32>
    %236 = math.tanh %235 : vector<2x64xf32>
    %237 = arith.mulf %232, %236 : vector<2x64xf32>
    %238 = vector.extract_strided_slice %194 {offsets = [0, 2, 0], sizes = [2, 1, 256], strides = [1, 1, 1]} : vector<2x8x256xf32> to vector<2x1x256xf32>
    %239 = vector.shape_cast %238 : vector<2x1x256xf32> to vector<2x256xf32>
    %cst_39 = arith.constant dense<0.000000e+00> : vector<2x256xf32>
    %240 = tpu.matmul %237, %195, %cst_39 {dimension_numbers = #tpu.dot_dimension_numbers<[1], [0], [0], [1], [0, 0, 1, 1], [], []>} : vector<2x64xf32>, vector<64x256xf32>, vector<2x256xf32> -> vector<2x256xf32>
    %241 = arith.addf %239, %240 : vector<2x256xf32>
    %242 = vector.extract_strided_slice %241 {offsets = [0, 0], sizes = [2, 192], strides = [1, 1]} : vector<2x256xf32> to vector<2x192xf32>
    %243 = arith.negf %242 : vector<2x192xf32>
    %244 = math.exp %243 : vector<2x192xf32>
    %cst_40 = arith.constant 1.000000e+00 : f32
    %245 = vector.broadcast %cst_40 : f32 to vector<2x192xf32>
    %246 = arith.addf %245, %244 : vector<2x192xf32>
    %247 = arith.divf %245, %246 : vector<2x192xf32>
    %248 = vector.extract_strided_slice %241 {offsets = [0, 192], sizes = [2, 64], strides = [1, 1]} : vector<2x256xf32> to vector<2x64xf32>
    %249 = math.tanh %248 : vector<2x64xf32>
    %250 = vector.extract_strided_slice %247 {offsets = [0, 0], sizes = [2, 64], strides = [1, 1]} : vector<2x192xf32> to vector<2x64xf32>
    %251 = vector.extract_strided_slice %247 {offsets = [0, 64], sizes = [2, 64], strides = [1, 1]} : vector<2x192xf32> to vector<2x64xf32>
    %252 = vector.extract_strided_slice %247 {offsets = [0, 128], sizes = [2, 64], strides = [1, 1]} : vector<2x192xf32> to vector<2x64xf32>
    %253 = arith.mulf %251, %235 : vector<2x64xf32>
    %254 = arith.mulf %250, %249 : vector<2x64xf32>
    %255 = arith.addf %253, %254 : vector<2x64xf32>
    %256 = math.tanh %255 : vector<2x64xf32>
    %257 = arith.mulf %252, %256 : vector<2x64xf32>
    %258 = vector.extract_strided_slice %194 {offsets = [0, 3, 0], sizes = [2, 1, 256], strides = [1, 1, 1]} : vector<2x8x256xf32> to vector<2x1x256xf32>
    %259 = vector.shape_cast %258 : vector<2x1x256xf32> to vector<2x256xf32>
    %cst_41 = arith.constant dense<0.000000e+00> : vector<2x256xf32>
    %260 = tpu.matmul %257, %195, %cst_41 {dimension_numbers = #tpu.dot_dimension_numbers<[1], [0], [0], [1], [0, 0, 1, 1], [], []>} : vector<2x64xf32>, vector<64x256xf32>, vector<2x256xf32> -> vector<2x256xf32>
    %261 = arith.addf %259, %260 : vector<2x256xf32>
    %262 = vector.extract_strided_slice %261 {offsets = [0, 0], sizes = [2, 192], strides = [1, 1]} : vector<2x256xf32> to vector<2x192xf32>
    %263 = arith.negf %262 : vector<2x192xf32>
    %264 = math.exp %263 : vector<2x192xf32>
    %cst_42 = arith.constant 1.000000e+00 : f32
    %265 = vector.broadcast %cst_42 : f32 to vector<2x192xf32>
    %266 = arith.addf %265, %264 : vector<2x192xf32>
    %267 = arith.divf %265, %266 : vector<2x192xf32>
    %268 = vector.extract_strided_slice %261 {offsets = [0, 192], sizes = [2, 64], strides = [1, 1]} : vector<2x256xf32> to vector<2x64xf32>
    %269 = math.tanh %268 : vector<2x64xf32>
    %270 = vector.extract_strided_slice %267 {offsets = [0, 0], sizes = [2, 64], strides = [1, 1]} : vector<2x192xf32> to vector<2x64xf32>
    %271 = vector.extract_strided_slice %267 {offsets = [0, 64], sizes = [2, 64], strides = [1, 1]} : vector<2x192xf32> to vector<2x64xf32>
    %272 = vector.extract_strided_slice %267 {offsets = [0, 128], sizes = [2, 64], strides = [1, 1]} : vector<2x192xf32> to vector<2x64xf32>
    %273 = arith.mulf %271, %255 : vector<2x64xf32>
    %274 = arith.mulf %270, %269 : vector<2x64xf32>
    %275 = arith.addf %273, %274 : vector<2x64xf32>
    %276 = math.tanh %275 : vector<2x64xf32>
    %277 = arith.mulf %272, %276 : vector<2x64xf32>
    %278 = vector.extract_strided_slice %194 {offsets = [0, 4, 0], sizes = [2, 1, 256], strides = [1, 1, 1]} : vector<2x8x256xf32> to vector<2x1x256xf32>
    %279 = vector.shape_cast %278 : vector<2x1x256xf32> to vector<2x256xf32>
    %cst_43 = arith.constant dense<0.000000e+00> : vector<2x256xf32>
    %280 = tpu.matmul %277, %195, %cst_43 {dimension_numbers = #tpu.dot_dimension_numbers<[1], [0], [0], [1], [0, 0, 1, 1], [], []>} : vector<2x64xf32>, vector<64x256xf32>, vector<2x256xf32> -> vector<2x256xf32>
    %281 = arith.addf %279, %280 : vector<2x256xf32>
    %282 = vector.extract_strided_slice %281 {offsets = [0, 0], sizes = [2, 192], strides = [1, 1]} : vector<2x256xf32> to vector<2x192xf32>
    %283 = arith.negf %282 : vector<2x192xf32>
    %284 = math.exp %283 : vector<2x192xf32>
    %cst_44 = arith.constant 1.000000e+00 : f32
    %285 = vector.broadcast %cst_44 : f32 to vector<2x192xf32>
    %286 = arith.addf %285, %284 : vector<2x192xf32>
    %287 = arith.divf %285, %286 : vector<2x192xf32>
    %288 = vector.extract_strided_slice %281 {offsets = [0, 192], sizes = [2, 64], strides = [1, 1]} : vector<2x256xf32> to vector<2x64xf32>
    %289 = math.tanh %288 : vector<2x64xf32>
    %290 = vector.extract_strided_slice %287 {offsets = [0, 0], sizes = [2, 64], strides = [1, 1]} : vector<2x192xf32> to vector<2x64xf32>
    %291 = vector.extract_strided_slice %287 {offsets = [0, 64], sizes = [2, 64], strides = [1, 1]} : vector<2x192xf32> to vector<2x64xf32>
    %292 = vector.extract_strided_slice %287 {offsets = [0, 128], sizes = [2, 64], strides = [1, 1]} : vector<2x192xf32> to vector<2x64xf32>
    %293 = arith.mulf %291, %275 : vector<2x64xf32>
    %294 = arith.mulf %290, %289 : vector<2x64xf32>
    %295 = arith.addf %293, %294 : vector<2x64xf32>
    %296 = math.tanh %295 : vector<2x64xf32>
    %297 = arith.mulf %292, %296 : vector<2x64xf32>
    %298 = vector.extract_strided_slice %194 {offsets = [0, 5, 0], sizes = [2, 1, 256], strides = [1, 1, 1]} : vector<2x8x256xf32> to vector<2x1x256xf32>
    %299 = vector.shape_cast %298 : vector<2x1x256xf32> to vector<2x256xf32>
    %cst_45 = arith.constant dense<0.000000e+00> : vector<2x256xf32>
    %300 = tpu.matmul %297, %195, %cst_45 {dimension_numbers = #tpu.dot_dimension_numbers<[1], [0], [0], [1], [0, 0, 1, 1], [], []>} : vector<2x64xf32>, vector<64x256xf32>, vector<2x256xf32> -> vector<2x256xf32>
    %301 = arith.addf %299, %300 : vector<2x256xf32>
    %302 = vector.extract_strided_slice %301 {offsets = [0, 0], sizes = [2, 192], strides = [1, 1]} : vector<2x256xf32> to vector<2x192xf32>
    %303 = arith.negf %302 : vector<2x192xf32>
    %304 = math.exp %303 : vector<2x192xf32>
    %cst_46 = arith.constant 1.000000e+00 : f32
    %305 = vector.broadcast %cst_46 : f32 to vector<2x192xf32>
    %306 = arith.addf %305, %304 : vector<2x192xf32>
    %307 = arith.divf %305, %306 : vector<2x192xf32>
    %308 = vector.extract_strided_slice %301 {offsets = [0, 192], sizes = [2, 64], strides = [1, 1]} : vector<2x256xf32> to vector<2x64xf32>
    %309 = math.tanh %308 : vector<2x64xf32>
    %310 = vector.extract_strided_slice %307 {offsets = [0, 0], sizes = [2, 64], strides = [1, 1]} : vector<2x192xf32> to vector<2x64xf32>
    %311 = vector.extract_strided_slice %307 {offsets = [0, 64], sizes = [2, 64], strides = [1, 1]} : vector<2x192xf32> to vector<2x64xf32>
    %312 = vector.extract_strided_slice %307 {offsets = [0, 128], sizes = [2, 64], strides = [1, 1]} : vector<2x192xf32> to vector<2x64xf32>
    %313 = arith.mulf %311, %295 : vector<2x64xf32>
    %314 = arith.mulf %310, %309 : vector<2x64xf32>
    %315 = arith.addf %313, %314 : vector<2x64xf32>
    %316 = math.tanh %315 : vector<2x64xf32>
    %317 = arith.mulf %312, %316 : vector<2x64xf32>
    %318 = vector.extract_strided_slice %194 {offsets = [0, 6, 0], sizes = [2, 1, 256], strides = [1, 1, 1]} : vector<2x8x256xf32> to vector<2x1x256xf32>
    %319 = vector.shape_cast %318 : vector<2x1x256xf32> to vector<2x256xf32>
    %cst_47 = arith.constant dense<0.000000e+00> : vector<2x256xf32>
    %320 = tpu.matmul %317, %195, %cst_47 {dimension_numbers = #tpu.dot_dimension_numbers<[1], [0], [0], [1], [0, 0, 1, 1], [], []>} : vector<2x64xf32>, vector<64x256xf32>, vector<2x256xf32> -> vector<2x256xf32>
    %321 = arith.addf %319, %320 : vector<2x256xf32>
    %322 = vector.extract_strided_slice %321 {offsets = [0, 0], sizes = [2, 192], strides = [1, 1]} : vector<2x256xf32> to vector<2x192xf32>
    %323 = arith.negf %322 : vector<2x192xf32>
    %324 = math.exp %323 : vector<2x192xf32>
    %cst_48 = arith.constant 1.000000e+00 : f32
    %325 = vector.broadcast %cst_48 : f32 to vector<2x192xf32>
    %326 = arith.addf %325, %324 : vector<2x192xf32>
    %327 = arith.divf %325, %326 : vector<2x192xf32>
    %328 = vector.extract_strided_slice %321 {offsets = [0, 192], sizes = [2, 64], strides = [1, 1]} : vector<2x256xf32> to vector<2x64xf32>
    %329 = math.tanh %328 : vector<2x64xf32>
    %330 = vector.extract_strided_slice %327 {offsets = [0, 0], sizes = [2, 64], strides = [1, 1]} : vector<2x192xf32> to vector<2x64xf32>
    %331 = vector.extract_strided_slice %327 {offsets = [0, 64], sizes = [2, 64], strides = [1, 1]} : vector<2x192xf32> to vector<2x64xf32>
    %332 = vector.extract_strided_slice %327 {offsets = [0, 128], sizes = [2, 64], strides = [1, 1]} : vector<2x192xf32> to vector<2x64xf32>
    %333 = arith.mulf %331, %315 : vector<2x64xf32>
    %334 = arith.mulf %330, %329 : vector<2x64xf32>
    %335 = arith.addf %333, %334 : vector<2x64xf32>
    %336 = math.tanh %335 : vector<2x64xf32>
    %337 = arith.mulf %332, %336 : vector<2x64xf32>
    %338 = vector.extract_strided_slice %194 {offsets = [0, 7, 0], sizes = [2, 1, 256], strides = [1, 1, 1]} : vector<2x8x256xf32> to vector<2x1x256xf32>
    %339 = vector.shape_cast %338 : vector<2x1x256xf32> to vector<2x256xf32>
    %cst_49 = arith.constant dense<0.000000e+00> : vector<2x256xf32>
    %340 = tpu.matmul %337, %195, %cst_49 {dimension_numbers = #tpu.dot_dimension_numbers<[1], [0], [0], [1], [0, 0, 1, 1], [], []>} : vector<2x64xf32>, vector<64x256xf32>, vector<2x256xf32> -> vector<2x256xf32>
    %341 = arith.addf %339, %340 : vector<2x256xf32>
    %342 = vector.extract_strided_slice %341 {offsets = [0, 0], sizes = [2, 192], strides = [1, 1]} : vector<2x256xf32> to vector<2x192xf32>
    %343 = arith.negf %342 : vector<2x192xf32>
    %344 = math.exp %343 : vector<2x192xf32>
    %cst_50 = arith.constant 1.000000e+00 : f32
    %345 = vector.broadcast %cst_50 : f32 to vector<2x192xf32>
    %346 = arith.addf %345, %344 : vector<2x192xf32>
    %347 = arith.divf %345, %346 : vector<2x192xf32>
    %348 = vector.extract_strided_slice %341 {offsets = [0, 192], sizes = [2, 64], strides = [1, 1]} : vector<2x256xf32> to vector<2x64xf32>
    %349 = math.tanh %348 : vector<2x64xf32>
    %350 = vector.extract_strided_slice %347 {offsets = [0, 0], sizes = [2, 64], strides = [1, 1]} : vector<2x192xf32> to vector<2x64xf32>
    %351 = vector.extract_strided_slice %347 {offsets = [0, 64], sizes = [2, 64], strides = [1, 1]} : vector<2x192xf32> to vector<2x64xf32>
    %352 = vector.extract_strided_slice %347 {offsets = [0, 128], sizes = [2, 64], strides = [1, 1]} : vector<2x192xf32> to vector<2x64xf32>
    %353 = arith.mulf %351, %335 : vector<2x64xf32>
    %354 = arith.mulf %350, %349 : vector<2x64xf32>
    %355 = arith.addf %353, %354 : vector<2x64xf32>
    %356 = math.tanh %355 : vector<2x64xf32>
    %357 = arith.mulf %352, %356 : vector<2x64xf32>
    %c0_51 = arith.constant 0 : index
    %c0_52 = arith.constant 0 : index
    %358 = vector.load %arg8[%c0_51, %c0_52] : memref<64x128xf32, #tpu.memory_space<vmem>>, vector<64x128xf32>
    %cst_53 = arith.constant dense<0.000000e+00> : vector<2x128xf32>
    %359 = tpu.matmul %357, %358, %cst_53 {dimension_numbers = #tpu.dot_dimension_numbers<[1], [0], [0], [1], [0, 0, 1, 1], [], []>} : vector<2x64xf32>, vector<64x128xf32>, vector<2x128xf32> -> vector<2x128xf32>
    %c0_54 = arith.constant 0 : index
    %c0_55 = arith.constant 0 : index
    %360 = vector.load %arg9[%c0_54, %c0_55] : memref<1x128xf32, #tpu.memory_space<vmem>>, vector<1x128xf32>
    %361 = vector.broadcast %360 : vector<1x128xf32> to vector<2x128xf32>
    %362 = arith.addf %359, %361 : vector<2x128xf32>
    %c0_56 = arith.constant 0 : index
    %c0_57 = arith.constant 0 : index
    %363 = vector.load %arg10[%c0_56, %c0_57] : memref<2x128xf32, #tpu.memory_space<vmem>>, vector<2x128xf32>
    tpu.vector_store %arg10[%c0_56, %c0_57], %362 {strides = array<i32>} : memref<2x128xf32, #tpu.memory_space<vmem>>, vector<2x128xf32>,
    return
  }
  func.func @transform_0(%arg0: i32) -> (i32, i32, i32) {
    %c0_i32 = arith.constant 0 : i32
    %c0_i32_0 = arith.constant 0 : i32
    %c0_i32_1 = arith.constant 0 : i32
    return %arg0, %c0_i32, %c0_i32_0 : i32, i32, i32
  }
  func.func @transform_1(%arg0: i32) -> (i32, i32) {
    %c0_i32 = arith.constant 0 : i32
    %c0_i32_0 = arith.constant 0 : i32
    %c0_i32_1 = arith.constant 0 : i32
    return %c0_i32, %c0_i32_0 : i32, i32
  }
  func.func @transform_2(%arg0: i32) -> (i32, i32) {
    %c0_i32 = arith.constant 0 : i32
    %c0_i32_0 = arith.constant 0 : i32
    %c0_i32_1 = arith.constant 0 : i32
    return %c0_i32, %c0_i32_0 : i32, i32
  }
  func.func @transform_3(%arg0: i32) -> (i32, i32) {
    %c0_i32 = arith.constant 0 : i32
    %c0_i32_0 = arith.constant 0 : i32
    %c0_i32_1 = arith.constant 0 : i32
    return %c0_i32, %c0_i32_0 : i32, i32
  }
  func.func @transform_4(%arg0: i32) -> (i32, i32) {
    %c0_i32 = arith.constant 0 : i32
    %c0_i32_0 = arith.constant 0 : i32
    %c0_i32_1 = arith.constant 0 : i32
    return %c0_i32, %c0_i32_0 : i32, i32
  }
  func.func @transform_5(%arg0: i32) -> (i32, i32) {
    %c0_i32 = arith.constant 0 : i32
    %c0_i32_0 = arith.constant 0 : i32
    %c0_i32_1 = arith.constant 0 : i32
    return %c0_i32, %c0_i32_0 : i32, i32
  }
  func.func @transform_6(%arg0: i32) -> (i32, i32) {
    %c0_i32 = arith.constant 0 : i32
    %c0_i32_0 = arith.constant 0 : i32
    %c0_i32_1 = arith.constant 0 : i32
    return %c0_i32, %c0_i32_0 : i32, i32
  }
  func.func @transform_7(%arg0: i32) -> (i32, i32) {
    %c0_i32 = arith.constant 0 : i32
    %c0_i32_0 = arith.constant 0 : i32
    %c0_i32_1 = arith.constant 0 : i32
    return %c0_i32, %c0_i32_0 : i32, i32
  }
  func.func @transform_8(%arg0: i32) -> (i32, i32) {
    %c0_i32 = arith.constant 0 : i32
    %c0_i32_0 = arith.constant 0 : i32
    %c0_i32_1 = arith.constant 0 : i32
    return %c0_i32, %c0_i32_0 : i32, i32
  }
  func.func @transform_9(%arg0: i32) -> (i32, i32) {
    %c0_i32 = arith.constant 0 : i32
    %c0_i32_0 = arith.constant 0 : i32
    return %arg0, %c0_i32 : i32, i32
  }
}

</mosaic_0001>

<llo_original>
// kernel: bilstm_forward.1
$region0: #{bilstm_forward.1}
  #allocation0 [shape = 'u32[]', space=smem, size = 0x4, offset = 0x4, fixed_abs, tag = 'smem constant byte address 0x4 - core index']
  #allocation1 [shape = 'u32[72,128]{1,0:T(1,128)}', space=vmem, size = 0x9000, scoped, tag = 'internal scratch']
  %s0 = inlined_call_operand.vmem [shape: f32[2,8,32], index: 0, kind: input, shape index: {}]
  %s1 = inlined_call_operand.vmem [shape: f32[32,256], index: 1, kind: input, shape index: {}]
  %s2 = inlined_call_operand.vmem [shape: f32[1,256], index: 2, kind: input, shape index: {}]
  %s3 = inlined_call_operand.vmem [shape: f32[64,256], index: 3, kind: input, shape index: {}]
  %s4 = inlined_call_operand.vmem [shape: f32[128,256], index: 4, kind: input, shape index: {}]
  %s5 = inlined_call_operand.vmem [shape: f32[1,256], index: 5, kind: input, shape index: {}]
  %s6 = inlined_call_operand.vmem [shape: f32[64,256], index: 6, kind: input, shape index: {}]
  %s7 = inlined_call_operand.vmem [shape: f32[64,128], index: 7, kind: input, shape index: {}]
  %s8 = inlined_call_operand.vmem [shape: f32[1,128], index: 8, kind: input, shape index: {}]
  %s9 = inlined_call_operand.hbm [shape: f32[2,128], index: 9, kind: output, shape index: {}]
  %s10 = sld [smem:[#allocation0]]
  $region46: #{bilstm_forward.1} parent=0
    _
  %s12 = ssub.s32 1, %s10
  %s13 = scalar_select 0, %s12, %s10
  $region1: #{bilstm_forward.1} parent=0
    #allocation2 [shape = 'u8[1024]{0}', space=vmem, size = 0x400, scoped, tag = 'output window, operand 0, single buffered']
    #allocation3 [shape = 's32[1]{0}', space=sflag, size = 0x4, scoped, tag = 'scoped memory for bilstm_forward.1']
    %14 = vsyncpa [#allocation3], 0
    // Predicated region
    $region2: #{bilstm_forward.1} parent=1 // pred_check
      _
    $region3: #{bilstm_forward.1} parent=1 // pred_check_branch
      %16 = sbr.rel (0) target = $region5
    $region4: #{bilstm_forward.1} parent=1 // pred_region
      _
    $region5: #{bilstm_forward.1} parent=1 // pred_fallthru
      _
    // Predicated region
    $region6: #{bilstm_forward.1} parent=1 // pred_check
      _
    $region7: #{bilstm_forward.1} parent=1 // pred_check_branch
      %18 = sbr.rel (0) target = $region9
    $region8: #{bilstm_forward.1} parent=1 // pred_region
      _
    $region9: #{bilstm_forward.1} parent=1 // pred_fallthru
      _
    // Predicated region
    $region10: #{bilstm_forward.1} parent=1 // pred_check
      _
    $region11: #{bilstm_forward.1} parent=1 // pred_check_branch
      %20 = sbr.rel (0) target = $region13
    $region12: #{bilstm_forward.1} parent=1 // pred_region
      _
    $region13: #{bilstm_forward.1} parent=1 // pred_fallthru
      _
    // Predicated region
    $region14: #{bilstm_forward.1} parent=1 // pred_check
      _
    $region15: #{bilstm_forward.1} parent=1 // pred_check_branch
      %22 = sbr.rel (0) target = $region17
    $region16: #{bilstm_forward.1} parent=1 // pred_region
      _
    $region17: #{bilstm_forward.1} parent=1 // pred_fallthru
      _
    // Predicated region
    $region18: #{bilstm_forward.1} parent=1 // pred_check
      _
    $region19: #{bilstm_forward.1} parent=1 // pred_check_branch
      %24 = sbr.rel (0) target = $region21
    $region20: #{bilstm_forward.1} parent=1 // pred_region
      _
    $region21: #{bilstm_forward.1} parent=1 // pred_fallthru
      _
    // Predicated region
    $region22: #{bilstm_forward.1} parent=1 // pred_check
      _
    $region23: #{bilstm_forward.1} parent=1 // pred_check_branch
      %26 = sbr.rel (0) target = $region25
    $region24: #{bilstm_forward.1} parent=1 // pred_region
      _
    $region25: #{bilstm_forward.1} parent=1 // pred_fallthru
      _
    // Predicated region
    $region26: #{bilstm_forward.1} parent=1 // pred_check
      _
    $region27: #{bilstm_forward.1} parent=1 // pred_check_branch
      %28 = sbr.rel (0) target = $region29
    $region28: #{bilstm_forward.1} parent=1 // pred_region
      _
    $region29: #{bilstm_forward.1} parent=1 // pred_fallthru
      _
    // Predicated region
    $region30: #{bilstm_forward.1} parent=1 // pred_check
      _
    $region31: #{bilstm_forward.1} parent=1 // pred_check_branch
      %30 = sbr.rel (0) target = $region33
    $region32: #{bilstm_forward.1} parent=1 // pred_region
      _
    $region33: #{bilstm_forward.1} parent=1 // pred_fallthru
      _
    // Predicated region
    $region34: #{bilstm_forward.1} parent=1 // pred_check
      _
    $region35: #{bilstm_forward.1} parent=1 // pred_check_branch
      %32 = sbr.rel (0) target = $region37
    $region36: #{bilstm_forward.1} parent=1 // pred_region
      _
    $region37: #{bilstm_forward.1} parent=1 // pred_fallthru
      _
    %v33 = vld [vmem:[%s0] sm:$0xff]
    %v34 = vld [vmem:[%s0 + $0x8] sm:$0xff]
    %v35 = vld [vmem:[%s1] sm:$0xff]
    %v36 = vld [vmem:[%s1 + $0x8] sm:$0xff]
    %v37 = vld [vmem:[%s1 + $0x10] sm:$0xff]
    %v38 = vld [vmem:[%s1 + $0x18] sm:$0xff]
    %v39 = vld [vmem:[%s1 + $0x20] sm:$0xff]
    %v40 = vld [vmem:[%s1 + $0x28] sm:$0xff]
    %v41 = vld [vmem:[%s1 + $0x30] sm:$0xff]
    %v42 = vld [vmem:[%s1 + $0x38] sm:$0xff]
    %v43 = vld [vmem:[%s2] sm:$0x3]
    %v45 = vperm.slane %v43, 0
    %v46 = vperm.slane %v43, 1
    %vm49 = vcmask 261120
    %v51 = vsel %vm49, %v33, 0
    %v54 = vsel %vm49, %v34, 0
    %56 = vmatpush.msra.mxu0 0.0
    %57 = vmatpush.msra.mxu0 0.0
    %58 = vmatpush.msra.mxu0 0.0
    %59 = vmatpush.msra.mxu0 0.0
    %60 = vmatpush.msra.mxu0 0.0
    %61 = vmatpush.msra.mxu0 0.0
    %62 = vmatpush.msra.mxu0 0.0
    %63 = vmatpush.msra.mxu0 0.0
    %64 = vmatpush.msra.mxu0 0.0
    %65 = vmatpush.msra.mxu0 0.0
    %66 = vmatpush.msra.mxu0 0.0
    %67 = vmatpush.msra.mxu0 0.0
    %68 = vmatpush.msra.mxu0 %v41
    %69 = vmatpush.msra.mxu0 %v39
    %70 = vmatpush.msra.mxu0 %v37
    %71 = vmatpush.msra.mxu0 %v35
    %72 = vmatmul.f32.gmra.mxu0 %v51
    %v73 = vpop.f32.mrf.mxu0
    %v74 = vadd.f32 %v45, %v73
    %75 = vmatmul.f32.gmra.mxu0 %v54
    %v76 = vpop.f32.mrf.mxu0
    %v77 = vadd.f32 %v45, %v76
    %78 = vdwg.mxu0
    %79 = vmatpush.msra.mxu0 0.0
    %80 = vmatpush.msra.mxu0 0.0
    %81 = vmatpush.msra.mxu0 0.0
    %82 = vmatpush.msra.mxu0 0.0
    %83 = vmatpush.msra.mxu0 0.0
    %84 = vmatpush.msra.mxu0 0.0
    %85 = vmatpush.msra.mxu0 0.0
    %86 = vmatpush.msra.mxu0 0.0
    %87 = vmatpush.msra.mxu0 0.0
    %88 = vmatpush.msra.mxu0 0.0
    %89 = vmatpush.msra.mxu0 0.0
    %90 = vmatpush.msra.mxu0 0.0
    %91 = vmatpush.msra.mxu0 %v42
    %92 = vmatpush.msra.mxu0 %v40
    %93 = vmatpush.msra.mxu0 %v38
    %94 = vmatpush.msra.mxu0 %v36
    %95 = vmatmul.f32.gmra.mxu0 %v51
    %v96 = vpop.f32.mrf.mxu0
    %v97 = vadd.f32 %v46, %v96
    %98 = vmatmul.f32.gmra.mxu0 %v54
    %v99 = vpop.f32.mrf.mxu0
    %v100 = vadd.f32 %v46, %v99
    %101 = vdwg.mxu0
    %v102 = vld [vmem:[%s3] sm:$0xff]
    %v103 = vld [vmem:[%s3 + $0x8] sm:$0xff]
    %v104 = vld [vmem:[%s3 + $0x10] sm:$0xff]
    %v105 = vld [vmem:[%s3 + $0x18] sm:$0xff]
    %v106 = vld [vmem:[%s3 + $0x20] sm:$0xff]
    %v107 = vld [vmem:[%s3 + $0x28] sm:$0xff]
    %v108 = vld [vmem:[%s3 + $0x30] sm:$0xff]
    %v109 = vld [vmem:[%s3 + $0x38] sm:$0xff]
    %v110 = vld [vmem:[%s3 + $0x40] sm:$0xff]
    %v111 = vld [vmem:[%s3 + $0x48] sm:$0xff]
    %v112 = vld [vmem:[%s3 + $0x50] sm:$0xff]
    %v113 = vld [vmem:[%s3 + $0x58] sm:$0xff]
    %v114 = vld [vmem:[%s3 + $0x60] sm:$0xff]
    %v115 = vld [vmem:[%s3 + $0x68] sm:$0xff]
    %v116 = vld [vmem:[%s3 + $0x70] sm:$0xff]
    %v117 = vld [vmem:[%s3 + $0x78] sm:$0xff]
    %vm118 = vcmask 523264
    %v120 = vsel %vm118, 0.0, 0
    %122 = vmatpush.msra.mxu0 0.0
    %123 = vmatpush.msra.mxu0 0.0
    %124 = vmatpush.msra.mxu0 0.0
    %125 = vmatpush.msra.mxu0 0.0
    %126 = vmatpush.msra.mxu0 0.0
    %127 = vmatpush.msra.mxu0 0.0
    %128 = vmatpush.msra.mxu0 0.0
    %129 = vmatpush.msra.mxu0 0.0
    %130 = vmatpush.msra.mxu0 %v116
    %131 = vmatpush.msra.mxu0 %v114
    %132 = vmatpush.msra.mxu0 %v112
    %133 = vmatpush.msra.mxu0 %v110
    %134 = vmatpush.msra.mxu0 %v108
    %135 = vmatpush.msra.mxu0 %v106
    %136 = vmatpush.msra.mxu0 %v104
    %137 = vmatpush.msra.mxu0 %v102
    %138 = vmatmul.f32.gmra.mxu0 %v120
    %v139 = vpop.f32.mrf.mxu0
    %v140 = vadd.f32 0.0, %v139
    %141 = vdwg.mxu0
    %142 = vmatpush.msra.mxu0 0.0
    %143 = vmatpush.msra.mxu0 0.0
    %144 = vmatpush.msra.mxu0 0.0
    %145 = vmatpush.msra.mxu0 0.0
    %146 = vmatpush.msra.mxu0 0.0
    %147 = vmatpush.msra.mxu0 0.0
    %148 = vmatpush.msra.mxu0 0.0
    %149 = vmatpush.msra.mxu0 0.0
    %150 = vmatpush.msra.mxu0 %v117
    %151 = vmatpush.msra.mxu0 %v115
    %152 = vmatpush.msra.mxu0 %v113
    %153 = vmatpush.msra.mxu0 %v111
    %154 = vmatpush.msra.mxu0 %v109
    %155 = vmatpush.msra.mxu0 %v107
    %156 = vmatpush.msra.mxu0 %v105
    %157 = vmatpush.msra.mxu0 %v103
    %158 = vmatmul.f32.gmra.mxu0 %v120
    %v159 = vpop.f32.mrf.mxu0
    %v160 = vadd.f32 0.0, %v159
    %161 = vdwg.mxu0
    %v164 = vrot.slane %v140, 1
    %v165 = vrot.slane %v160, 1
    %v170 = vadd.f32 %v74, %v140
    %v171 = vadd.f32 %v97, %v160
    %v172 = vadd.f32 %v77, %v164
    %v173 = vadd.f32 %v100, %v165
    %v174 = vxor.u32 %v170, 2147483648
    %v175 = vxor.u32 %v171, 2147483648
    %v176 = vxor.u32 %v172, 2147483648
    %v177 = vxor.u32 %v173, 2147483648
    %v178 = vmul.f32 %v174, 1.442695
    %v179 = vpow.pop %v178
    %v180 = vmul.f32 %v175, 1.442695
    %v181 = vpow.pop %v180
    %v182 = vmul.f32 %v176, 1.442695
    %v183 = vpow.pop %v182
    %v184 = vmul.f32 %v177, 1.442695
    %v185 = vpow.pop %v184
    %v186 = vadd.f32 %v179, 1.0
    %v187 = vadd.f32 %v181, 1.0
    %v188 = vadd.f32 %v183, 1.0
    %v189 = vadd.f32 %v185, 1.0
    %v190 = vrcp.pop %v186
    %v191 = vmul.f32 %v186, %v190
    %v192 = vsub.f32 1.0, %v191
    %v193 = vmul.f32 %v190, %v192
    %v194 = vadd.f32 %v190, %v193
    %vm195 = vweird.f32 %v186
    %vm196 = vweird.f32 %v190
    %vm197 = vmor %vm195, %vm196
    %v198 = vsel %vm197, %v190, %v194
    %v199 = vand.u32 2147483647, %v186
    %vm200 = vcmp.eq.f32.partialorder %v199, 8.507059e+37
    %v201 = vand.u32 %v186, 2147483648
    %v202 = vor.u32 1.1754944e-38, %v201
    %v203 = vsel %vm200, %v202, %v198
    %v204 = vmul.f32 1.0, %v203
    %v205 = vrcp.pop %v187
    %v206 = vmul.f32 %v187, %v205
    %v207 = vsub.f32 1.0, %v206
    %v208 = vmul.f32 %v205, %v207
    %v209 = vadd.f32 %v205, %v208
    %vm210 = vweird.f32 %v187
    %vm211 = vweird.f32 %v205
    %vm212 = vmor %vm210, %vm211
    %v213 = vsel %vm212, %v205, %v209
    %v214 = vand.u32 2147483647, %v187
    %vm215 = vcmp.eq.f32.partialorder %v214, 8.507059e+37
    %v216 = vand.u32 %v187, 2147483648
    %v217 = vor.u32 1.1754944e-38, %v216
    %v218 = vsel %vm215, %v217, %v213
    %v219 = vmul.f32 1.0, %v218
    %v220 = vrcp.pop %v188
    %v221 = vmul.f32 %v188, %v220
    %v222 = vsub.f32 1.0, %v221
    %v223 = vmul.f32 %v220, %v222
    %v224 = vadd.f32 %v220, %v223
    %vm225 = vweird.f32 %v188
    %vm226 = vweird.f32 %v220
    %vm227 = vmor %vm225, %vm226
    %v228 = vsel %vm227, %v220, %v224
    %v229 = vand.u32 2147483647, %v188
    %vm230 = vcmp.eq.f32.partialorder %v229, 8.507059e+37
    %v231 = vand.u32 %v188, 2147483648
    %v232 = vor.u32 1.1754944e-38, %v231
    %v233 = vsel %vm230, %v232, %v228
    %v234 = vmul.f32 1.0, %v233
    %v235 = vrcp.pop %v189
    %v236 = vmul.f32 %v189, %v235
    %v237 = vsub.f32 1.0, %v236
    %v238 = vmul.f32 %v235, %v237
    %v239 = vadd.f32 %v235, %v238
    %vm240 = vweird.f32 %v189
    %vm241 = vweird.f32 %v235
    %vm242 = vmor %vm240, %vm241
    %v243 = vsel %vm242, %v235, %v239
    %v244 = vand.u32 2147483647, %v189
    %vm245 = vcmp.eq.f32.partialorder %v244, 8.507059e+37
    %v246 = vand.u32 %v189, 2147483648
    %v247 = vor.u32 1.1754944e-38, %v246
    %v248 = vsel %vm245, %v247, %v243
    %v249 = vmul.f32 1.0, %v248
    %v250 = vtanh.pop %v171
    %v251 = vtanh.pop %v173
    %v252 = vmul.f32 %v204, 0.0
    %v253 = vmul.f32 %v234, 0.0
    %256 = vrot.lane.b32.xlu0 %v250, 64
    %v257 = vpop.permute.xlu0 %256
    %258 = vrot.lane.b32.xlu0 %v251, 64
    %v259 = vpop.permute.xlu0 %258
    %v262 = vmul.f32 %v204, %v257
    %v263 = vmul.f32 %v234, %v259
    %266 = vrot.lane.b32.xlu0 %v262, 64
    %v267 = vpop.permute.xlu0 %266
    %268 = vrot.lane.b32.xlu0 %v263, 64
    %v269 = vpop.permute.xlu0 %268
    %v272 = vadd.f32 %v252, %v267
    %v273 = vadd.f32 %v253, %v269
    %v274 = vtanh.pop %v272
    %v275 = vtanh.pop %v273
    %278 = vrot.lane.b32.xlu0 %v274, 64
    %v279 = vpop.permute.xlu0 %278
    %280 = vrot.lane.b32.xlu0 %v275, 64
    %v281 = vpop.permute.xlu0 %280
    %v284 = vmul.f32 %v219, %v279
    %v285 = vmul.f32 %v249, %v281
    %v288 = vrot.slane %v285, 7
    %vm289 = vcmask 1041409
    %v290 = vsel %vm289, %v288, %v284
    %v291 = vsel %vm118, %v290, 0
    %293 = vmatpush.msra.mxu0 0.0
    %294 = vmatpush.msra.mxu0 0.0
    %295 = vmatpush.msra.mxu0 0.0
    %296 = vmatpush.msra.mxu0 0.0
    %297 = vmatpush.msra.mxu0 0.0
    %298 = vmatpush.msra.mxu0 0.0
    %299 = vmatpush.msra.mxu0 0.0
    %300 = vmatpush.msra.mxu0 0.0
    %301 = vmatpush.msra.mxu0 %v116
    %302 = vmatpush.msra.mxu0 %v114
    %303 = vmatpush.msra.mxu0 %v112
    %304 = vmatpush.msra.mxu0 %v110
    %305 = vmatpush.msra.mxu0 %v108
    %306 = vmatpush.msra.mxu0 %v106
    %307 = vmatpush.msra.mxu0 %v104
    %308 = vmatpush.msra.mxu0 %v102
    %309 = vmatmul.f32.gmra.mxu0 %v291
    %v310 = vpop.f32.mrf.mxu0
    %v311 = vadd.f32 0.0, %v310
    %312 = vdwg.mxu0
    %313 = vmatpush.msra.mxu0 0.0
    %314 = vmatpush.msra.mxu0 0.0
    %315 = vmatpush.msra.mxu0 0.0
    %316 = vmatpush.msra.mxu0 0.0
    %317 = vmatpush.msra.mxu0 0.0
    %318 = vmatpush.msra.mxu0 0.0
    %319 = vmatpush.msra.mxu0 0.0
    %320 = vmatpush.msra.mxu0 0.0
    %321 = vmatpush.msra.mxu0 %v117
    %322 = vmatpush.msra.mxu0 %v115
    %323 = vmatpush.msra.mxu0 %v113
    %324 = vmatpush.msra.mxu0 %v111
    %325 = vmatpush.msra.mxu0 %v109
    %326 = vmatpush.msra.mxu0 %v107
    %327 = vmatpush.msra.mxu0 %v105
    %328 = vmatpush.msra.mxu0 %v103
    %329 = vmatmul.f32.gmra.mxu0 %v291
    %v330 = vpop.f32.mrf.mxu0
    %v331 = vadd.f32 0.0, %v330
    %332 = vdwg.mxu0
    %v335 = vrot.slane %v311, 7
    %v336 = vrot.slane %v331, 7
    %v341 = vadd.f32 %v74, %v335
    %v342 = vadd.f32 %v97, %v336
    %v343 = vadd.f32 %v77, %v311
    %v344 = vadd.f32 %v100, %v331
    %v345 = vxor.u32 %v341, 2147483648
    %v346 = vxor.u32 %v342, 2147483648
    %v347 = vxor.u32 %v343, 2147483648
    %v348 = vxor.u32 %v344, 2147483648
    %v349 = vmul.f32 %v345, 1.442695
    %v350 = vpow.pop %v349
    %v351 = vmul.f32 %v346, 1.442695
    %v352 = vpow.pop %v351
    %v353 = vmul.f32 %v347, 1.442695
    %v354 = vpow.pop %v353
    %v355 = vmul.f32 %v348, 1.442695
    %v356 = vpow.pop %v355
    %v357 = vadd.f32 %v350, 1.0
    %v358 = vadd.f32 %v352, 1.0
    %v359 = vadd.f32 %v354, 1.0
    %v360 = vadd.f32 %v356, 1.0
    %v361 = vrcp.pop %v357
    %v362 = vmul.f32 %v357, %v361
    %v363 = vsub.f32 1.0, %v362
    %v364 = vmul.f32 %v361, %v363
    %v365 = vadd.f32 %v361, %v364
    %vm366 = vweird.f32 %v357
    %vm367 = vweird.f32 %v361
    %vm368 = vmor %vm366, %vm367
    %v369 = vsel %vm368, %v361, %v365
    %v370 = vand.u32 2147483647, %v357
    %vm371 = vcmp.eq.f32.partialorder %v370, 8.507059e+37
    %v372 = vand.u32 %v357, 2147483648
    %v373 = vor.u32 1.1754944e-38, %v372
    %v374 = vsel %vm371, %v373, %v369
    %v375 = vmul.f32 1.0, %v374
    %v376 = vrcp.pop %v358
    %v377 = vmul.f32 %v358, %v376
    %v378 = vsub.f32 1.0, %v377
    %v379 = vmul.f32 %v376, %v378
    %v380 = vadd.f32 %v376, %v379
    %vm381 = vweird.f32 %v358
    %vm382 = vweird.f32 %v376
    %vm383 = vmor %vm381, %vm382
    %v384 = vsel %vm383, %v376, %v380
    %v385 = vand.u32 2147483647, %v358
    %vm386 = vcmp.eq.f32.partialorder %v385, 8.507059e+37
    %v387 = vand.u32 %v358, 2147483648
    %v388 = vor.u32 1.1754944e-38, %v387
    %v389 = vsel %vm386, %v388, %v384
    %v390 = vmul.f32 1.0, %v389
    %v391 = vrcp.pop %v359
    %v392 = vmul.f32 %v359, %v391
    %v393 = vsub.f32 1.0, %v392
    %v394 = vmul.f32 %v391, %v393
    %v395 = vadd.f32 %v391, %v394
    %vm396 = vweird.f32 %v359
    %vm397 = vweird.f32 %v391
    %vm398 = vmor %vm396, %vm397
    %v399 = vsel %vm398, %v391, %v395
    %v400 = vand.u32 2147483647, %v359
    %vm401 = vcmp.eq.f32.partialorder %v400, 8.507059e+37
    %v402 = vand.u32 %v359, 2147483648
    %v403 = vor.u32 1.1754944e-38, %v402
    %v404 = vsel %vm401, %v403, %v399
    %v405 = vmul.f32 1.0, %v404
    %v406 = vrcp.pop %v360
    %v407 = vmul.f32 %v360, %v406
    %v408 = vsub.f32 1.0, %v407
    %v409 = vmul.f32 %v406, %v408
    %v410 = vadd.f32 %v406, %v409
    %vm411 = vweird.f32 %v360
    %vm412 = vweird.f32 %v406
    %vm413 = vmor %vm411, %vm412
    %v414 = vsel %vm413, %v406, %v410
    %v415 = vand.u32 2147483647, %v360
    %vm416 = vcmp.eq.f32.partialorder %v415, 8.507059e+37
    %v417 = vand.u32 %v360, 2147483648
    %v418 = vor.u32 1.1754944e-38, %v417
    %v419 = vsel %vm416, %v418, %v414
    %v420 = vmul.f32 1.0, %v419
    %v421 = vtanh.pop %v342
    %v422 = vtanh.pop %v344
    %v425 = vrot.slane %v272, 7
    %v426 = vrot.slane %v273, 7
    %v429 = vmul.f32 %v375, %v425
    %v430 = vmul.f32 %v405, %v426
    %433 = vrot.lane.b32.xlu0 %v421, 64
    %v434 = vpop.permute.xlu0 %433
    %435 = vrot.lane.b32.xlu0 %v422, 64
    %v436 = vpop.permute.xlu0 %435
    %v439 = vmul.f32 %v375, %v434
    %v440 = vmul.f32 %v405, %v436
    %443 = vrot.lane.b32.xlu0 %v439, 64
    %v444 = vpop.permute.xlu0 %443
    %445 = vrot.lane.b32.xlu0 %v440, 64
    %v446 = vpop.permute.xlu0 %445
    %v449 = vadd.f32 %v429, %v444
    %v450 = vadd.f32 %v430, %v446
    %v451 = vtanh.pop %v449
    %v452 = vtanh.pop %v450
    %455 = vrot.lane.b32.xlu0 %v451, 64
    %v456 = vpop.permute.xlu0 %455
    %457 = vrot.lane.b32.xlu0 %v452, 64
    %v458 = vpop.permute.xlu0 %457
    %v461 = vmul.f32 %v390, %v456
    %v462 = vmul.f32 %v420, %v458
    %v465 = vrot.slane %v461, 1
    %v466 = vsel %vm289, %v462, %v465
    %v467 = vsel %vm118, %v466, 0
    %469 = vmatpush.msra.mxu0 0.0
    %470 = vmatpush.msra.mxu0 0.0
    %471 = vmatpush.msra.mxu0 0.0
    %472 = vmatpush.msra.mxu0 0.0
    %473 = vmatpush.msra.mxu0 0.0
    %474 = vmatpush.msra.mxu0 0.0
    %475 = vmatpush.msra.mxu0 0.0
    %476 = vmatpush.msra.mxu0 0.0
    %477 = vmatpush.msra.mxu0 %v116
    %478 = vmatpush.msra.mxu0 %v114
    %479 = vmatpush.msra.mxu0 %v112
    %480 = vmatpush.msra.mxu0 %v110
    %481 = vmatpush.msra.mxu0 %v108
    %482 = vmatpush.msra.mxu0 %v106
    %483 = vmatpush.msra.mxu0 %v104
    %484 = vmatpush.msra.mxu0 %v102
    %485 = vmatmul.f32.gmra.mxu0 %v467
    %v486 = vpop.f32.mrf.mxu0
    %v487 = vadd.f32 0.0, %v486
    %488 = vdwg.mxu0
    %489 = vmatpush.msra.mxu0 0.0
    %490 = vmatpush.msra.mxu0 0.0
    %491 = vmatpush.msra.mxu0 0.0
    %492 = vmatpush.msra.mxu0 0.0
    %493 = vmatpush.msra.mxu0 0.0
    %494 = vmatpush.msra.mxu0 0.0
    %495 = vmatpush.msra.mxu0 0.0
    %496 = vmatpush.msra.mxu0 0.0
    %497 = vmatpush.msra.mxu0 %v117
    %498 = vmatpush.msra.mxu0 %v115
    %499 = vmatpush.msra.mxu0 %v113
    %500 = vmatpush.msra.mxu0 %v111
    %501 = vmatpush.msra.mxu0 %v109
    %502 = vmatpush.msra.mxu0 %v107
    %503 = vmatpush.msra.mxu0 %v105
    %504 = vmatpush.msra.mxu0 %v103
    %505 = vmatmul.f32.gmra.mxu0 %v467
    %v506 = vpop.f32.mrf.mxu0
    %v507 = vadd.f32 0.0, %v506
    %508 = vdwg.mxu0
    %v511 = vrot.slane %v487, 6
    %v512 = vrot.slane %v507, 6
    %v513 = vrot.slane %v487, 7
    %v514 = vrot.slane %v507, 7
    %v519 = vadd.f32 %v74, %v511
    %v520 = vadd.f32 %v97, %v512
    %v521 = vadd.f32 %v77, %v513
    %v522 = vadd.f32 %v100, %v514
    %v523 = vxor.u32 %v519, 2147483648
    %v524 = vxor.u32 %v520, 2147483648
    %v525 = vxor.u32 %v521, 2147483648
    %v526 = vxor.u32 %v522, 2147483648
    %v527 = vmul.f32 %v523, 1.442695
    %v528 = vpow.pop %v527
    %v529 = vmul.f32 %v524, 1.442695
    %v530 = vpow.pop %v529
    %v531 = vmul.f32 %v525, 1.442695
    %v532 = vpow.pop %v531
    %v533 = vmul.f32 %v526, 1.442695
    %v534 = vpow.pop %v533
    %v535 = vadd.f32 %v528, 1.0
    %v536 = vadd.f32 %v530, 1.0
    %v537 = vadd.f32 %v532, 1.0
    %v538 = vadd.f32 %v534, 1.0
    %v539 = vrcp.pop %v535
    %v540 = vmul.f32 %v535, %v539
    %v541 = vsub.f32 1.0, %v540
    %v542 = vmul.f32 %v539, %v541
    %v543 = vadd.f32 %v539, %v542
    %vm544 = vweird.f32 %v535
    %vm545 = vweird.f32 %v539
    %vm546 = vmor %vm544, %vm545
    %v547 = vsel %vm546, %v539, %v543
    %v548 = vand.u32 2147483647, %v535
    %vm549 = vcmp.eq.f32.partialorder %v548, 8.507059e+37
    %v550 = vand.u32 %v535, 2147483648
    %v551 = vor.u32 1.1754944e-38, %v550
    %v552 = vsel %vm549, %v551, %v547
    %v553 = vmul.f32 1.0, %v552
    %v554 = vrcp.pop %v536
    %v555 = vmul.f32 %v536, %v554
    %v556 = vsub.f32 1.0, %v555
    %v557 = vmul.f32 %v554, %v556
    %v558 = vadd.f32 %v554, %v557
    %vm559 = vweird.f32 %v536
    %vm560 = vweird.f32 %v554
    %vm561 = vmor %vm559, %vm560
    %v562 = vsel %vm561, %v554, %v558
    %v563 = vand.u32 2147483647, %v536
    %vm564 = vcmp.eq.f32.partialorder %v563, 8.507059e+37
    %v565 = vand.u32 %v536, 2147483648
    %v566 = vor.u32 1.1754944e-38, %v565
    %v567 = vsel %vm564, %v566, %v562
    %v568 = vmul.f32 1.0, %v567
    %v569 = vrcp.pop %v537
    %v570 = vmul.f32 %v537, %v569
    %v571 = vsub.f32 1.0, %v570
    %v572 = vmul.f32 %v569, %v571
    %v573 = vadd.f32 %v569, %v572
    %vm574 = vweird.f32 %v537
    %vm575 = vweird.f32 %v569
    %vm576 = vmor %vm574, %vm575
    %v577 = vsel %vm576, %v569, %v573
    %v578 = vand.u32 2147483647, %v537
    %vm579 = vcmp.eq.f32.partialorder %v578, 8.507059e+37
    %v580 = vand.u32 %v537, 2147483648
    %v581 = vor.u32 1.1754944e-38, %v580
    %v582 = vsel %vm579, %v581, %v577
    %v583 = vmul.f32 1.0, %v582
    %v584 = vrcp.pop %v538
    %v585 = vmul.f32 %v538, %v584
    %v586 = vsub.f32 1.0, %v585
    %v587 = vmul.f32 %v584, %v586
    %v588 = vadd.f32 %v584, %v587
    %vm589 = vweird.f32 %v538
    %vm590 = vweird.f32 %v584
    %vm591 = vmor %vm589, %vm590
    %v592 = vsel %vm591, %v584, %v588
    %v593 = vand.u32 2147483647, %v538
    %vm594 = vcmp.eq.f32.partialorder %v593, 8.507059e+37
    %v595 = vand.u32 %v538, 2147483648
    %v596 = vor.u32 1.1754944e-38, %v595
    %v597 = vsel %vm594, %v596, %v592
    %v598 = vmul.f32 1.0, %v597
    %v599 = vtanh.pop %v520
    %v600 = vtanh.pop %v522
    %v603 = vrot.slane %v449, 7
    %v604 = vrot.slane %v450, 7
    %v607 = vmul.f32 %v553, %v603
    %v608 = vmul.f32 %v583, %v604
    %611 = vrot.lane.b32.xlu0 %v599, 64
    %v612 = vpop.permute.xlu0 %611
    %613 = vrot.lane.b32.xlu0 %v600, 64
    %v614 = vpop.permute.xlu0 %613
    %v617 = vmul.f32 %v553, %v612
    %v618 = vmul.f32 %v583, %v614
    %621 = vrot.lane.b32.xlu0 %v617, 64
    %v622 = vpop.permute.xlu0 %621
    %623 = vrot.lane.b32.xlu0 %v618, 64
    %v624 = vpop.permute.xlu0 %623
    %v627 = vadd.f32 %v607, %v622
    %v628 = vadd.f32 %v608, %v624
    %v629 = vtanh.pop %v627
    %v630 = vtanh.pop %v628
    %633 = vrot.lane.b32.xlu0 %v629, 64
    %v634 = vpop.permute.xlu0 %633
    %635 = vrot.lane.b32.xlu0 %v630, 64
    %v636 = vpop.permute.xlu0 %635
    %v639 = vmul.f32 %v568, %v634
    %v640 = vmul.f32 %v598, %v636
    %v643 = vrot.slane %v639, 2
    %v644 = vrot.slane %v640, 1
    %v645 = vsel %vm289, %v644, %v643
    %v646 = vsel %vm118, %v645, 0
    %648 = vmatpush.msra.mxu0 0.0
    %649 = vmatpush.msra.mxu0 0.0
    %650 = vmatpush.msra.mxu0 0.0
    %651 = vmatpush.msra.mxu0 0.0
    %652 = vmatpush.msra.mxu0 0.0
    %653 = vmatpush.msra.mxu0 0.0
    %654 = vmatpush.msra.mxu0 0.0
    %655 = vmatpush.msra.mxu0 0.0
    %656 = vmatpush.msra.mxu0 %v116
    %657 = vmatpush.msra.mxu0 %v114
    %658 = vmatpush.msra.mxu0 %v112
    %659 = vmatpush.msra.mxu0 %v110
    %660 = vmatpush.msra.mxu0 %v108
    %661 = vmatpush.msra.mxu0 %v106
    %662 = vmatpush.msra.mxu0 %v104
    %663 = vmatpush.msra.mxu0 %v102
    %664 = vmatmul.f32.gmra.mxu0 %v646
    %v665 = vpop.f32.mrf.mxu0
    %v666 = vadd.f32 0.0, %v665
    %667 = vdwg.mxu0
    %668 = vmatpush.msra.mxu0 0.0
    %669 = vmatpush.msra.mxu0 0.0
    %670 = vmatpush.msra.mxu0 0.0
    %671 = vmatpush.msra.mxu0 0.0
    %672 = vmatpush.msra.mxu0 0.0
    %673 = vmatpush.msra.mxu0 0.0
    %674 = vmatpush.msra.mxu0 0.0
    %675 = vmatpush.msra.mxu0 0.0
    %676 = vmatpush.msra.mxu0 %v117
    %677 = vmatpush.msra.mxu0 %v115
    %678 = vmatpush.msra.mxu0 %v113
    %679 = vmatpush.msra.mxu0 %v111
    %680 = vmatpush.msra.mxu0 %v109
    %681 = vmatpush.msra.mxu0 %v107
    %682 = vmatpush.msra.mxu0 %v105
    %683 = vmatpush.msra.mxu0 %v103
    %684 = vmatmul.f32.gmra.mxu0 %v646
    %v685 = vpop.f32.mrf.mxu0
    %v686 = vadd.f32 0.0, %v685
    %687 = vdwg.mxu0
    %v690 = vrot.slane %v666, 5
    %v691 = vrot.slane %v686, 5
    %v692 = vrot.slane %v666, 6
    %v693 = vrot.slane %v686, 6
    %v698 = vadd.f32 %v74, %v690
    %v699 = vadd.f32 %v97, %v691
    %v700 = vadd.f32 %v77, %v692
    %v701 = vadd.f32 %v100, %v693
    %v702 = vxor.u32 %v698, 2147483648
    %v703 = vxor.u32 %v699, 2147483648
    %v704 = vxor.u32 %v700, 2147483648
    %v705 = vxor.u32 %v701, 2147483648
    %v706 = vmul.f32 %v702, 1.442695
    %v707 = vpow.pop %v706
    %v708 = vmul.f32 %v703, 1.442695
    %v709 = vpow.pop %v708
    %v710 = vmul.f32 %v704, 1.442695
    %v711 = vpow.pop %v710
    %v712 = vmul.f32 %v705, 1.442695
    %v713 = vpow.pop %v712
    %v714 = vadd.f32 %v707, 1.0
    %v715 = vadd.f32 %v709, 1.0
    %v716 = vadd.f32 %v711, 1.0
    %v717 = vadd.f32 %v713, 1.0
    %v718 = vrcp.pop %v714
    %v719 = vmul.f32 %v714, %v718
    %v720 = vsub.f32 1.0, %v719
    %v721 = vmul.f32 %v718, %v720
    %v722 = vadd.f32 %v718, %v721
    %vm723 = vweird.f32 %v714
    %vm724 = vweird.f32 %v718
    %vm725 = vmor %vm723, %vm724
    %v726 = vsel %vm725, %v718, %v722
    %v727 = vand.u32 2147483647, %v714
    %vm728 = vcmp.eq.f32.partialorder %v727, 8.507059e+37
    %v729 = vand.u32 %v714, 2147483648
    %v730 = vor.u32 1.1754944e-38, %v729
    %v731 = vsel %vm728, %v730, %v726
    %v732 = vmul.f32 1.0, %v731
    %v733 = vrcp.pop %v715
    %v734 = vmul.f32 %v715, %v733
    %v735 = vsub.f32 1.0, %v734
    %v736 = vmul.f32 %v733, %v735
    %v737 = vadd.f32 %v733, %v736
    %vm738 = vweird.f32 %v715
    %vm739 = vweird.f32 %v733
    %vm740 = vmor %vm738, %vm739
    %v741 = vsel %vm740, %v733, %v737
    %v742 = vand.u32 2147483647, %v715
    %vm743 = vcmp.eq.f32.partialorder %v742, 8.507059e+37
    %v744 = vand.u32 %v715, 2147483648
    %v745 = vor.u32 1.1754944e-38, %v744
    %v746 = vsel %vm743, %v745, %v741
    %v747 = vmul.f32 1.0, %v746
    %v748 = vrcp.pop %v716
    %v749 = vmul.f32 %v716, %v748
    %v750 = vsub.f32 1.0, %v749
    %v751 = vmul.f32 %v748, %v750
    %v752 = vadd.f32 %v748, %v751
    %vm753 = vweird.f32 %v716
    %vm754 = vweird.f32 %v748
    %vm755 = vmor %vm753, %vm754
    %v756 = vsel %vm755, %v748, %v752
    %v757 = vand.u32 2147483647, %v716
    %vm758 = vcmp.eq.f32.partialorder %v757, 8.507059e+37
    %v759 = vand.u32 %v716, 2147483648
    %v760 = vor.u32 1.1754944e-38, %v759
    %v761 = vsel %vm758, %v760, %v756
    %v762 = vmul.f32 1.0, %v761
    %v763 = vrcp.pop %v717
    %v764 = vmul.f32 %v717, %v763
    %v765 = vsub.f32 1.0, %v764
    %v766 = vmul.f32 %v763, %v765
    %v767 = vadd.f32 %v763, %v766
    %vm768 = vweird.f32 %v717
    %vm769 = vweird.f32 %v763
    %vm770 = vmor %vm768, %vm769
    %v771 = vsel %vm770, %v763, %v767
    %v772 = vand.u32 2147483647, %v717
    %vm773 = vcmp.eq.f32.partialorder %v772, 8.507059e+37
    %v774 = vand.u32 %v717, 2147483648
    %v775 = vor.u32 1.1754944e-38, %v774
    %v776 = vsel %vm773, %v775, %v771
    %v777 = vmul.f32 1.0, %v776
    %v778 = vtanh.pop %v699
    %v779 = vtanh.pop %v701
    %v782 = vrot.slane %v627, 7
    %v783 = vrot.slane %v628, 7
    %v786 = vmul.f32 %v732, %v782
    %v787 = vmul.f32 %v762, %v783
    %790 = vrot.lane.b32.xlu0 %v778, 64
    %v791 = vpop.permute.xlu0 %790
    %792 = vrot.lane.b32.xlu0 %v779, 64
    %v793 = vpop.permute.xlu0 %792
    %v796 = vmul.f32 %v732, %v791
    %v797 = vmul.f32 %v762, %v793
    %800 = vrot.lane.b32.xlu0 %v796, 64
    %v801 = vpop.permute.xlu0 %800
    %802 = vrot.lane.b32.xlu0 %v797, 64
    %v803 = vpop.permute.xlu0 %802
    %v806 = vadd.f32 %v786, %v801
    %v807 = vadd.f32 %v787, %v803
    %v808 = vtanh.pop %v806
    %v809 = vtanh.pop %v807
    %812 = vrot.lane.b32.xlu0 %v808, 64
    %v813 = vpop.permute.xlu0 %812
    %814 = vrot.lane.b32.xlu0 %v809, 64
    %v815 = vpop.permute.xlu0 %814
    %v818 = vmul.f32 %v747, %v813
    %v819 = vmul.f32 %v777, %v815
    %v822 = vrot.slane %v818, 3
    %v823 = vrot.slane %v819, 2
    %v824 = vsel %vm289, %v823, %v822
    %v825 = vsel %vm118, %v824, 0
    %827 = vmatpush.msra.mxu0 0.0
    %828 = vmatpush.msra.mxu0 0.0
    %829 = vmatpush.msra.mxu0 0.0
    %830 = vmatpush.msra.mxu0 0.0
    %831 = vmatpush.msra.mxu0 0.0
    %832 = vmatpush.msra.mxu0 0.0
    %833 = vmatpush.msra.mxu0 0.0
    %834 = vmatpush.msra.mxu0 0.0
    %835 = vmatpush.msra.mxu0 %v116
    %836 = vmatpush.msra.mxu0 %v114
    %837 = vmatpush.msra.mxu0 %v112
    %838 = vmatpush.msra.mxu0 %v110
    %839 = vmatpush.msra.mxu0 %v108
    %840 = vmatpush.msra.mxu0 %v106
    %841 = vmatpush.msra.mxu0 %v104
    %842 = vmatpush.msra.mxu0 %v102
    %843 = vmatmul.f32.gmra.mxu0 %v825
    %v844 = vpop.f32.mrf.mxu0
    %v845 = vadd.f32 0.0, %v844
    %846 = vdwg.mxu0
    %847 = vmatpush.msra.mxu0 0.0
    %848 = vmatpush.msra.mxu0 0.0
    %849 = vmatpush.msra.mxu0 0.0
    %850 = vmatpush.msra.mxu0 0.0
    %851 = vmatpush.msra.mxu0 0.0
    %852 = vmatpush.msra.mxu0 0.0
    %853 = vmatpush.msra.mxu0 0.0
    %854 = vmatpush.msra.mxu0 0.0
    %855 = vmatpush.msra.mxu0 %v117
    %856 = vmatpush.msra.mxu0 %v115
    %857 = vmatpush.msra.mxu0 %v113
    %858 = vmatpush.msra.mxu0 %v111
    %859 = vmatpush.msra.mxu0 %v109
    %860 = vmatpush.msra.mxu0 %v107
    %861 = vmatpush.msra.mxu0 %v105
    %862 = vmatpush.msra.mxu0 %v103
    %863 = vmatmul.f32.gmra.mxu0 %v825
    %v864 = vpop.f32.mrf.mxu0
    %v865 = vadd.f32 0.0, %v864
    %866 = vdwg.mxu0
    %v869 = vrot.slane %v845, 4
    %v870 = vrot.slane %v865, 4
    %v871 = vrot.slane %v845, 5
    %v872 = vrot.slane %v865, 5
    %v877 = vadd.f32 %v74, %v869
    %v878 = vadd.f32 %v97, %v870
    %v879 = vadd.f32 %v77, %v871
    %v880 = vadd.f32 %v100, %v872
    %v881 = vxor.u32 %v877, 2147483648
    %v882 = vxor.u32 %v878, 2147483648
    %v883 = vxor.u32 %v879, 2147483648
    %v884 = vxor.u32 %v880, 2147483648
    %v885 = vmul.f32 %v881, 1.442695
    %v886 = vpow.pop %v885
    %v887 = vmul.f32 %v882, 1.442695
    %v888 = vpow.pop %v887
    %v889 = vmul.f32 %v883, 1.442695
    %v890 = vpow.pop %v889
    %v891 = vmul.f32 %v884, 1.442695
    %v892 = vpow.pop %v891
    %v893 = vadd.f32 %v886, 1.0
    %v894 = vadd.f32 %v888, 1.0
    %v895 = vadd.f32 %v890, 1.0
    %v896 = vadd.f32 %v892, 1.0
    %v897 = vrcp.pop %v893
    %v898 = vmul.f32 %v893, %v897
    %v899 = vsub.f32 1.0, %v898
    %v900 = vmul.f32 %v897, %v899
    %v901 = vadd.f32 %v897, %v900
    %vm902 = vweird.f32 %v893
    %vm903 = vweird.f32 %v897
    %vm904 = vmor %vm902, %vm903
    %v905 = vsel %vm904, %v897, %v901
    %v906 = vand.u32 2147483647, %v893
    %vm907 = vcmp.eq.f32.partialorder %v906, 8.507059e+37
    %v908 = vand.u32 %v893, 2147483648
    %v909 = vor.u32 1.1754944e-38, %v908
    %v910 = vsel %vm907, %v909, %v905
    %v911 = vmul.f32 1.0, %v910
    %v912 = vrcp.pop %v894
    %v913 = vmul.f32 %v894, %v912
    %v914 = vsub.f32 1.0, %v913
    %v915 = vmul.f32 %v912, %v914
    %v916 = vadd.f32 %v912, %v915
    %vm917 = vweird.f32 %v894
    %vm918 = vweird.f32 %v912
    %vm919 = vmor %vm917, %vm918
    %v920 = vsel %vm919, %v912, %v916
    %v921 = vand.u32 2147483647, %v894
    %vm922 = vcmp.eq.f32.partialorder %v921, 8.507059e+37
    %v923 = vand.u32 %v894, 2147483648
    %v924 = vor.u32 1.1754944e-38, %v923
    %v925 = vsel %vm922, %v924, %v920
    %v926 = vmul.f32 1.0, %v925
    %v927 = vrcp.pop %v895
    %v928 = vmul.f32 %v895, %v927
    %v929 = vsub.f32 1.0, %v928
    %v930 = vmul.f32 %v927, %v929
    %v931 = vadd.f32 %v927, %v930
    %vm932 = vweird.f32 %v895
    %vm933 = vweird.f32 %v927
    %vm934 = vmor %vm932, %vm933
    %v935 = vsel %vm934, %v927, %v931
    %v936 = vand.u32 2147483647, %v895
    %vm937 = vcmp.eq.f32.partialorder %v936, 8.507059e+37
    %v938 = vand.u32 %v895, 2147483648
    %v939 = vor.u32 1.1754944e-38, %v938
    %v940 = vsel %vm937, %v939, %v935
    %v941 = vmul.f32 1.0, %v940
    %v942 = vrcp.pop %v896
    %v943 = vmul.f32 %v896, %v942
    %v944 = vsub.f32 1.0, %v943
    %v945 = vmul.f32 %v942, %v944
    %v946 = vadd.f32 %v942, %v945
    %vm947 = vweird.f32 %v896
    %vm948 = vweird.f32 %v942
    %vm949 = vmor %vm947, %vm948
    %v950 = vsel %vm949, %v942, %v946
    %v951 = vand.u32 2147483647, %v896
    %vm952 = vcmp.eq.f32.partialorder %v951, 8.507059e+37
    %v953 = vand.u32 %v896, 2147483648
    %v954 = vor.u32 1.1754944e-38, %v953
    %v955 = vsel %vm952, %v954, %v950
    %v956 = vmul.f32 1.0, %v955
    %v957 = vtanh.pop %v878
    %v958 = vtanh.pop %v880
    %v961 = vrot.slane %v806, 7
    %v962 = vrot.slane %v807, 7
    %v965 = vmul.f32 %v911, %v961
    %v966 = vmul.f32 %v941, %v962
    %969 = vrot.lane.b32.xlu0 %v957, 64
    %v970 = vpop.permute.xlu0 %969
    %971 = vrot.lane.b32.xlu0 %v958, 64
    %v972 = vpop.permute.xlu0 %971
    %v975 = vmul.f32 %v911, %v970
    %v976 = vmul.f32 %v941, %v972
    %979 = vrot.lane.b32.xlu0 %v975, 64
    %v980 = vpop.permute.xlu0 %979
    %981 = vrot.lane.b32.xlu0 %v976, 64
    %v982 = vpop.permute.xlu0 %981
    %v985 = vadd.f32 %v965, %v980
    %v986 = vadd.f32 %v966, %v982
    %v987 = vtanh.pop %v985
    %v988 = vtanh.pop %v986
    %991 = vrot.lane.b32.xlu0 %v987, 64
    %v992 = vpop.permute.xlu0 %991
    %993 = vrot.lane.b32.xlu0 %v988, 64
    %v994 = vpop.permute.xlu0 %993
    %v997 = vmul.f32 %v926, %v992
    %v998 = vmul.f32 %v956, %v994
    %v1001 = vrot.slane %v997, 4
    %v1002 = vrot.slane %v998, 3
    %v1003 = vsel %vm289, %v1002, %v1001
    %v1004 = vsel %vm118, %v1003, 0
    %1006 = vmatpush.msra.mxu0 0.0
    %1007 = vmatpush.msra.mxu0 0.0
    %1008 = vmatpush.msra.mxu0 0.0
    %1009 = vmatpush.msra.mxu0 0.0
    %1010 = vmatpush.msra.mxu0 0.0
    %1011 = vmatpush.msra.mxu0 0.0
    %1012 = vmatpush.msra.mxu0 0.0
    %1013 = vmatpush.msra.mxu0 0.0
    %1014 = vmatpush.msra.mxu0 %v116
    %1015 = vmatpush.msra.mxu0 %v114
    %1016 = vmatpush.msra.mxu0 %v112
    %1017 = vmatpush.msra.mxu0 %v110
    %1018 = vmatpush.msra.mxu0 %v108
    %1019 = vmatpush.msra.mxu0 %v106
    %1020 = vmatpush.msra.mxu0 %v104
    %1021 = vmatpush.msra.mxu0 %v102
    %1022 = vmatmul.f32.gmra.mxu0 %v1004
    %v1023 = vpop.f32.mrf.mxu0
    %v1024 = vadd.f32 0.0, %v1023
    %1025 = vdwg.mxu0
    %1026 = vmatpush.msra.mxu0 0.0
    %1027 = vmatpush.msra.mxu0 0.0
    %1028 = vmatpush.msra.mxu0 0.0
    %1029 = vmatpush.msra.mxu0 0.0
    %1030 = vmatpush.msra.mxu0 0.0
    %1031 = vmatpush.msra.mxu0 0.0
    %1032 = vmatpush.msra.mxu0 0.0
    %1033 = vmatpush.msra.mxu0 0.0
    %1034 = vmatpush.msra.mxu0 %v117
    %1035 = vmatpush.msra.mxu0 %v115
    %1036 = vmatpush.msra.mxu0 %v113
    %1037 = vmatpush.msra.mxu0 %v111
    %1038 = vmatpush.msra.mxu0 %v109
    %1039 = vmatpush.msra.mxu0 %v107
    %1040 = vmatpush.msra.mxu0 %v105
    %1041 = vmatpush.msra.mxu0 %v103
    %1042 = vmatmul.f32.gmra.mxu0 %v1004
    %v1043 = vpop.f32.mrf.mxu0
    %v1044 = vadd.f32 0.0, %v1043
    %1045 = vdwg.mxu0
    %v1048 = vrot.slane %v1024, 3
    %v1049 = vrot.slane %v1044, 3
    %v1050 = vrot.slane %v1024, 4
    %v1051 = vrot.slane %v1044, 4
    %v1056 = vadd.f32 %v74, %v1048
    %v1057 = vadd.f32 %v97, %v1049
    %v1058 = vadd.f32 %v77, %v1050
    %v1059 = vadd.f32 %v100, %v1051
    %v1060 = vxor.u32 %v1056, 2147483648
    %v1061 = vxor.u32 %v1057, 2147483648
    %v1062 = vxor.u32 %v1058, 2147483648
    %v1063 = vxor.u32 %v1059, 2147483648
    %v1064 = vmul.f32 %v1060, 1.442695
    %v1065 = vpow.pop %v1064
    %v1066 = vmul.f32 %v1061, 1.442695
    %v1067 = vpow.pop %v1066
    %v1068 = vmul.f32 %v1062, 1.442695
    %v1069 = vpow.pop %v1068
    %v1070 = vmul.f32 %v1063, 1.442695
    %v1071 = vpow.pop %v1070
    %v1072 = vadd.f32 %v1065, 1.0
    %v1073 = vadd.f32 %v1067, 1.0
    %v1074 = vadd.f32 %v1069, 1.0
    %v1075 = vadd.f32 %v1071, 1.0
    %v1076 = vrcp.pop %v1072
    %v1077 = vmul.f32 %v1072, %v1076
    %v1078 = vsub.f32 1.0, %v1077
    %v1079 = vmul.f32 %v1076, %v1078
    %v1080 = vadd.f32 %v1076, %v1079
    %vm1081 = vweird.f32 %v1072
    %vm1082 = vweird.f32 %v1076
    %vm1083 = vmor %vm1081, %vm1082
    %v1084 = vsel %vm1083, %v1076, %v1080
    %v1085 = vand.u32 2147483647, %v1072
    %vm1086 = vcmp.eq.f32.partialorder %v1085, 8.507059e+37
    %v1087 = vand.u32 %v1072, 2147483648
    %v1088 = vor.u32 1.1754944e-38, %v1087
    %v1089 = vsel %vm1086, %v1088, %v1084
    %v1090 = vmul.f32 1.0, %v1089
    %v1091 = vrcp.pop %v1073
    %v1092 = vmul.f32 %v1073, %v1091
    %v1093 = vsub.f32 1.0, %v1092
    %v1094 = vmul.f32 %v1091, %v1093
    %v1095 = vadd.f32 %v1091, %v1094
    %vm1096 = vweird.f32 %v1073
    %vm1097 = vweird.f32 %v1091
    %vm1098 = vmor %vm1096, %vm1097
    %v1099 = vsel %vm1098, %v1091, %v1095
    %v1100 = vand.u32 2147483647, %v1073
    %vm1101 = vcmp.eq.f32.partialorder %v1100, 8.507059e+37
    %v1102 = vand.u32 %v1073, 2147483648
    %v1103 = vor.u32 1.1754944e-38, %v1102
    %v1104 = vsel %vm1101, %v1103, %v1099
    %v1105 = vmul.f32 1.0, %v1104
    %v1106 = vrcp.pop %v1074
    %v1107 = vmul.f32 %v1074, %v1106
    %v1108 = vsub.f32 1.0, %v1107
    %v1109 = vmul.f32 %v1106, %v1108
    %v1110 = vadd.f32 %v1106, %v1109
    %vm1111 = vweird.f32 %v1074
    %vm1112 = vweird.f32 %v1106
    %vm1113 = vmor %vm1111, %vm1112
    %v1114 = vsel %vm1113, %v1106, %v1110
    %v1115 = vand.u32 2147483647, %v1074
    %vm1116 = vcmp.eq.f32.partialorder %v1115, 8.507059e+37
    %v1117 = vand.u32 %v1074, 2147483648
    %v1118 = vor.u32 1.1754944e-38, %v1117
    %v1119 = vsel %vm1116, %v1118, %v1114
    %v1120 = vmul.f32 1.0, %v1119
    %v1121 = vrcp.pop %v1075
    %v1122 = vmul.f32 %v1075, %v1121
    %v1123 = vsub.f32 1.0, %v1122
    %v1124 = vmul.f32 %v1121, %v1123
    %v1125 = vadd.f32 %v1121, %v1124
    %vm1126 = vweird.f32 %v1075
    %vm1127 = vweird.f32 %v1121
    %vm1128 = vmor %vm1126, %vm1127
    %v1129 = vsel %vm1128, %v1121, %v1125
    %v1130 = vand.u32 2147483647, %v1075
    %vm1131 = vcmp.eq.f32.partialorder %v1130, 8.507059e+37
    %v1132 = vand.u32 %v1075, 2147483648
    %v1133 = vor.u32 1.1754944e-38, %v1132
    %v1134 = vsel %vm1131, %v1133, %v1129
    %v1135 = vmul.f32 1.0, %v1134
    %v1136 = vtanh.pop %v1057
    %v1137 = vtanh.pop %v1059
    %v1140 = vrot.slane %v985, 7
    %v1141 = vrot.slane %v986, 7
    %v1144 = vmul.f32 %v1090, %v1140
    %v1145 = vmul.f32 %v1120, %v1141
    %1148 = vrot.lane.b32.xlu0 %v1136, 64
    %v1149 = vpop.permute.xlu0 %1148
    %1150 = vrot.lane.b32.xlu0 %v1137, 64
    %v1151 = vpop.permute.xlu0 %1150
    %v1154 = vmul.f32 %v1090, %v1149
    %v1155 = vmul.f32 %v1120, %v1151
    %1158 = vrot.lane.b32.xlu0 %v1154, 64
    %v1159 = vpop.permute.xlu0 %1158
    %1160 = vrot.lane.b32.xlu0 %v1155, 64
    %v1161 = vpop.permute.xlu0 %1160
    %v1164 = vadd.f32 %v1144, %v1159
    %v1165 = vadd.f32 %v1145, %v1161
    %v1166 = vtanh.pop %v1164
    %v1167 = vtanh.pop %v1165
    %1170 = vrot.lane.b32.xlu0 %v1166, 64
    %v1171 = vpop.permute.xlu0 %1170
    %1172 = vrot.lane.b32.xlu0 %v1167, 64
    %v1173 = vpop.permute.xlu0 %1172
    %v1176 = vmul.f32 %v1105, %v1171
    %v1177 = vmul.f32 %v1135, %v1173
    %v1180 = vrot.slane %v1176, 5
    %v1181 = vrot.slane %v1177, 4
    %v1182 = vsel %vm289, %v1181, %v1180
    %v1183 = vsel %vm118, %v1182, 0
    %1185 = vmatpush.msra.mxu0 0.0
    %1186 = vmatpush.msra.mxu0 0.0
    %1187 = vmatpush.msra.mxu0 0.0
    %1188 = vmatpush.msra.mxu0 0.0
    %1189 = vmatpush.msra.mxu0 0.0
    %1190 = vmatpush.msra.mxu0 0.0
    %1191 = vmatpush.msra.mxu0 0.0
    %1192 = vmatpush.msra.mxu0 0.0
    %1193 = vmatpush.msra.mxu0 %v116
    %1194 = vmatpush.msra.mxu0 %v114
    %1195 = vmatpush.msra.mxu0 %v112
    %1196 = vmatpush.msra.mxu0 %v110
    %1197 = vmatpush.msra.mxu0 %v108
    %1198 = vmatpush.msra.mxu0 %v106
    %1199 = vmatpush.msra.mxu0 %v104
    %1200 = vmatpush.msra.mxu0 %v102
    %1201 = vmatmul.f32.gmra.mxu0 %v1183
    %v1202 = vpop.f32.mrf.mxu0
    %v1203 = vadd.f32 0.0, %v1202
    %1204 = vdwg.mxu0
    %1205 = vmatpush.msra.mxu0 0.0
    %1206 = vmatpush.msra.mxu0 0.0
    %1207 = vmatpush.msra.mxu0 0.0
    %1208 = vmatpush.msra.mxu0 0.0
    %1209 = vmatpush.msra.mxu0 0.0
    %1210 = vmatpush.msra.mxu0 0.0
    %1211 = vmatpush.msra.mxu0 0.0
    %1212 = vmatpush.msra.mxu0 0.0
    %1213 = vmatpush.msra.mxu0 %v117
    %1214 = vmatpush.msra.mxu0 %v115
    %1215 = vmatpush.msra.mxu0 %v113
    %1216 = vmatpush.msra.mxu0 %v111
    %1217 = vmatpush.msra.mxu0 %v109
    %1218 = vmatpush.msra.mxu0 %v107
    %1219 = vmatpush.msra.mxu0 %v105
    %1220 = vmatpush.msra.mxu0 %v103
    %1221 = vmatmul.f32.gmra.mxu0 %v1183
    %v1222 = vpop.f32.mrf.mxu0
    %v1223 = vadd.f32 0.0, %v1222
    %1224 = vdwg.mxu0
    %v1227 = vrot.slane %v1203, 2
    %v1228 = vrot.slane %v1223, 2
    %v1229 = vrot.slane %v1203, 3
    %v1230 = vrot.slane %v1223, 3
    %v1235 = vadd.f32 %v74, %v1227
    %v1236 = vadd.f32 %v97, %v1228
    %v1237 = vadd.f32 %v77, %v1229
    %v1238 = vadd.f32 %v100, %v1230
    %v1239 = vxor.u32 %v1235, 2147483648
    %v1240 = vxor.u32 %v1236, 2147483648
    %v1241 = vxor.u32 %v1237, 2147483648
    %v1242 = vxor.u32 %v1238, 2147483648
    %v1243 = vmul.f32 %v1239, 1.442695
    %v1244 = vpow.pop %v1243
    %v1245 = vmul.f32 %v1240, 1.442695
    %v1246 = vpow.pop %v1245
    %v1247 = vmul.f32 %v1241, 1.442695
    %v1248 = vpow.pop %v1247
    %v1249 = vmul.f32 %v1242, 1.442695
    %v1250 = vpow.pop %v1249
    %v1251 = vadd.f32 %v1244, 1.0
    %v1252 = vadd.f32 %v1246, 1.0
    %v1253 = vadd.f32 %v1248, 1.0
    %v1254 = vadd.f32 %v1250, 1.0
    %v1255 = vrcp.pop %v1251
    %v1256 = vmul.f32 %v1251, %v1255
    %v1257 = vsub.f32 1.0, %v1256
    %v1258 = vmul.f32 %v1255, %v1257
    %v1259 = vadd.f32 %v1255, %v1258
    %vm1260 = vweird.f32 %v1251
    %vm1261 = vweird.f32 %v1255
    %vm1262 = vmor %vm1260, %vm1261
    %v1263 = vsel %vm1262, %v1255, %v1259
    %v1264 = vand.u32 2147483647, %v1251
    %vm1265 = vcmp.eq.f32.partialorder %v1264, 8.507059e+37
    %v1266 = vand.u32 %v1251, 2147483648
    %v1267 = vor.u32 1.1754944e-38, %v1266
    %v1268 = vsel %vm1265, %v1267, %v1263
    %v1269 = vmul.f32 1.0, %v1268
    %v1270 = vrcp.pop %v1252
    %v1271 = vmul.f32 %v1252, %v1270
    %v1272 = vsub.f32 1.0, %v1271
    %v1273 = vmul.f32 %v1270, %v1272
    %v1274 = vadd.f32 %v1270, %v1273
    %vm1275 = vweird.f32 %v1252
    %vm1276 = vweird.f32 %v1270
    %vm1277 = vmor %vm1275, %vm1276
    %v1278 = vsel %vm1277, %v1270, %v1274
    %v1279 = vand.u32 2147483647, %v1252
    %vm1280 = vcmp.eq.f32.partialorder %v1279, 8.507059e+37
    %v1281 = vand.u32 %v1252, 2147483648
    %v1282 = vor.u32 1.1754944e-38, %v1281
    %v1283 = vsel %vm1280, %v1282, %v1278
    %v1284 = vmul.f32 1.0, %v1283
    %v1285 = vrcp.pop %v1253
    %v1286 = vmul.f32 %v1253, %v1285
    %v1287 = vsub.f32 1.0, %v1286
    %v1288 = vmul.f32 %v1285, %v1287
    %v1289 = vadd.f32 %v1285, %v1288
    %vm1290 = vweird.f32 %v1253
    %vm1291 = vweird.f32 %v1285
    %vm1292 = vmor %vm1290, %vm1291
    %v1293 = vsel %vm1292, %v1285, %v1289
    %v1294 = vand.u32 2147483647, %v1253
    %vm1295 = vcmp.eq.f32.partialorder %v1294, 8.507059e+37
    %v1296 = vand.u32 %v1253, 2147483648
    %v1297 = vor.u32 1.1754944e-38, %v1296
    %v1298 = vsel %vm1295, %v1297, %v1293
    %v1299 = vmul.f32 1.0, %v1298
    %v1300 = vrcp.pop %v1254
    %v1301 = vmul.f32 %v1254, %v1300
    %v1302 = vsub.f32 1.0, %v1301
    %v1303 = vmul.f32 %v1300, %v1302
    %v1304 = vadd.f32 %v1300, %v1303
    %vm1305 = vweird.f32 %v1254
    %vm1306 = vweird.f32 %v1300
    %vm1307 = vmor %vm1305, %vm1306
    %v1308 = vsel %vm1307, %v1300, %v1304
    %v1309 = vand.u32 2147483647, %v1254
    %vm1310 = vcmp.eq.f32.partialorder %v1309, 8.507059e+37
    %v1311 = vand.u32 %v1254, 2147483648
    %v1312 = vor.u32 1.1754944e-38, %v1311
    %v1313 = vsel %vm1310, %v1312, %v1308
    %v1314 = vmul.f32 1.0, %v1313
    %v1315 = vtanh.pop %v1236
    %v1316 = vtanh.pop %v1238
    %v1319 = vrot.slane %v1164, 7
    %v1320 = vrot.slane %v1165, 7
    %v1323 = vmul.f32 %v1269, %v1319
    %v1324 = vmul.f32 %v1299, %v1320
    %1327 = vrot.lane.b32.xlu0 %v1315, 64
    %v1328 = vpop.permute.xlu0 %1327
    %1329 = vrot.lane.b32.xlu0 %v1316, 64
    %v1330 = vpop.permute.xlu0 %1329
    %v1333 = vmul.f32 %v1269, %v1328
    %v1334 = vmul.f32 %v1299, %v1330
    %1337 = vrot.lane.b32.xlu0 %v1333, 64
    %v1338 = vpop.permute.xlu0 %1337
    %1339 = vrot.lane.b32.xlu0 %v1334, 64
    %v1340 = vpop.permute.xlu0 %1339
    %v1343 = vadd.f32 %v1323, %v1338
    %v1344 = vadd.f32 %v1324, %v1340
    %v1345 = vtanh.pop %v1343
    %v1346 = vtanh.pop %v1344
    %1349 = vrot.lane.b32.xlu0 %v1345, 64
    %v1350 = vpop.permute.xlu0 %1349
    %1351 = vrot.lane.b32.xlu0 %v1346, 64
    %v1352 = vpop.permute.xlu0 %1351
    %v1355 = vmul.f32 %v1284, %v1350
    %v1356 = vmul.f32 %v1314, %v1352
    %v1359 = vrot.slane %v1355, 6
    %v1360 = vrot.slane %v1356, 5
    %v1361 = vsel %vm289, %v1360, %v1359
    %v1362 = vsel %vm118, %v1361, 0
    %1364 = vmatpush.msra.mxu0 0.0
    %1365 = vmatpush.msra.mxu0 0.0
    %1366 = vmatpush.msra.mxu0 0.0
    %1367 = vmatpush.msra.mxu0 0.0
    %1368 = vmatpush.msra.mxu0 0.0
    %1369 = vmatpush.msra.mxu0 0.0
    %1370 = vmatpush.msra.mxu0 0.0
    %1371 = vmatpush.msra.mxu0 0.0
    %1372 = vmatpush.msra.mxu0 %v116
    %1373 = vmatpush.msra.mxu0 %v114
    %1374 = vmatpush.msra.mxu0 %v112
    %1375 = vmatpush.msra.mxu0 %v110
    %1376 = vmatpush.msra.mxu0 %v108
    %1377 = vmatpush.msra.mxu0 %v106
    %1378 = vmatpush.msra.mxu0 %v104
    %1379 = vmatpush.msra.mxu0 %v102
    %1380 = vmatmul.f32.gmra.mxu0 %v1362
    %v1381 = vpop.f32.mrf.mxu0
    %v1382 = vadd.f32 0.0, %v1381
    %1383 = vdwg.mxu0
    %1384 = vmatpush.msra.mxu0 0.0
    %1385 = vmatpush.msra.mxu0 0.0
    %1386 = vmatpush.msra.mxu0 0.0
    %1387 = vmatpush.msra.mxu0 0.0
    %1388 = vmatpush.msra.mxu0 0.0
    %1389 = vmatpush.msra.mxu0 0.0
    %1390 = vmatpush.msra.mxu0 0.0
    %1391 = vmatpush.msra.mxu0 0.0
    %1392 = vmatpush.msra.mxu0 %v117
    %1393 = vmatpush.msra.mxu0 %v115
    %1394 = vmatpush.msra.mxu0 %v113
    %1395 = vmatpush.msra.mxu0 %v111
    %1396 = vmatpush.msra.mxu0 %v109
    %1397 = vmatpush.msra.mxu0 %v107
    %1398 = vmatpush.msra.mxu0 %v105
    %1399 = vmatpush.msra.mxu0 %v103
    %1400 = vmatmul.f32.gmra.mxu0 %v1362
    %v1401 = vpop.f32.mrf.mxu0
    %v1402 = vadd.f32 0.0, %v1401
    %1403 = vdwg.mxu0
    %v1406 = vrot.slane %v1382, 1
    %v1407 = vrot.slane %v1402, 1
    %v1408 = vrot.slane %v1382, 2
    %v1409 = vrot.slane %v1402, 2
    %v1414 = vadd.f32 %v74, %v1406
    %v1415 = vadd.f32 %v97, %v1407
    %v1416 = vadd.f32 %v77, %v1408
    %v1417 = vadd.f32 %v100, %v1409
    %v1418 = vxor.u32 %v1414, 2147483648
    %v1419 = vxor.u32 %v1415, 2147483648
    %v1420 = vxor.u32 %v1416, 2147483648
    %v1421 = vxor.u32 %v1417, 2147483648
    %v1422 = vmul.f32 %v1418, 1.442695
    %v1423 = vpow.pop %v1422
    %v1424 = vmul.f32 %v1419, 1.442695
    %v1425 = vpow.pop %v1424
    %v1426 = vmul.f32 %v1420, 1.442695
    %v1427 = vpow.pop %v1426
    %v1428 = vmul.f32 %v1421, 1.442695
    %v1429 = vpow.pop %v1428
    %v1430 = vadd.f32 %v1423, 1.0
    %v1431 = vadd.f32 %v1425, 1.0
    %v1432 = vadd.f32 %v1427, 1.0
    %v1433 = vadd.f32 %v1429, 1.0
    %v1434 = vrcp.pop %v1430
    %v1435 = vmul.f32 %v1430, %v1434
    %v1436 = vsub.f32 1.0, %v1435
    %v1437 = vmul.f32 %v1434, %v1436
    %v1438 = vadd.f32 %v1434, %v1437
    %vm1439 = vweird.f32 %v1430
    %vm1440 = vweird.f32 %v1434
    %vm1441 = vmor %vm1439, %vm1440
    %v1442 = vsel %vm1441, %v1434, %v1438
    %v1443 = vand.u32 2147483647, %v1430
    %vm1444 = vcmp.eq.f32.partialorder %v1443, 8.507059e+37
    %v1445 = vand.u32 %v1430, 2147483648
    %v1446 = vor.u32 1.1754944e-38, %v1445
    %v1447 = vsel %vm1444, %v1446, %v1442
    %v1448 = vmul.f32 1.0, %v1447
    %v1449 = vrcp.pop %v1431
    %v1450 = vmul.f32 %v1431, %v1449
    %v1451 = vsub.f32 1.0, %v1450
    %v1452 = vmul.f32 %v1449, %v1451
    %v1453 = vadd.f32 %v1449, %v1452
    %vm1454 = vweird.f32 %v1431
    %vm1455 = vweird.f32 %v1449
    %vm1456 = vmor %vm1454, %vm1455
    %v1457 = vsel %vm1456, %v1449, %v1453
    %v1458 = vand.u32 2147483647, %v1431
    %vm1459 = vcmp.eq.f32.partialorder %v1458, 8.507059e+37
    %v1460 = vand.u32 %v1431, 2147483648
    %v1461 = vor.u32 1.1754944e-38, %v1460
    %v1462 = vsel %vm1459, %v1461, %v1457
    %v1463 = vmul.f32 1.0, %v1462
    %v1464 = vrcp.pop %v1432
    %v1465 = vmul.f32 %v1432, %v1464
    %v1466 = vsub.f32 1.0, %v1465
    %v1467 = vmul.f32 %v1464, %v1466
    %v1468 = vadd.f32 %v1464, %v1467
    %vm1469 = vweird.f32 %v1432
    %vm1470 = vweird.f32 %v1464
    %vm1471 = vmor %vm1469, %vm1470
    %v1472 = vsel %vm1471, %v1464, %v1468
    %v1473 = vand.u32 2147483647, %v1432
    %vm1474 = vcmp.eq.f32.partialorder %v1473, 8.507059e+37
    %v1475 = vand.u32 %v1432, 2147483648
    %v1476 = vor.u32 1.1754944e-38, %v1475
    %v1477 = vsel %vm1474, %v1476, %v1472
    %v1478 = vmul.f32 1.0, %v1477
    %v1479 = vrcp.pop %v1433
    %v1480 = vmul.f32 %v1433, %v1479
    %v1481 = vsub.f32 1.0, %v1480
    %v1482 = vmul.f32 %v1479, %v1481
    %v1483 = vadd.f32 %v1479, %v1482
    %vm1484 = vweird.f32 %v1433
    %vm1485 = vweird.f32 %v1479
    %vm1486 = vmor %vm1484, %vm1485
    %v1487 = vsel %vm1486, %v1479, %v1483
    %v1488 = vand.u32 2147483647, %v1433
    %vm1489 = vcmp.eq.f32.partialorder %v1488, 8.507059e+37
    %v1490 = vand.u32 %v1433, 2147483648
    %v1491 = vor.u32 1.1754944e-38, %v1490
    %v1492 = vsel %vm1489, %v1491, %v1487
    %v1493 = vmul.f32 1.0, %v1492
    %v1494 = vtanh.pop %v1415
    %v1495 = vtanh.pop %v1417
    %v1498 = vrot.slane %v1343, 7
    %v1499 = vrot.slane %v1344, 7
    %v1502 = vmul.f32 %v1448, %v1498
    %v1503 = vmul.f32 %v1478, %v1499
    %1506 = vrot.lane.b32.xlu0 %v1494, 64
    %v1507 = vpop.permute.xlu0 %1506
    %1508 = vrot.lane.b32.xlu0 %v1495, 64
    %v1509 = vpop.permute.xlu0 %1508
    %v1512 = vmul.f32 %v1448, %v1507
    %v1513 = vmul.f32 %v1478, %v1509
    %1516 = vrot.lane.b32.xlu0 %v1512, 64
    %v1517 = vpop.permute.xlu0 %1516
    %1518 = vrot.lane.b32.xlu0 %v1513, 64
    %v1519 = vpop.permute.xlu0 %1518
    %v1522 = vadd.f32 %v1502, %v1517
    %v1523 = vadd.f32 %v1503, %v1519
    %v1524 = vtanh.pop %v1522
    %v1525 = vtanh.pop %v1523
    %1528 = vrot.lane.b32.xlu0 %v1524, 64
    %v1529 = vpop.permute.xlu0 %1528
    %1530 = vrot.lane.b32.xlu0 %v1525, 64
    %v1531 = vpop.permute.xlu0 %1530
    %v1534 = vmul.f32 %v1463, %v1529
    %v1535 = vmul.f32 %v1493, %v1531
    %v1539 = vrot.slane %v1534, 7
    %v1540 = vrot.slane %v1535, 6
    %v1541 = vsel %vm289, %v1540, %v1539
    %1542 = vrot.lane.b32.xlu0 %v1541, 64
    %v1543 = vpop.permute.xlu0 %1542
    %v1545 = vsel %vm118, %v290, %v1543
    %v1546 = vrot.slane %v462, 7
    %vm1547 = vcmask 1042434
    %v1548 = vsel %vm1547, %v1546, %v461
    %v1550 = vrot.slane %v1355, 5
    %v1551 = vrot.slane %v1356, 4
    %v1552 = vsel %vm1547, %v1551, %v1550
    %1553 = vrot.lane.b32.xlu0 %v1552, 64
    %v1554 = vpop.permute.xlu0 %1553
    %v1556 = vsel %vm118, %v1548, %v1554
    %v1557 = vrot.slane %v640, 7
    %vm1558 = vcmask 1043459
    %v1559 = vsel %vm1558, %v1557, %v639
    %v1561 = vrot.slane %v1176, 3
    %v1562 = vrot.slane %v1177, 2
    %v1563 = vsel %vm1558, %v1562, %v1561
    %1564 = vrot.lane.b32.xlu0 %v1563, 64
    %v1565 = vpop.permute.xlu0 %1564
    %v1567 = vsel %vm118, %v1559, %v1565
    %v1568 = vrot.slane %v819, 7
    %vm1569 = vcmask 1044484
    %v1570 = vsel %vm1569, %v1568, %v818
    %v1572 = vrot.slane %v997, 1
    %v1573 = vsel %vm1569, %v998, %v1572
    %1574 = vrot.lane.b32.xlu0 %v1573, 64
    %v1575 = vpop.permute.xlu0 %1574
    %v1577 = vsel %vm118, %v1570, %v1575
    %v1578 = vrot.slane %v998, 7
    %vm1579 = vcmask 1045509
    %v1580 = vsel %vm1579, %v1578, %v997
    %v1582 = vrot.slane %v818, 7
    %v1583 = vrot.slane %v819, 6
    %v1584 = vsel %vm1579, %v1583, %v1582
    %1585 = vrot.lane.b32.xlu0 %v1584, 64
    %v1586 = vpop.permute.xlu0 %1585
    %v1588 = vsel %vm118, %v1580, %v1586
    %v1589 = vrot.slane %v1177, 7
    %vm1590 = vcmask 1046534
    %v1591 = vsel %vm1590, %v1589, %v1176
    %v1593 = vrot.slane %v639, 5
    %v1594 = vrot.slane %v640, 4
    %v1595 = vsel %vm1590, %v1594, %v1593
    %1596 = vrot.lane.b32.xlu0 %v1595, 64
    %v1597 = vpop.permute.xlu0 %1596
    %v1599 = vsel %vm118, %v1591, %v1597
    %v1600 = vrot.slane %v1356, 7
    %vm1601 = vcmask 1047559
    %v1602 = vsel %vm1601, %v1600, %v1355
    %v1604 = vrot.slane %v461, 3
    %v1605 = vrot.slane %v462, 2
    %v1606 = vsel %vm1601, %v1605, %v1604
    %1607 = vrot.lane.b32.xlu0 %v1606, 64
    %v1608 = vpop.permute.xlu0 %1607
    %v1610 = vsel %vm118, %v1602, %v1608
    %v1611 = vrot.slane %v1535, 7
    %v1614 = vrot.slane %v284, 1
    %1615 = vrot.lane.b32.xlu0 %v1614, 64
    %v1616 = vpop.permute.xlu0 %1615
    %1617 = vrot.lane.b32.xlu0 %v285, 64
    %v1618 = vpop.permute.xlu0 %1617
    %v1621 = vsel %vm118, %v1534, %v1616
    %v1622 = vsel %vm118, %v1611, %v1618
    %v1624 = vrot.slane %v1545, 1
    %1627 = vst [vmem:[#allocation1] sm:$0xff] %v1556
    %s1628 = scalar_lea.vmem [#allocation1], 1
    %v1629 = vld [vmem:[%s1628] ss:$9 sm:$0xff]
    %s1630 = scalar_lea.vmem [#allocation1], 2
    %v1631 = vld [vmem:[%s1630] ss:$9 sm:$0xff]
    %1633 = vst [vmem:[#allocation1] sm:$0xff] %v1567
    %s1634 = scalar_lea.vmem [#allocation1], 2
    %v1635 = vld [vmem:[%s1634] ss:$9 sm:$0xff]
    %s1636 = scalar_lea.vmem [#allocation1], 3
    %v1637 = vld [vmem:[%s1636] ss:$9 sm:$0xff]
    %1639 = vst [vmem:[#allocation1] sm:$0xff] %v1577
    %s1640 = scalar_lea.vmem [#allocation1], 3
    %v1641 = vld [vmem:[%s1640] ss:$9 sm:$0xff]
    %s1642 = scalar_lea.vmem [#allocation1], 4
    %v1643 = vld [vmem:[%s1642] ss:$9 sm:$0xff]
    %1645 = vst [vmem:[#allocation1] sm:$0xff] %v1588
    %s1646 = scalar_lea.vmem [#allocation1], 4
    %v1647 = vld [vmem:[%s1646] ss:$9 sm:$0xff]
    %s1648 = scalar_lea.vmem [#allocation1], 5
    %v1649 = vld [vmem:[%s1648] ss:$9 sm:$0xff]
    %1651 = vst [vmem:[#allocation1] sm:$0xff] %v1599
    %s1652 = scalar_lea.vmem [#allocation1], 5
    %v1653 = vld [vmem:[%s1652] ss:$9 sm:$0xff]
    %s1654 = scalar_lea.vmem [#allocation1], 6
    %v1655 = vld [vmem:[%s1654] ss:$9 sm:$0xff]
    %1657 = vst [vmem:[#allocation1] sm:$0xff] %v1610
    %s1658 = scalar_lea.vmem [#allocation1], 6
    %v1659 = vld [vmem:[%s1658] ss:$9 sm:$0xff]
    %s1660 = scalar_lea.vmem [#allocation1], 7
    %v1661 = vld [vmem:[%s1660] ss:$9 sm:$0xff]
    %1664 = vst [vmem:[#allocation1] sm:$0xff] %v1621
    %s1665 = scalar_lea.vmem [#allocation1], 7
    %v1666 = vld [vmem:[%s1665] ss:$9 sm:$0xff]
    %1667 = vst [vmem:[#allocation1] sm:$0xff] %v1622
    %v1668 = vld [vmem:[#allocation1] ss:$9 sm:$0xff]
    %v1669 = vperm.slane %v1629, 0
    %v1670 = vperm.slane %v1631, 0
    %v1673 = vperm.slane %v1635, 0
    %v1674 = vperm.slane %v1637, 0
    %v1677 = vperm.slane %v1641, 0
    %v1678 = vperm.slane %v1643, 0
    %v1681 = vperm.slane %v1647, 0
    %v1682 = vperm.slane %v1649, 0
    %v1685 = vperm.slane %v1653, 0
    %v1686 = vperm.slane %v1655, 0
    %v1689 = vperm.slane %v1659, 0
    %v1690 = vperm.slane %v1661, 0
    %v1693 = vperm.slane %v1666, 0
    %v1694 = vperm.slane %v1668, 0
    %vm1697 = vcmask 1040384
    %v1698 = vsel %vm1697, %v1545, %v1669
    %v1699 = vsel %vm1697, %v1624, %v1670
    %vm1700 = vcmask 1041408
    %v1701 = vsel %vm1700, %v1698, %v1673
    %v1702 = vsel %vm1700, %v1699, %v1674
    %vm1703 = vcmask 1042432
    %v1704 = vsel %vm1703, %v1701, %v1677
    %v1705 = vsel %vm1703, %v1702, %v1678
    %vm1706 = vcmask 1043456
    %v1707 = vsel %vm1706, %v1704, %v1681
    %v1708 = vsel %vm1706, %v1705, %v1682
    %vm1709 = vcmask 1044480
    %v1710 = vsel %vm1709, %v1707, %v1685
    %v1711 = vsel %vm1709, %v1708, %v1686
    %vm1712 = vcmask 1045504
    %v1713 = vsel %vm1712, %v1710, %v1689
    %v1714 = vsel %vm1712, %v1711, %v1690
    %vm1715 = vcmask 1046528
    %v1716 = vsel %vm1715, %v1713, %v1693
    %v1717 = vsel %vm1715, %v1714, %v1694
    %v1718 = vld [vmem:[%s4] sm:$0xff]
    %v1719 = vld [vmem:[%s4 + $0x8] sm:$0xff]
    %v1720 = vld [vmem:[%s4 + $0x10] sm:$0xff]
    %v1721 = vld [vmem:[%s4 + $0x18] sm:$0xff]
    %v1722 = vld [vmem:[%s4 + $0x20] sm:$0xff]
    %v1723 = vld [vmem:[%s4 + $0x28] sm:$0xff]
    %v1724 = vld [vmem:[%s4 + $0x30] sm:$0xff]
    %v1725 = vld [vmem:[%s4 + $0x38] sm:$0xff]
    %v1726 = vld [vmem:[%s4 + $0x40] sm:$0xff]
    %v1727 = vld [vmem:[%s4 + $0x48] sm:$0xff]
    %v1728 = vld [vmem:[%s4 + $0x50] sm:$0xff]
    %v1729 = vld [vmem:[%s4 + $0x58] sm:$0xff]
    %v1730 = vld [vmem:[%s4 + $0x60] sm:$0xff]
    %v1731 = vld [vmem:[%s4 + $0x68] sm:$0xff]
    %v1732 = vld [vmem:[%s4 + $0x70] sm:$0xff]
    %v1733 = vld [vmem:[%s4 + $0x78] sm:$0xff]
    %v1734 = vld [vmem:[%s4 + $0x80] sm:$0xff]
    %v1735 = vld [vmem:[%s4 + $0x88] sm:$0xff]
    %v1736 = vld [vmem:[%s4 + $0x90] sm:$0xff]
    %v1737 = vld [vmem:[%s4 + $0x98] sm:$0xff]
    %v1738 = vld [vmem:[%s4 + $0xa0] sm:$0xff]
    %v1739 = vld [vmem:[%s4 + $0xa8] sm:$0xff]
    %v1740 = vld [vmem:[%s4 + $0xb0] sm:$0xff]
    %v1741 = vld [vmem:[%s4 + $0xb8] sm:$0xff]
    %v1742 = vld [vmem:[%s4 + $0xc0] sm:$0xff]
    %v1743 = vld [vmem:[%s4 + $0xc8] sm:$0xff]
    %v1744 = vld [vmem:[%s4 + $0xd0] sm:$0xff]
    %v1745 = vld [vmem:[%s4 + $0xd8] sm:$0xff]
    %v1746 = vld [vmem:[%s4 + $0xe0] sm:$0xff]
    %v1747 = vld [vmem:[%s4 + $0xe8] sm:$0xff]
    %v1748 = vld [vmem:[%s4 + $0xf0] sm:$0xff]
    %v1749 = vld [vmem:[%s4 + $0xf8] sm:$0xff]
    %v1750 = vld [vmem:[%s5] sm:$0x3]
    %v1752 = vperm.slane %v1750, 0
    %v1753 = vperm.slane %v1750, 1
    %1756 = vmatpush.msra.mxu0 %v1748
    %1757 = vmatpush.msra.mxu0 %v1746
    %1758 = vmatpush.msra.mxu0 %v1744
    %1759 = vmatpush.msra.mxu0 %v1742
    %1760 = vmatpush.msra.mxu0 %v1740
    %1761 = vmatpush.msra.mxu0 %v1738
    %1762 = vmatpush.msra.mxu0 %v1736
    %1763 = vmatpush.msra.mxu0 %v1734
    %1764 = vmatpush.msra.mxu0 %v1732
    %1765 = vmatpush.msra.mxu0 %v1730
    %1766 = vmatpush.msra.mxu0 %v1728
    %1767 = vmatpush.msra.mxu0 %v1726
    %1768 = vmatpush.msra.mxu0 %v1724
    %1769 = vmatpush.msra.mxu0 %v1722
    %1770 = vmatpush.msra.mxu0 %v1720
    %1771 = vmatpush.msra.mxu0 %v1718
    %1772 = vmatmul.f32.gmra.mxu0 %v1716
    %v1773 = vpop.f32.mrf.mxu0
    %v1774 = vadd.f32 %v1752, %v1773
    %1775 = vmatmul.f32.gmra.mxu0 %v1717
    %v1776 = vpop.f32.mrf.mxu0
    %v1777 = vadd.f32 %v1752, %v1776
    %1778 = vdwg.mxu0
    %1779 = vmatpush.msra.mxu0 %v1749
    %1780 = vmatpush.msra.mxu0 %v1747
    %1781 = vmatpush.msra.mxu0 %v1745
    %1782 = vmatpush.msra.mxu0 %v1743
    %1783 = vmatpush.msra.mxu0 %v1741
    %1784 = vmatpush.msra.mxu0 %v1739
    %1785 = vmatpush.msra.mxu0 %v1737
    %1786 = vmatpush.msra.mxu0 %v1735
    %1787 = vmatpush.msra.mxu0 %v1733
    %1788 = vmatpush.msra.mxu0 %v1731
    %1789 = vmatpush.msra.mxu0 %v1729
    %1790 = vmatpush.msra.mxu0 %v1727
    %1791 = vmatpush.msra.mxu0 %v1725
    %1792 = vmatpush.msra.mxu0 %v1723
    %1793 = vmatpush.msra.mxu0 %v1721
    %1794 = vmatpush.msra.mxu0 %v1719
    %1795 = vmatmul.f32.gmra.mxu0 %v1716
    %v1796 = vpop.f32.mrf.mxu0
    %v1797 = vadd.f32 %v1753, %v1796
    %1798 = vmatmul.f32.gmra.mxu0 %v1717
    %v1799 = vpop.f32.mrf.mxu0
    %v1800 = vadd.f32 %v1753, %v1799
    %1801 = vdwg.mxu0
    %v1802 = vld [vmem:[%s6] sm:$0xff]
    %v1803 = vld [vmem:[%s6 + $0x8] sm:$0xff]
    %v1804 = vld [vmem:[%s6 + $0x10] sm:$0xff]
    %v1805 = vld [vmem:[%s6 + $0x18] sm:$0xff]
    %v1806 = vld [vmem:[%s6 + $0x20] sm:$0xff]
    %v1807 = vld [vmem:[%s6 + $0x28] sm:$0xff]
    %v1808 = vld [vmem:[%s6 + $0x30] sm:$0xff]
    %v1809 = vld [vmem:[%s6 + $0x38] sm:$0xff]
    %v1810 = vld [vmem:[%s6 + $0x40] sm:$0xff]
    %v1811 = vld [vmem:[%s6 + $0x48] sm:$0xff]
    %v1812 = vld [vmem:[%s6 + $0x50] sm:$0xff]
    %v1813 = vld [vmem:[%s6 + $0x58] sm:$0xff]
    %v1814 = vld [vmem:[%s6 + $0x60] sm:$0xff]
    %v1815 = vld [vmem:[%s6 + $0x68] sm:$0xff]
    %v1816 = vld [vmem:[%s6 + $0x70] sm:$0xff]
    %v1817 = vld [vmem:[%s6 + $0x78] sm:$0xff]
    %1818 = vmatpush.msra.mxu0 0.0
    %1819 = vmatpush.msra.mxu0 0.0
    %1820 = vmatpush.msra.mxu0 0.0
    %1821 = vmatpush.msra.mxu0 0.0
    %1822 = vmatpush.msra.mxu0 0.0
    %1823 = vmatpush.msra.mxu0 0.0
    %1824 = vmatpush.msra.mxu0 0.0
    %1825 = vmatpush.msra.mxu0 0.0
    %1826 = vmatpush.msra.mxu0 %v1816
    %1827 = vmatpush.msra.mxu0 %v1814
    %1828 = vmatpush.msra.mxu0 %v1812
    %1829 = vmatpush.msra.mxu0 %v1810
    %1830 = vmatpush.msra.mxu0 %v1808
    %1831 = vmatpush.msra.mxu0 %v1806
    %1832 = vmatpush.msra.mxu0 %v1804
    %1833 = vmatpush.msra.mxu0 %v1802
    %1834 = vmatmul.f32.gmra.mxu0 %v120
    %v1835 = vpop.f32.mrf.mxu0
    %v1836 = vadd.f32 0.0, %v1835
    %1837 = vdwg.mxu0
    %1838 = vmatpush.msra.mxu0 0.0
    %1839 = vmatpush.msra.mxu0 0.0
    %1840 = vmatpush.msra.mxu0 0.0
    %1841 = vmatpush.msra.mxu0 0.0
    %1842 = vmatpush.msra.mxu0 0.0
    %1843 = vmatpush.msra.mxu0 0.0
    %1844 = vmatpush.msra.mxu0 0.0
    %1845 = vmatpush.msra.mxu0 0.0
    %1846 = vmatpush.msra.mxu0 %v1817
    %1847 = vmatpush.msra.mxu0 %v1815
    %1848 = vmatpush.msra.mxu0 %v1813
    %1849 = vmatpush.msra.mxu0 %v1811
    %1850 = vmatpush.msra.mxu0 %v1809
    %1851 = vmatpush.msra.mxu0 %v1807
    %1852 = vmatpush.msra.mxu0 %v1805
    %1853 = vmatpush.msra.mxu0 %v1803
    %1854 = vmatmul.f32.gmra.mxu0 %v120
    %v1855 = vpop.f32.mrf.mxu0
    %v1856 = vadd.f32 0.0, %v1855
    %1857 = vdwg.mxu0
    %v1860 = vrot.slane %v1836, 1
    %v1861 = vrot.slane %v1856, 1
    %v1866 = vadd.f32 %v1774, %v1836
    %v1867 = vadd.f32 %v1797, %v1856
    %v1868 = vadd.f32 %v1777, %v1860
    %v1869 = vadd.f32 %v1800, %v1861
    %v1870 = vxor.u32 %v1866, 2147483648
    %v1871 = vxor.u32 %v1867, 2147483648
    %v1872 = vxor.u32 %v1868, 2147483648
    %v1873 = vxor.u32 %v1869, 2147483648
    %v1874 = vmul.f32 %v1870, 1.442695
    %v1875 = vpow.pop %v1874
    %v1876 = vmul.f32 %v1871, 1.442695
    %v1877 = vpow.pop %v1876
    %v1878 = vmul.f32 %v1872, 1.442695
    %v1879 = vpow.pop %v1878
    %v1880 = vmul.f32 %v1873, 1.442695
    %v1881 = vpow.pop %v1880
    %v1882 = vadd.f32 %v1875, 1.0
    %v1883 = vadd.f32 %v1877, 1.0
    %v1884 = vadd.f32 %v1879, 1.0
    %v1885 = vadd.f32 %v1881, 1.0
    %v1886 = vrcp.pop %v1882
    %v1887 = vmul.f32 %v1882, %v1886
    %v1888 = vsub.f32 1.0, %v1887
    %v1889 = vmul.f32 %v1886, %v1888
    %v1890 = vadd.f32 %v1886, %v1889
    %vm1891 = vweird.f32 %v1882
    %vm1892 = vweird.f32 %v1886
    %vm1893 = vmor %vm1891, %vm1892
    %v1894 = vsel %vm1893, %v1886, %v1890
    %v1895 = vand.u32 2147483647, %v1882
    %vm1896 = vcmp.eq.f32.partialorder %v1895, 8.507059e+37
    %v1897 = vand.u32 %v1882, 2147483648
    %v1898 = vor.u32 1.1754944e-38, %v1897
    %v1899 = vsel %vm1896, %v1898, %v1894
    %v1900 = vmul.f32 1.0, %v1899
    %v1901 = vrcp.pop %v1883
    %v1902 = vmul.f32 %v1883, %v1901
    %v1903 = vsub.f32 1.0, %v1902
    %v1904 = vmul.f32 %v1901, %v1903
    %v1905 = vadd.f32 %v1901, %v1904
    %vm1906 = vweird.f32 %v1883
    %vm1907 = vweird.f32 %v1901
    %vm1908 = vmor %vm1906, %vm1907
    %v1909 = vsel %vm1908, %v1901, %v1905
    %v1910 = vand.u32 2147483647, %v1883
    %vm1911 = vcmp.eq.f32.partialorder %v1910, 8.507059e+37
    %v1912 = vand.u32 %v1883, 2147483648
    %v1913 = vor.u32 1.1754944e-38, %v1912
    %v1914 = vsel %vm1911, %v1913, %v1909
    %v1915 = vmul.f32 1.0, %v1914
    %v1916 = vrcp.pop %v1884
    %v1917 = vmul.f32 %v1884, %v1916
    %v1918 = vsub.f32 1.0, %v1917
    %v1919 = vmul.f32 %v1916, %v1918
    %v1920 = vadd.f32 %v1916, %v1919
    %vm1921 = vweird.f32 %v1884
    %vm1922 = vweird.f32 %v1916
    %vm1923 = vmor %vm1921, %vm1922
    %v1924 = vsel %vm1923, %v1916, %v1920
    %v1925 = vand.u32 2147483647, %v1884
    %vm1926 = vcmp.eq.f32.partialorder %v1925, 8.507059e+37
    %v1927 = vand.u32 %v1884, 2147483648
    %v1928 = vor.u32 1.1754944e-38, %v1927
    %v1929 = vsel %vm1926, %v1928, %v1924
    %v1930 = vmul.f32 1.0, %v1929
    %v1931 = vrcp.pop %v1885
    %v1932 = vmul.f32 %v1885, %v1931
    %v1933 = vsub.f32 1.0, %v1932
    %v1934 = vmul.f32 %v1931, %v1933
    %v1935 = vadd.f32 %v1931, %v1934
    %vm1936 = vweird.f32 %v1885
    %vm1937 = vweird.f32 %v1931
    %vm1938 = vmor %vm1936, %vm1937
    %v1939 = vsel %vm1938, %v1931, %v1935
    %v1940 = vand.u32 2147483647, %v1885
    %vm1941 = vcmp.eq.f32.partialorder %v1940, 8.507059e+37
    %v1942 = vand.u32 %v1885, 2147483648
    %v1943 = vor.u32 1.1754944e-38, %v1942
    %v1944 = vsel %vm1941, %v1943, %v1939
    %v1945 = vmul.f32 1.0, %v1944
    %v1946 = vtanh.pop %v1867
    %v1947 = vtanh.pop %v1869
    %v1948 = vmul.f32 %v1900, 0.0
    %v1949 = vmul.f32 %v1930, 0.0
    %1952 = vrot.lane.b32.xlu0 %v1946, 64
    %v1953 = vpop.permute.xlu0 %1952
    %1954 = vrot.lane.b32.xlu0 %v1947, 64
    %v1955 = vpop.permute.xlu0 %1954
    %v1958 = vmul.f32 %v1900, %v1953
    %v1959 = vmul.f32 %v1930, %v1955
    %1962 = vrot.lane.b32.xlu0 %v1958, 64
    %v1963 = vpop.permute.xlu0 %1962
    %1964 = vrot.lane.b32.xlu0 %v1959, 64
    %v1965 = vpop.permute.xlu0 %1964
    %v1968 = vadd.f32 %v1948, %v1963
    %v1969 = vadd.f32 %v1949, %v1965
    %v1970 = vtanh.pop %v1968
    %v1971 = vtanh.pop %v1969
    %1974 = vrot.lane.b32.xlu0 %v1970, 64
    %v1975 = vpop.permute.xlu0 %1974
    %1976 = vrot.lane.b32.xlu0 %v1971, 64
    %v1977 = vpop.permute.xlu0 %1976
    %v1980 = vmul.f32 %v1915, %v1975
    %v1981 = vmul.f32 %v1945, %v1977
    %v1984 = vrot.slane %v1981, 7
    %v1985 = vsel %vm289, %v1984, %v1980
    %v1986 = vsel %vm118, %v1985, 0
    %1988 = vmatpush.msra.mxu0 0.0
    %1989 = vmatpush.msra.mxu0 0.0
    %1990 = vmatpush.msra.mxu0 0.0
    %1991 = vmatpush.msra.mxu0 0.0
    %1992 = vmatpush.msra.mxu0 0.0
    %1993 = vmatpush.msra.mxu0 0.0
    %1994 = vmatpush.msra.mxu0 0.0
    %1995 = vmatpush.msra.mxu0 0.0
    %1996 = vmatpush.msra.mxu0 %v1816
    %1997 = vmatpush.msra.mxu0 %v1814
    %1998 = vmatpush.msra.mxu0 %v1812
    %1999 = vmatpush.msra.mxu0 %v1810
    %2000 = vmatpush.msra.mxu0 %v1808
    %2001 = vmatpush.msra.mxu0 %v1806
    %2002 = vmatpush.msra.mxu0 %v1804
    %2003 = vmatpush.msra.mxu0 %v1802
    %2004 = vmatmul.f32.gmra.mxu0 %v1986
    %v2005 = vpop.f32.mrf.mxu0
    %v2006 = vadd.f32 0.0, %v2005
    %2007 = vdwg.mxu0
    %2008 = vmatpush.msra.mxu0 0.0
    %2009 = vmatpush.msra.mxu0 0.0
    %2010 = vmatpush.msra.mxu0 0.0
    %2011 = vmatpush.msra.mxu0 0.0
    %2012 = vmatpush.msra.mxu0 0.0
    %2013 = vmatpush.msra.mxu0 0.0
    %2014 = vmatpush.msra.mxu0 0.0
    %2015 = vmatpush.msra.mxu0 0.0
    %2016 = vmatpush.msra.mxu0 %v1817
    %2017 = vmatpush.msra.mxu0 %v1815
    %2018 = vmatpush.msra.mxu0 %v1813
    %2019 = vmatpush.msra.mxu0 %v1811
    %2020 = vmatpush.msra.mxu0 %v1809
    %2021 = vmatpush.msra.mxu0 %v1807
    %2022 = vmatpush.msra.mxu0 %v1805
    %2023 = vmatpush.msra.mxu0 %v1803
    %2024 = vmatmul.f32.gmra.mxu0 %v1986
    %v2025 = vpop.f32.mrf.mxu0
    %v2026 = vadd.f32 0.0, %v2025
    %2027 = vdwg.mxu0
    %v2030 = vrot.slane %v2006, 7
    %v2031 = vrot.slane %v2026, 7
    %v2036 = vadd.f32 %v1774, %v2030
    %v2037 = vadd.f32 %v1797, %v2031
    %v2038 = vadd.f32 %v1777, %v2006
    %v2039 = vadd.f32 %v1800, %v2026
    %v2040 = vxor.u32 %v2036, 2147483648
    %v2041 = vxor.u32 %v2037, 2147483648
    %v2042 = vxor.u32 %v2038, 2147483648
    %v2043 = vxor.u32 %v2039, 2147483648
    %v2044 = vmul.f32 %v2040, 1.442695
    %v2045 = vpow.pop %v2044
    %v2046 = vmul.f32 %v2041, 1.442695
    %v2047 = vpow.pop %v2046
    %v2048 = vmul.f32 %v2042, 1.442695
    %v2049 = vpow.pop %v2048
    %v2050 = vmul.f32 %v2043, 1.442695
    %v2051 = vpow.pop %v2050
    %v2052 = vadd.f32 %v2045, 1.0
    %v2053 = vadd.f32 %v2047, 1.0
    %v2054 = vadd.f32 %v2049, 1.0
    %v2055 = vadd.f32 %v2051, 1.0
    %v2056 = vrcp.pop %v2052
    %v2057 = vmul.f32 %v2052, %v2056
    %v2058 = vsub.f32 1.0, %v2057
    %v2059 = vmul.f32 %v2056, %v2058
    %v2060 = vadd.f32 %v2056, %v2059
    %vm2061 = vweird.f32 %v2052
    %vm2062 = vweird.f32 %v2056
    %vm2063 = vmor %vm2061, %vm2062
    %v2064 = vsel %vm2063, %v2056, %v2060
    %v2065 = vand.u32 2147483647, %v2052
    %vm2066 = vcmp.eq.f32.partialorder %v2065, 8.507059e+37
    %v2067 = vand.u32 %v2052, 2147483648
    %v2068 = vor.u32 1.1754944e-38, %v2067
    %v2069 = vsel %vm2066, %v2068, %v2064
    %v2070 = vmul.f32 1.0, %v2069
    %v2071 = vrcp.pop %v2053
    %v2072 = vmul.f32 %v2053, %v2071
    %v2073 = vsub.f32 1.0, %v2072
    %v2074 = vmul.f32 %v2071, %v2073
    %v2075 = vadd.f32 %v2071, %v2074
    %vm2076 = vweird.f32 %v2053
    %vm2077 = vweird.f32 %v2071
    %vm2078 = vmor %vm2076, %vm2077
    %v2079 = vsel %vm2078, %v2071, %v2075
    %v2080 = vand.u32 2147483647, %v2053
    %vm2081 = vcmp.eq.f32.partialorder %v2080, 8.507059e+37
    %v2082 = vand.u32 %v2053, 2147483648
    %v2083 = vor.u32 1.1754944e-38, %v2082
    %v2084 = vsel %vm2081, %v2083, %v2079
    %v2085 = vmul.f32 1.0, %v2084
    %v2086 = vrcp.pop %v2054
    %v2087 = vmul.f32 %v2054, %v2086
    %v2088 = vsub.f32 1.0, %v2087
    %v2089 = vmul.f32 %v2086, %v2088
    %v2090 = vadd.f32 %v2086, %v2089
    %vm2091 = vweird.f32 %v2054
    %vm2092 = vweird.f32 %v2086
    %vm2093 = vmor %vm2091, %vm2092
    %v2094 = vsel %vm2093, %v2086, %v2090
    %v2095 = vand.u32 2147483647, %v2054
    %vm2096 = vcmp.eq.f32.partialorder %v2095, 8.507059e+37
    %v2097 = vand.u32 %v2054, 2147483648
    %v2098 = vor.u32 1.1754944e-38, %v2097
    %v2099 = vsel %vm2096, %v2098, %v2094
    %v2100 = vmul.f32 1.0, %v2099
    %v2101 = vrcp.pop %v2055
    %v2102 = vmul.f32 %v2055, %v2101
    %v2103 = vsub.f32 1.0, %v2102
    %v2104 = vmul.f32 %v2101, %v2103
    %v2105 = vadd.f32 %v2101, %v2104
    %vm2106 = vweird.f32 %v2055
    %vm2107 = vweird.f32 %v2101
    %vm2108 = vmor %vm2106, %vm2107
    %v2109 = vsel %vm2108, %v2101, %v2105
    %v2110 = vand.u32 2147483647, %v2055
    %vm2111 = vcmp.eq.f32.partialorder %v2110, 8.507059e+37
    %v2112 = vand.u32 %v2055, 2147483648
    %v2113 = vor.u32 1.1754944e-38, %v2112
    %v2114 = vsel %vm2111, %v2113, %v2109
    %v2115 = vmul.f32 1.0, %v2114
    %v2116 = vtanh.pop %v2037
    %v2117 = vtanh.pop %v2039
    %v2120 = vrot.slane %v1968, 7
    %v2121 = vrot.slane %v1969, 7
    %v2124 = vmul.f32 %v2070, %v2120
    %v2125 = vmul.f32 %v2100, %v2121
    %2128 = vrot.lane.b32.xlu0 %v2116, 64
    %v2129 = vpop.permute.xlu0 %2128
    %2130 = vrot.lane.b32.xlu0 %v2117, 64
    %v2131 = vpop.permute.xlu0 %2130
    %v2134 = vmul.f32 %v2070, %v2129
    %v2135 = vmul.f32 %v2100, %v2131
    %2138 = vrot.lane.b32.xlu0 %v2134, 64
    %v2139 = vpop.permute.xlu0 %2138
    %2140 = vrot.lane.b32.xlu0 %v2135, 64
    %v2141 = vpop.permute.xlu0 %2140
    %v2144 = vadd.f32 %v2124, %v2139
    %v2145 = vadd.f32 %v2125, %v2141
    %v2146 = vtanh.pop %v2144
    %v2147 = vtanh.pop %v2145
    %2150 = vrot.lane.b32.xlu0 %v2146, 64
    %v2151 = vpop.permute.xlu0 %2150
    %2152 = vrot.lane.b32.xlu0 %v2147, 64
    %v2153 = vpop.permute.xlu0 %2152
    %v2156 = vmul.f32 %v2085, %v2151
    %v2157 = vmul.f32 %v2115, %v2153
    %v2160 = vrot.slane %v2156, 1
    %v2161 = vsel %vm289, %v2157, %v2160
    %v2162 = vsel %vm118, %v2161, 0
    %2164 = vmatpush.msra.mxu0 0.0
    %2165 = vmatpush.msra.mxu0 0.0
    %2166 = vmatpush.msra.mxu0 0.0
    %2167 = vmatpush.msra.mxu0 0.0
    %2168 = vmatpush.msra.mxu0 0.0
    %2169 = vmatpush.msra.mxu0 0.0
    %2170 = vmatpush.msra.mxu0 0.0
    %2171 = vmatpush.msra.mxu0 0.0
    %2172 = vmatpush.msra.mxu0 %v1816
    %2173 = vmatpush.msra.mxu0 %v1814
    %2174 = vmatpush.msra.mxu0 %v1812
    %2175 = vmatpush.msra.mxu0 %v1810
    %2176 = vmatpush.msra.mxu0 %v1808
    %2177 = vmatpush.msra.mxu0 %v1806
    %2178 = vmatpush.msra.mxu0 %v1804
    %2179 = vmatpush.msra.mxu0 %v1802
    %2180 = vmatmul.f32.gmra.mxu0 %v2162
    %v2181 = vpop.f32.mrf.mxu0
    %v2182 = vadd.f32 0.0, %v2181
    %2183 = vdwg.mxu0
    %2184 = vmatpush.msra.mxu0 0.0
    %2185 = vmatpush.msra.mxu0 0.0
    %2186 = vmatpush.msra.mxu0 0.0
    %2187 = vmatpush.msra.mxu0 0.0
    %2188 = vmatpush.msra.mxu0 0.0
    %2189 = vmatpush.msra.mxu0 0.0
    %2190 = vmatpush.msra.mxu0 0.0
    %2191 = vmatpush.msra.mxu0 0.0
    %2192 = vmatpush.msra.mxu0 %v1817
    %2193 = vmatpush.msra.mxu0 %v1815
    %2194 = vmatpush.msra.mxu0 %v1813
    %2195 = vmatpush.msra.mxu0 %v1811
    %2196 = vmatpush.msra.mxu0 %v1809
    %2197 = vmatpush.msra.mxu0 %v1807
    %2198 = vmatpush.msra.mxu0 %v1805
    %2199 = vmatpush.msra.mxu0 %v1803
    %2200 = vmatmul.f32.gmra.mxu0 %v2162
    %v2201 = vpop.f32.mrf.mxu0
    %v2202 = vadd.f32 0.0, %v2201
    %2203 = vdwg.mxu0
    %v2206 = vrot.slane %v2182, 6
    %v2207 = vrot.slane %v2202, 6
    %v2208 = vrot.slane %v2182, 7
    %v2209 = vrot.slane %v2202, 7
    %v2214 = vadd.f32 %v1774, %v2206
    %v2215 = vadd.f32 %v1797, %v2207
    %v2216 = vadd.f32 %v1777, %v2208
    %v2217 = vadd.f32 %v1800, %v2209
    %v2218 = vxor.u32 %v2214, 2147483648
    %v2219 = vxor.u32 %v2215, 2147483648
    %v2220 = vxor.u32 %v2216, 2147483648
    %v2221 = vxor.u32 %v2217, 2147483648
    %v2222 = vmul.f32 %v2218, 1.442695
    %v2223 = vpow.pop %v2222
    %v2224 = vmul.f32 %v2219, 1.442695
    %v2225 = vpow.pop %v2224
    %v2226 = vmul.f32 %v2220, 1.442695
    %v2227 = vpow.pop %v2226
    %v2228 = vmul.f32 %v2221, 1.442695
    %v2229 = vpow.pop %v2228
    %v2230 = vadd.f32 %v2223, 1.0
    %v2231 = vadd.f32 %v2225, 1.0
    %v2232 = vadd.f32 %v2227, 1.0
    %v2233 = vadd.f32 %v2229, 1.0
    %v2234 = vrcp.pop %v2230
    %v2235 = vmul.f32 %v2230, %v2234
    %v2236 = vsub.f32 1.0, %v2235
    %v2237 = vmul.f32 %v2234, %v2236
    %v2238 = vadd.f32 %v2234, %v2237
    %vm2239 = vweird.f32 %v2230
    %vm2240 = vweird.f32 %v2234
    %vm2241 = vmor %vm2239, %vm2240
    %v2242 = vsel %vm2241, %v2234, %v2238
    %v2243 = vand.u32 2147483647, %v2230
    %vm2244 = vcmp.eq.f32.partialorder %v2243, 8.507059e+37
    %v2245 = vand.u32 %v2230, 2147483648
    %v2246 = vor.u32 1.1754944e-38, %v2245
    %v2247 = vsel %vm2244, %v2246, %v2242
    %v2248 = vmul.f32 1.0, %v2247
    %v2249 = vrcp.pop %v2231
    %v2250 = vmul.f32 %v2231, %v2249
    %v2251 = vsub.f32 1.0, %v2250
    %v2252 = vmul.f32 %v2249, %v2251
    %v2253 = vadd.f32 %v2249, %v2252
    %vm2254 = vweird.f32 %v2231
    %vm2255 = vweird.f32 %v2249
    %vm2256 = vmor %vm2254, %vm2255
    %v2257 = vsel %vm2256, %v2249, %v2253
    %v2258 = vand.u32 2147483647, %v2231
    %vm2259 = vcmp.eq.f32.partialorder %v2258, 8.507059e+37
    %v2260 = vand.u32 %v2231, 2147483648
    %v2261 = vor.u32 1.1754944e-38, %v2260
    %v2262 = vsel %vm2259, %v2261, %v2257
    %v2263 = vmul.f32 1.0, %v2262
    %v2264 = vrcp.pop %v2232
    %v2265 = vmul.f32 %v2232, %v2264
    %v2266 = vsub.f32 1.0, %v2265
    %v2267 = vmul.f32 %v2264, %v2266
    %v2268 = vadd.f32 %v2264, %v2267
    %vm2269 = vweird.f32 %v2232
    %vm2270 = vweird.f32 %v2264
    %vm2271 = vmor %vm2269, %vm2270
    %v2272 = vsel %vm2271, %v2264, %v2268
    %v2273 = vand.u32 2147483647, %v2232
    %vm2274 = vcmp.eq.f32.partialorder %v2273, 8.507059e+37
    %v2275 = vand.u32 %v2232, 2147483648
    %v2276 = vor.u32 1.1754944e-38, %v2275
    %v2277 = vsel %vm2274, %v2276, %v2272
    %v2278 = vmul.f32 1.0, %v2277
    %v2279 = vrcp.pop %v2233
    %v2280 = vmul.f32 %v2233, %v2279
    %v2281 = vsub.f32 1.0, %v2280
    %v2282 = vmul.f32 %v2279, %v2281
    %v2283 = vadd.f32 %v2279, %v2282
    %vm2284 = vweird.f32 %v2233
    %vm2285 = vweird.f32 %v2279
    %vm2286 = vmor %vm2284, %vm2285
    %v2287 = vsel %vm2286, %v2279, %v2283
    %v2288 = vand.u32 2147483647, %v2233
    %vm2289 = vcmp.eq.f32.partialorder %v2288, 8.507059e+37
    %v2290 = vand.u32 %v2233, 2147483648
    %v2291 = vor.u32 1.1754944e-38, %v2290
    %v2292 = vsel %vm2289, %v2291, %v2287
    %v2293 = vmul.f32 1.0, %v2292
    %v2294 = vtanh.pop %v2215
    %v2295 = vtanh.pop %v2217
    %v2298 = vrot.slane %v2144, 7
    %v2299 = vrot.slane %v2145, 7
    %v2302 = vmul.f32 %v2248, %v2298
    %v2303 = vmul.f32 %v2278, %v2299
    %2306 = vrot.lane.b32.xlu0 %v2294, 64
    %v2307 = vpop.permute.xlu0 %2306
    %2308 = vrot.lane.b32.xlu0 %v2295, 64
    %v2309 = vpop.permute.xlu0 %2308
    %v2312 = vmul.f32 %v2248, %v2307
    %v2313 = vmul.f32 %v2278, %v2309
    %2316 = vrot.lane.b32.xlu0 %v2312, 64
    %v2317 = vpop.permute.xlu0 %2316
    %2318 = vrot.lane.b32.xlu0 %v2313, 64
    %v2319 = vpop.permute.xlu0 %2318
    %v2322 = vadd.f32 %v2302, %v2317
    %v2323 = vadd.f32 %v2303, %v2319
    %v2324 = vtanh.pop %v2322
    %v2325 = vtanh.pop %v2323
    %2328 = vrot.lane.b32.xlu0 %v2324, 64
    %v2329 = vpop.permute.xlu0 %2328
    %2330 = vrot.lane.b32.xlu0 %v2325, 64
    %v2331 = vpop.permute.xlu0 %2330
    %v2334 = vmul.f32 %v2263, %v2329
    %v2335 = vmul.f32 %v2293, %v2331
    %v2338 = vrot.slane %v2334, 2
    %v2339 = vrot.slane %v2335, 1
    %v2340 = vsel %vm289, %v2339, %v2338
    %v2341 = vsel %vm118, %v2340, 0
    %2343 = vmatpush.msra.mxu0 0.0
    %2344 = vmatpush.msra.mxu0 0.0
    %2345 = vmatpush.msra.mxu0 0.0
    %2346 = vmatpush.msra.mxu0 0.0
    %2347 = vmatpush.msra.mxu0 0.0
    %2348 = vmatpush.msra.mxu0 0.0
    %2349 = vmatpush.msra.mxu0 0.0
    %2350 = vmatpush.msra.mxu0 0.0
    %2351 = vmatpush.msra.mxu0 %v1816
    %2352 = vmatpush.msra.mxu0 %v1814
    %2353 = vmatpush.msra.mxu0 %v1812
    %2354 = vmatpush.msra.mxu0 %v1810
    %2355 = vmatpush.msra.mxu0 %v1808
    %2356 = vmatpush.msra.mxu0 %v1806
    %2357 = vmatpush.msra.mxu0 %v1804
    %2358 = vmatpush.msra.mxu0 %v1802
    %2359 = vmatmul.f32.gmra.mxu0 %v2341
    %v2360 = vpop.f32.mrf.mxu0
    %v2361 = vadd.f32 0.0, %v2360
    %2362 = vdwg.mxu0
    %2363 = vmatpush.msra.mxu0 0.0
    %2364 = vmatpush.msra.mxu0 0.0
    %2365 = vmatpush.msra.mxu0 0.0
    %2366 = vmatpush.msra.mxu0 0.0
    %2367 = vmatpush.msra.mxu0 0.0
    %2368 = vmatpush.msra.mxu0 0.0
    %2369 = vmatpush.msra.mxu0 0.0
    %2370 = vmatpush.msra.mxu0 0.0
    %2371 = vmatpush.msra.mxu0 %v1817
    %2372 = vmatpush.msra.mxu0 %v1815
    %2373 = vmatpush.msra.mxu0 %v1813
    %2374 = vmatpush.msra.mxu0 %v1811
    %2375 = vmatpush.msra.mxu0 %v1809
    %2376 = vmatpush.msra.mxu0 %v1807
    %2377 = vmatpush.msra.mxu0 %v1805
    %2378 = vmatpush.msra.mxu0 %v1803
    %2379 = vmatmul.f32.gmra.mxu0 %v2341
    %v2380 = vpop.f32.mrf.mxu0
    %v2381 = vadd.f32 0.0, %v2380
    %2382 = vdwg.mxu0
    %v2385 = vrot.slane %v2361, 5
    %v2386 = vrot.slane %v2381, 5
    %v2387 = vrot.slane %v2361, 6
    %v2388 = vrot.slane %v2381, 6
    %v2393 = vadd.f32 %v1774, %v2385
    %v2394 = vadd.f32 %v1797, %v2386
    %v2395 = vadd.f32 %v1777, %v2387
    %v2396 = vadd.f32 %v1800, %v2388
    %v2397 = vxor.u32 %v2393, 2147483648
    %v2398 = vxor.u32 %v2394, 2147483648
    %v2399 = vxor.u32 %v2395, 2147483648
    %v2400 = vxor.u32 %v2396, 2147483648
    %v2401 = vmul.f32 %v2397, 1.442695
    %v2402 = vpow.pop %v2401
    %v2403 = vmul.f32 %v2398, 1.442695
    %v2404 = vpow.pop %v2403
    %v2405 = vmul.f32 %v2399, 1.442695
    %v2406 = vpow.pop %v2405
    %v2407 = vmul.f32 %v2400, 1.442695
    %v2408 = vpow.pop %v2407
    %v2409 = vadd.f32 %v2402, 1.0
    %v2410 = vadd.f32 %v2404, 1.0
    %v2411 = vadd.f32 %v2406, 1.0
    %v2412 = vadd.f32 %v2408, 1.0
    %v2413 = vrcp.pop %v2409
    %v2414 = vmul.f32 %v2409, %v2413
    %v2415 = vsub.f32 1.0, %v2414
    %v2416 = vmul.f32 %v2413, %v2415
    %v2417 = vadd.f32 %v2413, %v2416
    %vm2418 = vweird.f32 %v2409
    %vm2419 = vweird.f32 %v2413
    %vm2420 = vmor %vm2418, %vm2419
    %v2421 = vsel %vm2420, %v2413, %v2417
    %v2422 = vand.u32 2147483647, %v2409
    %vm2423 = vcmp.eq.f32.partialorder %v2422, 8.507059e+37
    %v2424 = vand.u32 %v2409, 2147483648
    %v2425 = vor.u32 1.1754944e-38, %v2424
    %v2426 = vsel %vm2423, %v2425, %v2421
    %v2427 = vmul.f32 1.0, %v2426
    %v2428 = vrcp.pop %v2410
    %v2429 = vmul.f32 %v2410, %v2428
    %v2430 = vsub.f32 1.0, %v2429
    %v2431 = vmul.f32 %v2428, %v2430
    %v2432 = vadd.f32 %v2428, %v2431
    %vm2433 = vweird.f32 %v2410
    %vm2434 = vweird.f32 %v2428
    %vm2435 = vmor %vm2433, %vm2434
    %v2436 = vsel %vm2435, %v2428, %v2432
    %v2437 = vand.u32 2147483647, %v2410
    %vm2438 = vcmp.eq.f32.partialorder %v2437, 8.507059e+37
    %v2439 = vand.u32 %v2410, 2147483648
    %v2440 = vor.u32 1.1754944e-38, %v2439
    %v2441 = vsel %vm2438, %v2440, %v2436
    %v2442 = vmul.f32 1.0, %v2441
    %v2443 = vrcp.pop %v2411
    %v2444 = vmul.f32 %v2411, %v2443
    %v2445 = vsub.f32 1.0, %v2444
    %v2446 = vmul.f32 %v2443, %v2445
    %v2447 = vadd.f32 %v2443, %v2446
    %vm2448 = vweird.f32 %v2411
    %vm2449 = vweird.f32 %v2443
    %vm2450 = vmor %vm2448, %vm2449
    %v2451 = vsel %vm2450, %v2443, %v2447
    %v2452 = vand.u32 2147483647, %v2411
    %vm2453 = vcmp.eq.f32.partialorder %v2452, 8.507059e+37
    %v2454 = vand.u32 %v2411, 2147483648
    %v2455 = vor.u32 1.1754944e-38, %v2454
    %v2456 = vsel %vm2453, %v2455, %v2451
    %v2457 = vmul.f32 1.0, %v2456
    %v2458 = vrcp.pop %v2412
    %v2459 = vmul.f32 %v2412, %v2458
    %v2460 = vsub.f32 1.0, %v2459
    %v2461 = vmul.f32 %v2458, %v2460
    %v2462 = vadd.f32 %v2458, %v2461
    %vm2463 = vweird.f32 %v2412
    %vm2464 = vweird.f32 %v2458
    %vm2465 = vmor %vm2463, %vm2464
    %v2466 = vsel %vm2465, %v2458, %v2462
    %v2467 = vand.u32 2147483647, %v2412
    %vm2468 = vcmp.eq.f32.partialorder %v2467, 8.507059e+37
    %v2469 = vand.u32 %v2412, 2147483648
    %v2470 = vor.u32 1.1754944e-38, %v2469
    %v2471 = vsel %vm2468, %v2470, %v2466
    %v2472 = vmul.f32 1.0, %v2471
    %v2473 = vtanh.pop %v2394
    %v2474 = vtanh.pop %v2396
    %v2477 = vrot.slane %v2322, 7
    %v2478 = vrot.slane %v2323, 7
    %v2481 = vmul.f32 %v2427, %v2477
    %v2482 = vmul.f32 %v2457, %v2478
    %2485 = vrot.lane.b32.xlu0 %v2473, 64
    %v2486 = vpop.permute.xlu0 %2485
    %2487 = vrot.lane.b32.xlu0 %v2474, 64
    %v2488 = vpop.permute.xlu0 %2487
    %v2491 = vmul.f32 %v2427, %v2486
    %v2492 = vmul.f32 %v2457, %v2488
    %2495 = vrot.lane.b32.xlu0 %v2491, 64
    %v2496 = vpop.permute.xlu0 %2495
    %2497 = vrot.lane.b32.xlu0 %v2492, 64
    %v2498 = vpop.permute.xlu0 %2497
    %v2501 = vadd.f32 %v2481, %v2496
    %v2502 = vadd.f32 %v2482, %v2498
    %v2503 = vtanh.pop %v2501
    %v2504 = vtanh.pop %v2502
    %2507 = vrot.lane.b32.xlu0 %v2503, 64
    %v2508 = vpop.permute.xlu0 %2507
    %2509 = vrot.lane.b32.xlu0 %v2504, 64
    %v2510 = vpop.permute.xlu0 %2509
    %v2513 = vmul.f32 %v2442, %v2508
    %v2514 = vmul.f32 %v2472, %v2510
    %v2517 = vrot.slane %v2513, 3
    %v2518 = vrot.slane %v2514, 2
    %v2519 = vsel %vm289, %v2518, %v2517
    %v2520 = vsel %vm118, %v2519, 0
    %2522 = vmatpush.msra.mxu0 0.0
    %2523 = vmatpush.msra.mxu0 0.0
    %2524 = vmatpush.msra.mxu0 0.0
    %2525 = vmatpush.msra.mxu0 0.0
    %2526 = vmatpush.msra.mxu0 0.0
    %2527 = vmatpush.msra.mxu0 0.0
    %2528 = vmatpush.msra.mxu0 0.0
    %2529 = vmatpush.msra.mxu0 0.0
    %2530 = vmatpush.msra.mxu0 %v1816
    %2531 = vmatpush.msra.mxu0 %v1814
    %2532 = vmatpush.msra.mxu0 %v1812
    %2533 = vmatpush.msra.mxu0 %v1810
    %2534 = vmatpush.msra.mxu0 %v1808
    %2535 = vmatpush.msra.mxu0 %v1806
    %2536 = vmatpush.msra.mxu0 %v1804
    %2537 = vmatpush.msra.mxu0 %v1802
    %2538 = vmatmul.f32.gmra.mxu0 %v2520
    %v2539 = vpop.f32.mrf.mxu0
    %v2540 = vadd.f32 0.0, %v2539
    %2541 = vdwg.mxu0
    %2542 = vmatpush.msra.mxu0 0.0
    %2543 = vmatpush.msra.mxu0 0.0
    %2544 = vmatpush.msra.mxu0 0.0
    %2545 = vmatpush.msra.mxu0 0.0
    %2546 = vmatpush.msra.mxu0 0.0
    %2547 = vmatpush.msra.mxu0 0.0
    %2548 = vmatpush.msra.mxu0 0.0
    %2549 = vmatpush.msra.mxu0 0.0
    %2550 = vmatpush.msra.mxu0 %v1817
    %2551 = vmatpush.msra.mxu0 %v1815
    %2552 = vmatpush.msra.mxu0 %v1813
    %2553 = vmatpush.msra.mxu0 %v1811
    %2554 = vmatpush.msra.mxu0 %v1809
    %2555 = vmatpush.msra.mxu0 %v1807
    %2556 = vmatpush.msra.mxu0 %v1805
    %2557 = vmatpush.msra.mxu0 %v1803
    %2558 = vmatmul.f32.gmra.mxu0 %v2520
    %v2559 = vpop.f32.mrf.mxu0
    %v2560 = vadd.f32 0.0, %v2559
    %2561 = vdwg.mxu0
    %v2564 = vrot.slane %v2540, 4
    %v2565 = vrot.slane %v2560, 4
    %v2566 = vrot.slane %v2540, 5
    %v2567 = vrot.slane %v2560, 5
    %v2572 = vadd.f32 %v1774, %v2564
    %v2573 = vadd.f32 %v1797, %v2565
    %v2574 = vadd.f32 %v1777, %v2566
    %v2575 = vadd.f32 %v1800, %v2567
    %v2576 = vxor.u32 %v2572, 2147483648
    %v2577 = vxor.u32 %v2573, 2147483648
    %v2578 = vxor.u32 %v2574, 2147483648
    %v2579 = vxor.u32 %v2575, 2147483648
    %v2580 = vmul.f32 %v2576, 1.442695
    %v2581 = vpow.pop %v2580
    %v2582 = vmul.f32 %v2577, 1.442695
    %v2583 = vpow.pop %v2582
    %v2584 = vmul.f32 %v2578, 1.442695
    %v2585 = vpow.pop %v2584
    %v2586 = vmul.f32 %v2579, 1.442695
    %v2587 = vpow.pop %v2586
    %v2588 = vadd.f32 %v2581, 1.0
    %v2589 = vadd.f32 %v2583, 1.0
    %v2590 = vadd.f32 %v2585, 1.0
    %v2591 = vadd.f32 %v2587, 1.0
    %v2592 = vrcp.pop %v2588
    %v2593 = vmul.f32 %v2588, %v2592
    %v2594 = vsub.f32 1.0, %v2593
    %v2595 = vmul.f32 %v2592, %v2594
    %v2596 = vadd.f32 %v2592, %v2595
    %vm2597 = vweird.f32 %v2588
    %vm2598 = vweird.f32 %v2592
    %vm2599 = vmor %vm2597, %vm2598
    %v2600 = vsel %vm2599, %v2592, %v2596
    %v2601 = vand.u32 2147483647, %v2588
    %vm2602 = vcmp.eq.f32.partialorder %v2601, 8.507059e+37
    %v2603 = vand.u32 %v2588, 2147483648
    %v2604 = vor.u32 1.1754944e-38, %v2603
    %v2605 = vsel %vm2602, %v2604, %v2600
    %v2606 = vmul.f32 1.0, %v2605
    %v2607 = vrcp.pop %v2589
    %v2608 = vmul.f32 %v2589, %v2607
    %v2609 = vsub.f32 1.0, %v2608
    %v2610 = vmul.f32 %v2607, %v2609
    %v2611 = vadd.f32 %v2607, %v2610
    %vm2612 = vweird.f32 %v2589
    %vm2613 = vweird.f32 %v2607
    %vm2614 = vmor %vm2612, %vm2613
    %v2615 = vsel %vm2614, %v2607, %v2611
    %v2616 = vand.u32 2147483647, %v2589
    %vm2617 = vcmp.eq.f32.partialorder %v2616, 8.507059e+37
    %v2618 = vand.u32 %v2589, 2147483648
    %v2619 = vor.u32 1.1754944e-38, %v2618
    %v2620 = vsel %vm2617, %v2619, %v2615
    %v2621 = vmul.f32 1.0, %v2620
    %v2622 = vrcp.pop %v2590
    %v2623 = vmul.f32 %v2590, %v2622
    %v2624 = vsub.f32 1.0, %v2623
    %v2625 = vmul.f32 %v2622, %v2624
    %v2626 = vadd.f32 %v2622, %v2625
    %vm2627 = vweird.f32 %v2590
    %vm2628 = vweird.f32 %v2622
    %vm2629 = vmor %vm2627, %vm2628
    %v2630 = vsel %vm2629, %v2622, %v2626
    %v2631 = vand.u32 2147483647, %v2590
    %vm2632 = vcmp.eq.f32.partialorder %v2631, 8.507059e+37
    %v2633 = vand.u32 %v2590, 2147483648
    %v2634 = vor.u32 1.1754944e-38, %v2633
    %v2635 = vsel %vm2632, %v2634, %v2630
    %v2636 = vmul.f32 1.0, %v2635
    %v2637 = vrcp.pop %v2591
    %v2638 = vmul.f32 %v2591, %v2637
    %v2639 = vsub.f32 1.0, %v2638
    %v2640 = vmul.f32 %v2637, %v2639
    %v2641 = vadd.f32 %v2637, %v2640
    %vm2642 = vweird.f32 %v2591
    %vm2643 = vweird.f32 %v2637
    %vm2644 = vmor %vm2642, %vm2643
    %v2645 = vsel %vm2644, %v2637, %v2641
    %v2646 = vand.u32 2147483647, %v2591
    %vm2647 = vcmp.eq.f32.partialorder %v2646, 8.507059e+37
    %v2648 = vand.u32 %v2591, 2147483648
    %v2649 = vor.u32 1.1754944e-38, %v2648
    %v2650 = vsel %vm2647, %v2649, %v2645
    %v2651 = vmul.f32 1.0, %v2650
    %v2652 = vtanh.pop %v2573
    %v2653 = vtanh.pop %v2575
    %v2656 = vrot.slane %v2501, 7
    %v2657 = vrot.slane %v2502, 7
    %v2660 = vmul.f32 %v2606, %v2656
    %v2661 = vmul.f32 %v2636, %v2657
    %2664 = vrot.lane.b32.xlu0 %v2652, 64
    %v2665 = vpop.permute.xlu0 %2664
    %2666 = vrot.lane.b32.xlu0 %v2653, 64
    %v2667 = vpop.permute.xlu0 %2666
    %v2670 = vmul.f32 %v2606, %v2665
    %v2671 = vmul.f32 %v2636, %v2667
    %2674 = vrot.lane.b32.xlu0 %v2670, 64
    %v2675 = vpop.permute.xlu0 %2674
    %2676 = vrot.lane.b32.xlu0 %v2671, 64
    %v2677 = vpop.permute.xlu0 %2676
    %v2680 = vadd.f32 %v2660, %v2675
    %v2681 = vadd.f32 %v2661, %v2677
    %v2682 = vtanh.pop %v2680
    %v2683 = vtanh.pop %v2681
    %2686 = vrot.lane.b32.xlu0 %v2682, 64
    %v2687 = vpop.permute.xlu0 %2686
    %2688 = vrot.lane.b32.xlu0 %v2683, 64
    %v2689 = vpop.permute.xlu0 %2688
    %v2692 = vmul.f32 %v2621, %v2687
    %v2693 = vmul.f32 %v2651, %v2689
    %v2696 = vrot.slane %v2692, 4
    %v2697 = vrot.slane %v2693, 3
    %v2698 = vsel %vm289, %v2697, %v2696
    %v2699 = vsel %vm118, %v2698, 0
    %2701 = vmatpush.msra.mxu0 0.0
    %2702 = vmatpush.msra.mxu0 0.0
    %2703 = vmatpush.msra.mxu0 0.0
    %2704 = vmatpush.msra.mxu0 0.0
    %2705 = vmatpush.msra.mxu0 0.0
    %2706 = vmatpush.msra.mxu0 0.0
    %2707 = vmatpush.msra.mxu0 0.0
    %2708 = vmatpush.msra.mxu0 0.0
    %2709 = vmatpush.msra.mxu0 %v1816
    %2710 = vmatpush.msra.mxu0 %v1814
    %2711 = vmatpush.msra.mxu0 %v1812
    %2712 = vmatpush.msra.mxu0 %v1810
    %2713 = vmatpush.msra.mxu0 %v1808
    %2714 = vmatpush.msra.mxu0 %v1806
    %2715 = vmatpush.msra.mxu0 %v1804
    %2716 = vmatpush.msra.mxu0 %v1802
    %2717 = vmatmul.f32.gmra.mxu0 %v2699
    %v2718 = vpop.f32.mrf.mxu0
    %v2719 = vadd.f32 0.0, %v2718
    %2720 = vdwg.mxu0
    %2721 = vmatpush.msra.mxu0 0.0
    %2722 = vmatpush.msra.mxu0 0.0
    %2723 = vmatpush.msra.mxu0 0.0
    %2724 = vmatpush.msra.mxu0 0.0
    %2725 = vmatpush.msra.mxu0 0.0
    %2726 = vmatpush.msra.mxu0 0.0
    %2727 = vmatpush.msra.mxu0 0.0
    %2728 = vmatpush.msra.mxu0 0.0
    %2729 = vmatpush.msra.mxu0 %v1817
    %2730 = vmatpush.msra.mxu0 %v1815
    %2731 = vmatpush.msra.mxu0 %v1813
    %2732 = vmatpush.msra.mxu0 %v1811
    %2733 = vmatpush.msra.mxu0 %v1809
    %2734 = vmatpush.msra.mxu0 %v1807
    %2735 = vmatpush.msra.mxu0 %v1805
    %2736 = vmatpush.msra.mxu0 %v1803
    %2737 = vmatmul.f32.gmra.mxu0 %v2699
    %v2738 = vpop.f32.mrf.mxu0
    %v2739 = vadd.f32 0.0, %v2738
    %2740 = vdwg.mxu0
    %v2743 = vrot.slane %v2719, 3
    %v2744 = vrot.slane %v2739, 3
    %v2745 = vrot.slane %v2719, 4
    %v2746 = vrot.slane %v2739, 4
    %v2751 = vadd.f32 %v1774, %v2743
    %v2752 = vadd.f32 %v1797, %v2744
    %v2753 = vadd.f32 %v1777, %v2745
    %v2754 = vadd.f32 %v1800, %v2746
    %v2755 = vxor.u32 %v2751, 2147483648
    %v2756 = vxor.u32 %v2752, 2147483648
    %v2757 = vxor.u32 %v2753, 2147483648
    %v2758 = vxor.u32 %v2754, 2147483648
    %v2759 = vmul.f32 %v2755, 1.442695
    %v2760 = vpow.pop %v2759
    %v2761 = vmul.f32 %v2756, 1.442695
    %v2762 = vpow.pop %v2761
    %v2763 = vmul.f32 %v2757, 1.442695
    %v2764 = vpow.pop %v2763
    %v2765 = vmul.f32 %v2758, 1.442695
    %v2766 = vpow.pop %v2765
    %v2767 = vadd.f32 %v2760, 1.0
    %v2768 = vadd.f32 %v2762, 1.0
    %v2769 = vadd.f32 %v2764, 1.0
    %v2770 = vadd.f32 %v2766, 1.0
    %v2771 = vrcp.pop %v2767
    %v2772 = vmul.f32 %v2767, %v2771
    %v2773 = vsub.f32 1.0, %v2772
    %v2774 = vmul.f32 %v2771, %v2773
    %v2775 = vadd.f32 %v2771, %v2774
    %vm2776 = vweird.f32 %v2767
    %vm2777 = vweird.f32 %v2771
    %vm2778 = vmor %vm2776, %vm2777
    %v2779 = vsel %vm2778, %v2771, %v2775
    %v2780 = vand.u32 2147483647, %v2767
    %vm2781 = vcmp.eq.f32.partialorder %v2780, 8.507059e+37
    %v2782 = vand.u32 %v2767, 2147483648
    %v2783 = vor.u32 1.1754944e-38, %v2782
    %v2784 = vsel %vm2781, %v2783, %v2779
    %v2785 = vmul.f32 1.0, %v2784
    %v2786 = vrcp.pop %v2768
    %v2787 = vmul.f32 %v2768, %v2786
    %v2788 = vsub.f32 1.0, %v2787
    %v2789 = vmul.f32 %v2786, %v2788
    %v2790 = vadd.f32 %v2786, %v2789
    %vm2791 = vweird.f32 %v2768
    %vm2792 = vweird.f32 %v2786
    %vm2793 = vmor %vm2791, %vm2792
    %v2794 = vsel %vm2793, %v2786, %v2790
    %v2795 = vand.u32 2147483647, %v2768
    %vm2796 = vcmp.eq.f32.partialorder %v2795, 8.507059e+37
    %v2797 = vand.u32 %v2768, 2147483648
    %v2798 = vor.u32 1.1754944e-38, %v2797
    %v2799 = vsel %vm2796, %v2798, %v2794
    %v2800 = vmul.f32 1.0, %v2799
    %v2801 = vrcp.pop %v2769
    %v2802 = vmul.f32 %v2769, %v2801
    %v2803 = vsub.f32 1.0, %v2802
    %v2804 = vmul.f32 %v2801, %v2803
    %v2805 = vadd.f32 %v2801, %v2804
    %vm2806 = vweird.f32 %v2769
    %vm2807 = vweird.f32 %v2801
    %vm2808 = vmor %vm2806, %vm2807
    %v2809 = vsel %vm2808, %v2801, %v2805
    %v2810 = vand.u32 2147483647, %v2769
    %vm2811 = vcmp.eq.f32.partialorder %v2810, 8.507059e+37
    %v2812 = vand.u32 %v2769, 2147483648
    %v2813 = vor.u32 1.1754944e-38, %v2812
    %v2814 = vsel %vm2811, %v2813, %v2809
    %v2815 = vmul.f32 1.0, %v2814
    %v2816 = vrcp.pop %v2770
    %v2817 = vmul.f32 %v2770, %v2816
    %v2818 = vsub.f32 1.0, %v2817
    %v2819 = vmul.f32 %v2816, %v2818
    %v2820 = vadd.f32 %v2816, %v2819
    %vm2821 = vweird.f32 %v2770
    %vm2822 = vweird.f32 %v2816
    %vm2823 = vmor %vm2821, %vm2822
    %v2824 = vsel %vm2823, %v2816, %v2820
    %v2825 = vand.u32 2147483647, %v2770
    %vm2826 = vcmp.eq.f32.partialorder %v2825, 8.507059e+37
    %v2827 = vand.u32 %v2770, 2147483648
    %v2828 = vor.u32 1.1754944e-38, %v2827
    %v2829 = vsel %vm2826, %v2828, %v2824
    %v2830 = vmul.f32 1.0, %v2829
    %v2831 = vtanh.pop %v2752
    %v2832 = vtanh.pop %v2754
    %v2835 = vrot.slane %v2680, 7
    %v2836 = vrot.slane %v2681, 7
    %v2839 = vmul.f32 %v2785, %v2835
    %v2840 = vmul.f32 %v2815, %v2836
    %2843 = vrot.lane.b32.xlu0 %v2831, 64
    %v2844 = vpop.permute.xlu0 %2843
    %2845 = vrot.lane.b32.xlu0 %v2832, 64
    %v2846 = vpop.permute.xlu0 %2845
    %v2849 = vmul.f32 %v2785, %v2844
    %v2850 = vmul.f32 %v2815, %v2846
    %2853 = vrot.lane.b32.xlu0 %v2849, 64
    %v2854 = vpop.permute.xlu0 %2853
    %2855 = vrot.lane.b32.xlu0 %v2850, 64
    %v2856 = vpop.permute.xlu0 %2855
    %v2859 = vadd.f32 %v2839, %v2854
    %v2860 = vadd.f32 %v2840, %v2856
    %v2861 = vtanh.pop %v2859
    %v2862 = vtanh.pop %v2860
    %2865 = vrot.lane.b32.xlu0 %v2861, 64
    %v2866 = vpop.permute.xlu0 %2865
    %2867 = vrot.lane.b32.xlu0 %v2862, 64
    %v2868 = vpop.permute.xlu0 %2867
    %v2871 = vmul.f32 %v2800, %v2866
    %v2872 = vmul.f32 %v2830, %v2868
    %v2875 = vrot.slane %v2871, 5
    %v2876 = vrot.slane %v2872, 4
    %v2877 = vsel %vm289, %v2876, %v2875
    %v2878 = vsel %vm118, %v2877, 0
    %2880 = vmatpush.msra.mxu0 0.0
    %2881 = vmatpush.msra.mxu0 0.0
    %2882 = vmatpush.msra.mxu0 0.0
    %2883 = vmatpush.msra.mxu0 0.0
    %2884 = vmatpush.msra.mxu0 0.0
    %2885 = vmatpush.msra.mxu0 0.0
    %2886 = vmatpush.msra.mxu0 0.0
    %2887 = vmatpush.msra.mxu0 0.0
    %2888 = vmatpush.msra.mxu0 %v1816
    %2889 = vmatpush.msra.mxu0 %v1814
    %2890 = vmatpush.msra.mxu0 %v1812
    %2891 = vmatpush.msra.mxu0 %v1810
    %2892 = vmatpush.msra.mxu0 %v1808
    %2893 = vmatpush.msra.mxu0 %v1806
    %2894 = vmatpush.msra.mxu0 %v1804
    %2895 = vmatpush.msra.mxu0 %v1802
    %2896 = vmatmul.f32.gmra.mxu0 %v2878
    %v2897 = vpop.f32.mrf.mxu0
    %v2898 = vadd.f32 0.0, %v2897
    %2899 = vdwg.mxu0
    %2900 = vmatpush.msra.mxu0 0.0
    %2901 = vmatpush.msra.mxu0 0.0
    %2902 = vmatpush.msra.mxu0 0.0
    %2903 = vmatpush.msra.mxu0 0.0
    %2904 = vmatpush.msra.mxu0 0.0
    %2905 = vmatpush.msra.mxu0 0.0
    %2906 = vmatpush.msra.mxu0 0.0
    %2907 = vmatpush.msra.mxu0 0.0
    %2908 = vmatpush.msra.mxu0 %v1817
    %2909 = vmatpush.msra.mxu0 %v1815
    %2910 = vmatpush.msra.mxu0 %v1813
    %2911 = vmatpush.msra.mxu0 %v1811
    %2912 = vmatpush.msra.mxu0 %v1809
    %2913 = vmatpush.msra.mxu0 %v1807
    %2914 = vmatpush.msra.mxu0 %v1805
    %2915 = vmatpush.msra.mxu0 %v1803
    %2916 = vmatmul.f32.gmra.mxu0 %v2878
    %v2917 = vpop.f32.mrf.mxu0
    %v2918 = vadd.f32 0.0, %v2917
    %2919 = vdwg.mxu0
    %v2922 = vrot.slane %v2898, 2
    %v2923 = vrot.slane %v2918, 2
    %v2924 = vrot.slane %v2898, 3
    %v2925 = vrot.slane %v2918, 3
    %v2930 = vadd.f32 %v1774, %v2922
    %v2931 = vadd.f32 %v1797, %v2923
    %v2932 = vadd.f32 %v1777, %v2924
    %v2933 = vadd.f32 %v1800, %v2925
    %v2934 = vxor.u32 %v2930, 2147483648
    %v2935 = vxor.u32 %v2931, 2147483648
    %v2936 = vxor.u32 %v2932, 2147483648
    %v2937 = vxor.u32 %v2933, 2147483648
    %v2938 = vmul.f32 %v2934, 1.442695
    %v2939 = vpow.pop %v2938
    %v2940 = vmul.f32 %v2935, 1.442695
    %v2941 = vpow.pop %v2940
    %v2942 = vmul.f32 %v2936, 1.442695
    %v2943 = vpow.pop %v2942
    %v2944 = vmul.f32 %v2937, 1.442695
    %v2945 = vpow.pop %v2944
    %v2946 = vadd.f32 %v2939, 1.0
    %v2947 = vadd.f32 %v2941, 1.0
    %v2948 = vadd.f32 %v2943, 1.0
    %v2949 = vadd.f32 %v2945, 1.0
    %v2950 = vrcp.pop %v2946
    %v2951 = vmul.f32 %v2946, %v2950
    %v2952 = vsub.f32 1.0, %v2951
    %v2953 = vmul.f32 %v2950, %v2952
    %v2954 = vadd.f32 %v2950, %v2953
    %vm2955 = vweird.f32 %v2946
    %vm2956 = vweird.f32 %v2950
    %vm2957 = vmor %vm2955, %vm2956
    %v2958 = vsel %vm2957, %v2950, %v2954
    %v2959 = vand.u32 2147483647, %v2946
    %vm2960 = vcmp.eq.f32.partialorder %v2959, 8.507059e+37
    %v2961 = vand.u32 %v2946, 2147483648
    %v2962 = vor.u32 1.1754944e-38, %v2961
    %v2963 = vsel %vm2960, %v2962, %v2958
    %v2964 = vmul.f32 1.0, %v2963
    %v2965 = vrcp.pop %v2947
    %v2966 = vmul.f32 %v2947, %v2965
    %v2967 = vsub.f32 1.0, %v2966
    %v2968 = vmul.f32 %v2965, %v2967
    %v2969 = vadd.f32 %v2965, %v2968
    %vm2970 = vweird.f32 %v2947
    %vm2971 = vweird.f32 %v2965
    %vm2972 = vmor %vm2970, %vm2971
    %v2973 = vsel %vm2972, %v2965, %v2969
    %v2974 = vand.u32 2147483647, %v2947
    %vm2975 = vcmp.eq.f32.partialorder %v2974, 8.507059e+37
    %v2976 = vand.u32 %v2947, 2147483648
    %v2977 = vor.u32 1.1754944e-38, %v2976
    %v2978 = vsel %vm2975, %v2977, %v2973
    %v2979 = vmul.f32 1.0, %v2978
    %v2980 = vrcp.pop %v2948
    %v2981 = vmul.f32 %v2948, %v2980
    %v2982 = vsub.f32 1.0, %v2981
    %v2983 = vmul.f32 %v2980, %v2982
    %v2984 = vadd.f32 %v2980, %v2983
    %vm2985 = vweird.f32 %v2948
    %vm2986 = vweird.f32 %v2980
    %vm2987 = vmor %vm2985, %vm2986
    %v2988 = vsel %vm2987, %v2980, %v2984
    %v2989 = vand.u32 2147483647, %v2948
    %vm2990 = vcmp.eq.f32.partialorder %v2989, 8.507059e+37
    %v2991 = vand.u32 %v2948, 2147483648
    %v2992 = vor.u32 1.1754944e-38, %v2991
    %v2993 = vsel %vm2990, %v2992, %v2988
    %v2994 = vmul.f32 1.0, %v2993
    %v2995 = vrcp.pop %v2949
    %v2996 = vmul.f32 %v2949, %v2995
    %v2997 = vsub.f32 1.0, %v2996
    %v2998 = vmul.f32 %v2995, %v2997
    %v2999 = vadd.f32 %v2995, %v2998
    %vm3000 = vweird.f32 %v2949
    %vm3001 = vweird.f32 %v2995
    %vm3002 = vmor %vm3000, %vm3001
    %v3003 = vsel %vm3002, %v2995, %v2999
    %v3004 = vand.u32 2147483647, %v2949
    %vm3005 = vcmp.eq.f32.partialorder %v3004, 8.507059e+37
    %v3006 = vand.u32 %v2949, 2147483648
    %v3007 = vor.u32 1.1754944e-38, %v3006
    %v3008 = vsel %vm3005, %v3007, %v3003
    %v3009 = vmul.f32 1.0, %v3008
    %v3010 = vtanh.pop %v2931
    %v3011 = vtanh.pop %v2933
    %v3014 = vrot.slane %v2859, 7
    %v3015 = vrot.slane %v2860, 7
    %v3018 = vmul.f32 %v2964, %v3014
    %v3019 = vmul.f32 %v2994, %v3015
    %3022 = vrot.lane.b32.xlu0 %v3010, 64
    %v3023 = vpop.permute.xlu0 %3022
    %3024 = vrot.lane.b32.xlu0 %v3011, 64
    %v3025 = vpop.permute.xlu0 %3024
    %v3028 = vmul.f32 %v2964, %v3023
    %v3029 = vmul.f32 %v2994, %v3025
    %3032 = vrot.lane.b32.xlu0 %v3028, 64
    %v3033 = vpop.permute.xlu0 %3032
    %3034 = vrot.lane.b32.xlu0 %v3029, 64
    %v3035 = vpop.permute.xlu0 %3034
    %v3038 = vadd.f32 %v3018, %v3033
    %v3039 = vadd.f32 %v3019, %v3035
    %v3040 = vtanh.pop %v3038
    %v3041 = vtanh.pop %v3039
    %3044 = vrot.lane.b32.xlu0 %v3040, 64
    %v3045 = vpop.permute.xlu0 %3044
    %3046 = vrot.lane.b32.xlu0 %v3041, 64
    %v3047 = vpop.permute.xlu0 %3046
    %v3050 = vmul.f32 %v2979, %v3045
    %v3051 = vmul.f32 %v3009, %v3047
    %v3054 = vrot.slane %v3050, 6
    %v3055 = vrot.slane %v3051, 5
    %v3056 = vsel %vm289, %v3055, %v3054
    %v3057 = vsel %vm118, %v3056, 0
    %3059 = vmatpush.msra.mxu0 0.0
    %3060 = vmatpush.msra.mxu0 0.0
    %3061 = vmatpush.msra.mxu0 0.0
    %3062 = vmatpush.msra.mxu0 0.0
    %3063 = vmatpush.msra.mxu0 0.0
    %3064 = vmatpush.msra.mxu0 0.0
    %3065 = vmatpush.msra.mxu0 0.0
    %3066 = vmatpush.msra.mxu0 0.0
    %3067 = vmatpush.msra.mxu0 %v1816
    %3068 = vmatpush.msra.mxu0 %v1814
    %3069 = vmatpush.msra.mxu0 %v1812
    %3070 = vmatpush.msra.mxu0 %v1810
    %3071 = vmatpush.msra.mxu0 %v1808
    %3072 = vmatpush.msra.mxu0 %v1806
    %3073 = vmatpush.msra.mxu0 %v1804
    %3074 = vmatpush.msra.mxu0 %v1802
    %3075 = vmatmul.f32.gmra.mxu0 %v3057
    %v3076 = vpop.f32.mrf.mxu0
    %v3077 = vadd.f32 0.0, %v3076
    %3078 = vdwg.mxu0
    %3079 = vmatpush.msra.mxu0 0.0
    %3080 = vmatpush.msra.mxu0 0.0
    %3081 = vmatpush.msra.mxu0 0.0
    %3082 = vmatpush.msra.mxu0 0.0
    %3083 = vmatpush.msra.mxu0 0.0
    %3084 = vmatpush.msra.mxu0 0.0
    %3085 = vmatpush.msra.mxu0 0.0
    %3086 = vmatpush.msra.mxu0 0.0
    %3087 = vmatpush.msra.mxu0 %v1817
    %3088 = vmatpush.msra.mxu0 %v1815
    %3089 = vmatpush.msra.mxu0 %v1813
    %3090 = vmatpush.msra.mxu0 %v1811
    %3091 = vmatpush.msra.mxu0 %v1809
    %3092 = vmatpush.msra.mxu0 %v1807
    %3093 = vmatpush.msra.mxu0 %v1805
    %3094 = vmatpush.msra.mxu0 %v1803
    %3095 = vmatmul.f32.gmra.mxu0 %v3057
    %v3096 = vpop.f32.mrf.mxu0
    %v3097 = vadd.f32 0.0, %v3096
    %3098 = vdwg.mxu0
    %v3101 = vrot.slane %v3077, 1
    %v3102 = vrot.slane %v3097, 1
    %v3103 = vrot.slane %v3077, 2
    %v3104 = vrot.slane %v3097, 2
    %v3109 = vadd.f32 %v1774, %v3101
    %v3110 = vadd.f32 %v1797, %v3102
    %v3111 = vadd.f32 %v1777, %v3103
    %v3112 = vadd.f32 %v1800, %v3104
    %v3113 = vxor.u32 %v3109, 2147483648
    %v3114 = vxor.u32 %v3110, 2147483648
    %v3115 = vxor.u32 %v3111, 2147483648
    %v3116 = vxor.u32 %v3112, 2147483648
    %v3117 = vmul.f32 %v3113, 1.442695
    %v3118 = vpow.pop %v3117
    %v3119 = vmul.f32 %v3114, 1.442695
    %v3120 = vpow.pop %v3119
    %v3121 = vmul.f32 %v3115, 1.442695
    %v3122 = vpow.pop %v3121
    %v3123 = vmul.f32 %v3116, 1.442695
    %v3124 = vpow.pop %v3123
    %v3125 = vadd.f32 %v3118, 1.0
    %v3126 = vadd.f32 %v3120, 1.0
    %v3127 = vadd.f32 %v3122, 1.0
    %v3128 = vadd.f32 %v3124, 1.0
    %v3129 = vrcp.pop %v3125
    %v3130 = vmul.f32 %v3125, %v3129
    %v3131 = vsub.f32 1.0, %v3130
    %v3132 = vmul.f32 %v3129, %v3131
    %v3133 = vadd.f32 %v3129, %v3132
    %vm3134 = vweird.f32 %v3125
    %vm3135 = vweird.f32 %v3129
    %vm3136 = vmor %vm3134, %vm3135
    %v3137 = vsel %vm3136, %v3129, %v3133
    %v3138 = vand.u32 2147483647, %v3125
    %vm3139 = vcmp.eq.f32.partialorder %v3138, 8.507059e+37
    %v3140 = vand.u32 %v3125, 2147483648
    %v3141 = vor.u32 1.1754944e-38, %v3140
    %v3142 = vsel %vm3139, %v3141, %v3137
    %v3143 = vmul.f32 1.0, %v3142
    %v3144 = vrcp.pop %v3126
    %v3145 = vmul.f32 %v3126, %v3144
    %v3146 = vsub.f32 1.0, %v3145
    %v3147 = vmul.f32 %v3144, %v3146
    %v3148 = vadd.f32 %v3144, %v3147
    %vm3149 = vweird.f32 %v3126
    %vm3150 = vweird.f32 %v3144
    %vm3151 = vmor %vm3149, %vm3150
    %v3152 = vsel %vm3151, %v3144, %v3148
    %v3153 = vand.u32 2147483647, %v3126
    %vm3154 = vcmp.eq.f32.partialorder %v3153, 8.507059e+37
    %v3155 = vand.u32 %v3126, 2147483648
    %v3156 = vor.u32 1.1754944e-38, %v3155
    %v3157 = vsel %vm3154, %v3156, %v3152
    %v3158 = vmul.f32 1.0, %v3157
    %v3159 = vrcp.pop %v3127
    %v3160 = vmul.f32 %v3127, %v3159
    %v3161 = vsub.f32 1.0, %v3160
    %v3162 = vmul.f32 %v3159, %v3161
    %v3163 = vadd.f32 %v3159, %v3162
    %vm3164 = vweird.f32 %v3127
    %vm3165 = vweird.f32 %v3159
    %vm3166 = vmor %vm3164, %vm3165
    %v3167 = vsel %vm3166, %v3159, %v3163
    %v3168 = vand.u32 2147483647, %v3127
    %vm3169 = vcmp.eq.f32.partialorder %v3168, 8.507059e+37
    %v3170 = vand.u32 %v3127, 2147483648
    %v3171 = vor.u32 1.1754944e-38, %v3170
    %v3172 = vsel %vm3169, %v3171, %v3167
    %v3173 = vmul.f32 1.0, %v3172
    %v3174 = vrcp.pop %v3128
    %v3175 = vmul.f32 %v3128, %v3174
    %v3176 = vsub.f32 1.0, %v3175
    %v3177 = vmul.f32 %v3174, %v3176
    %v3178 = vadd.f32 %v3174, %v3177
    %vm3179 = vweird.f32 %v3128
    %vm3180 = vweird.f32 %v3174
    %vm3181 = vmor %vm3179, %vm3180
    %v3182 = vsel %vm3181, %v3174, %v3178
    %v3183 = vand.u32 2147483647, %v3128
    %vm3184 = vcmp.eq.f32.partialorder %v3183, 8.507059e+37
    %v3185 = vand.u32 %v3128, 2147483648
    %v3186 = vor.u32 1.1754944e-38, %v3185
    %v3187 = vsel %vm3184, %v3186, %v3182
    %v3188 = vmul.f32 1.0, %v3187
    %v3189 = vtanh.pop %v3110
    %v3190 = vtanh.pop %v3112
    %v3193 = vrot.slane %v3038, 7
    %v3194 = vrot.slane %v3039, 7
    %v3197 = vmul.f32 %v3143, %v3193
    %v3198 = vmul.f32 %v3173, %v3194
    %3201 = vrot.lane.b32.xlu0 %v3189, 64
    %v3202 = vpop.permute.xlu0 %3201
    %3203 = vrot.lane.b32.xlu0 %v3190, 64
    %v3204 = vpop.permute.xlu0 %3203
    %v3207 = vmul.f32 %v3143, %v3202
    %v3208 = vmul.f32 %v3173, %v3204
    %3211 = vrot.lane.b32.xlu0 %v3207, 64
    %v3212 = vpop.permute.xlu0 %3211
    %3213 = vrot.lane.b32.xlu0 %v3208, 64
    %v3214 = vpop.permute.xlu0 %3213
    %v3217 = vadd.f32 %v3197, %v3212
    %v3218 = vadd.f32 %v3198, %v3214
    %v3219 = vtanh.pop %v3217
    %v3220 = vtanh.pop %v3218
    %3223 = vrot.lane.b32.xlu0 %v3219, 64
    %v3224 = vpop.permute.xlu0 %3223
    %3225 = vrot.lane.b32.xlu0 %v3220, 64
    %v3226 = vpop.permute.xlu0 %3225
    %v3229 = vmul.f32 %v3158, %v3224
    %v3230 = vmul.f32 %v3188, %v3226
    %v3231 = vld [vmem:[%s7] sm:$0xff]
    %v3232 = vld [vmem:[%s7 + $0x8] sm:$0xff]
    %v3233 = vld [vmem:[%s7 + $0x10] sm:$0xff]
    %v3234 = vld [vmem:[%s7 + $0x18] sm:$0xff]
    %v3235 = vld [vmem:[%s7 + $0x20] sm:$0xff]
    %v3236 = vld [vmem:[%s7 + $0x28] sm:$0xff]
    %v3237 = vld [vmem:[%s7 + $0x30] sm:$0xff]
    %v3238 = vld [vmem:[%s7 + $0x38] sm:$0xff]
    %v3239 = vld [vmem:[%s8] sm:$0x1]
    %v3241 = vperm.slane %v3239, 0
    %v3245 = vrot.slane %v3229, 7
    %v3246 = vrot.slane %v3230, 6
    %v3247 = vsel %vm289, %v3246, %v3245
    %v3248 = vsel %vm118, %v3247, 0
    %3250 = vmatpush.msra.mxu0 0.0
    %3251 = vmatpush.msra.mxu0 0.0
    %3252 = vmatpush.msra.mxu0 0.0
    %3253 = vmatpush.msra.mxu0 0.0
    %3254 = vmatpush.msra.mxu0 0.0
    %3255 = vmatpush.msra.mxu0 0.0
    %3256 = vmatpush.msra.mxu0 0.0
    %3257 = vmatpush.msra.mxu0 0.0
    %3258 = vmatpush.msra.mxu0 %v3238
    %3259 = vmatpush.msra.mxu0 %v3237
    %3260 = vmatpush.msra.mxu0 %v3236
    %3261 = vmatpush.msra.mxu0 %v3235
    %3262 = vmatpush.msra.mxu0 %v3234
    %3263 = vmatpush.msra.mxu0 %v3233
    %3264 = vmatpush.msra.mxu0 %v3232
    %3265 = vmatpush.msra.mxu0 %v3231
    %3266 = vmatmul.f32.gmra.mxu0 %v3248
    %v3267 = vpop.f32.mrf.mxu0
    %v3268 = vadd.f32 %v3241, %v3267
    %3269 = vdwg.mxu0
    %3270 = vst [vmem:[#allocation2] sm:$0x3] %v3268
    // Predicated region
    $region38: #{bilstm_forward.1} parent=1 // pred_check
      _
    $region39: #{bilstm_forward.1} parent=1 // pred_check_branch
      %3272 = sbr.rel (0) target = $region41
    $region40: #{bilstm_forward.1} parent=1 // pred_region
      %3274 = vsyncadd [#allocation3], 0
      %s3276 = sshll.u32 [#allocation2], 4
      %s3277 = int_to_ptr.vmem [resolvable:$true] %s3276
      %s3278 = sshll.u32 %s9, 4
      %s3279 = int_to_ptr.hbm [resolvable:$true] %s3278
      %3281 = dma.vmem_to_hbm [thread:$0]  %s3277, 32, %s3279, [#allocation3]
    $region41: #{bilstm_forward.1} parent=1 // pred_fallthru
      _
    // Predicated region
    $region42: #{bilstm_forward.1} parent=1 // pred_check
      _
    $region43: #{bilstm_forward.1} parent=1 // pred_check_branch
      %3283 = sbr.rel (0) target = $region45
    $region44: #{bilstm_forward.1} parent=1 // pred_region
      %3285 = dma.done [#allocation3], 32
    $region45: #{bilstm_forward.1} parent=1 // pred_fallthru
      _
    %3286 = vsyncpa [#allocation3], 1

</llo_original>
